<compile_context>
chip_gen: v7x
topology: tpu7x:2x2x1
jax: 0.10.0
libtpu: 0.0.40
codegen_flags: <defaults>
</compile_context>

<pallas_src>
import functools

import jax
import jax.numpy as jnp
from jax import lax
from jax.experimental import pallas as pl
from jax.experimental.pallas import tpu as pltpu


def _resblock_kernel(x_ref, w1_ref, w2_ref, bn_ref, o_ref, cat_ref, *, mb):
    # x_ref   : (Nb, H, W, C)      f32 input block (Nb images per grid step)
    # w1_ref  : (3, 3*C, C)        bf16 conv1 weights, rows ordered [kx, Cin]
    # w2_ref  : (3, 3*C, C)        bf16 conv2 weights
    # bn_ref  : (4, C)             f32 folded BN [scale1, bias1, scale2, bias2]
    # o_ref   : (Nb, H, W, C)      output block
    # cat_ref : (mb, H+2, W, 3*C)  f32 scratch: y-halo rows + the three
    #                              x-shifted copies lane-concatenated.
    nb, H, W, C = x_ref.shape
    C3 = 3 * C

    scale1 = bn_ref[0:1, :]
    bias1 = bn_ref[1:2, :]
    scale2 = bn_ref[2:3, :]
    bias2 = bn_ref[3:4, :]

    # Zero only the two y-halo rows (interior is fully overwritten below).
    # Done every step: cheap (2 rows) and safe under megacore grid splitting,
    # unlike a `pl.program_id(0) == 0` guard.
    halo = jnp.zeros((cat_ref.shape[0], 1, W, C3), cat_ref.dtype)
    cat_ref[:, 0:1, :, :] = halo
    cat_ref[:, H + 1:H + 2, :, :] = halo

    def fill_shifted(act, nimg, mask_l, mask_r):
        # act: (nimg, H, W, C) f32.  Store [x-1 | x | x+1] copies side by side
        # on the lane axis of cat_ref's interior rows.  The dx shift is a
        # sublane roll (XLU) + edge mask; all stores are full-(W,C)-tile,
        # lane-tile-aligned.
        M = nimg * H * W
        flat = act.reshape(M, C)
        left = pltpu.roll(flat, 1, axis=0).reshape(nimg, H, W, C)       # x-1
        right = pltpu.roll(flat, M - 1, axis=0).reshape(nimg, H, W, C)  # x+1
        cat_ref[0:nimg, 1:H + 1, :, 0:C] = jnp.where(mask_l, left, 0.0)
        cat_ref[0:nimg, 1:H + 1, :, C:2 * C] = act
        cat_ref[0:nimg, 1:H + 1, :, 2 * C:C3] = jnp.where(mask_r, right, 0.0)

    def conv3x3(w_ref, nimg):
        # 3 accumulated MXU matmuls with K = 3*C (taps fused on the lane axis).
        # bf16 operands, f32 accumulation, default (single-pass) precision.
        M = nimg * H * W
        acc = jnp.zeros((M, C), jnp.float32)
        for ky in range(3):
            patch = cat_ref[0:nimg, ky:ky + H, :, :].reshape(M, C3)
            acc = acc + jnp.dot(patch.astype(jnp.bfloat16), w_ref[ky],
                                preferred_element_type=jnp.float32)
        return acc

    # Chunk the Nb images so M = nimg*H*W stays <= 256 rows per matmul.
    for c0 in range(0, nb, mb):
        nimg = min(mb, nb - c0)
        M = nimg * H * W

        col = lax.broadcasted_iota(jnp.int32, (nimg, H, W, C), 2)
        mask_l = col >= 1
        mask_r = col <= W - 2

        xin = x_ref[c0:c0 + nimg, :, :, :]                  # (nimg, H, W, C) f32

        # ---- conv1 -> BN1 -> ReLU -------------------------------------------
        fill_shifted(xin, nimg, mask_l, mask_r)
        acc1 = conv3x3(w1_ref, nimg)
        out1 = jnp.maximum(acc1 * scale1 + bias1, 0.0)      # (M, C) f32

        # ---- conv2 -> BN2 -> +residual -> ReLU -------------------------------
        fill_shifted(out1.reshape(nimg, H, W, C), nimg, mask_l, mask_r)
        acc2 = conv3x3(w2_ref, nimg)
        res = xin.reshape(M, C)                             # residual, exact f32
        out2 = jnp.maximum(acc2 * scale2 + bias2 + res, 0.0)

        o_ref[c0:c0 + nimg, :, :, :] = (
            out2.reshape(nimg, H, W, C).astype(o_ref.dtype))


def _pick_blocks(n, h, w):
    """Choose (images per grid step, images per matmul chunk)."""
    # Keep M = mb*h*w <= 256 rows so the f32 accumulator stays in vregs.
    mb = max(1, 256 // (h * w))
    # Batch several images per grid step to amortize per-step overhead;
    # take the largest divisor of n not exceeding the target.
    target = min(n, max(8, mb))
    nb = 1
    for d in range(1, target + 1):
        if n % d == 0:
            nb = d
    return nb, min(mb, nb)


@functools.partial(jax.jit, static_argnames=("eps",))
def resblock(x, w1, w2,
             gamma1, beta1, mean1, var1,
             gamma2, beta2, mean2, var2,
             eps=1e-5):
    """ResBlock forward (inference-mode BatchNorm), NHWC activations.

    x       : (N, H, W, C) float32   (permute PyTorch NCHW once at the boundary)
    w1, w2  : (3, 3, C, C) float32   HWIO (PyTorch OIHW -> transpose(2,3,1,0))
    BN params: (C,) float32 each (weight, bias, running_mean, running_var).
    """
    N, H, W, C = x.shape
    assert w1.shape == (3, 3, C, C) and w2.shape == (3, 3, C, C)
    assert C % 128 == 0, "channel count must be lane-aligned (multiple of 128)"

    # Fold inference BatchNorm into per-channel scale/bias packed into ONE
    # lane-dense (4, C) array.
    scale1 = gamma1 * lax.rsqrt(var1 + eps)
    bias1 = beta1 - mean1 * scale1
    scale2 = gamma2 * lax.rsqrt(var2 + eps)
    bias2 = beta2 - mean2 * scale2
    bn = jnp.stack([scale1, bias1, scale2, bias2], axis=0).astype(jnp.float32)

    # (3,3,C,C) HWIO -> (3, 3*C, C): per dy-row, the kx taps are stacked along
    # the contraction axis in the same [x-1 | x | x+1] order as the kernel's
    # lane-concatenated patch buffer.  bf16 for the MXU (f32 accumulation).
    w1c = w1.reshape(3, 3 * C, C).astype(jnp.bfloat16)
    w2c = w2.reshape(3, 3 * C, C).astype(jnp.bfloat16)

    nb, mb = _pick_blocks(N, H, W)
    kernel = functools.partial(_resblock_kernel, mb=mb)

    out = pl.pallas_call(
        kernel,
        out_shape=jax.ShapeDtypeStruct((N, H, W, C), x.dtype),
        grid=(N // nb,),
        in_specs=[
            pl.BlockSpec((nb, H, W, C), lambda n: (n, 0, 0, 0)),
            # Constant-index weight/bn blocks are DMA'd only on the first step.
            pl.BlockSpec((3, 3 * C, C), lambda n: (0, 0, 0)),
            pl.BlockSpec((3, 3 * C, C), lambda n: (0, 0, 0)),
            pl.BlockSpec((4, C), lambda n: (0, 0)),
        ],
        out_specs=pl.BlockSpec((nb, H, W, C), lambda n: (n, 0, 0, 0)),
        scratch_shapes=[pltpu.VMEM((mb, H + 2, W, 3 * C), jnp.float32)],
        compiler_params=pltpu.CompilerParams(
            dimension_semantics=("parallel",)),
    )(x, w1c, w2c, bn)
    return out


def _resblock_reference(x, w1, w2,
                        gamma1, beta1, mean1, var1,
                        gamma2, beta2, mean2, var2, eps=1e-5):
    dn = lax.conv_dimension_numbers(x.shape, w1.shape, ("NHWC", "HWIO", "NHWC"))
    out = lax.conv_general_dilated(x, w1, (1, 1), ((1, 1), (1, 1)),
                                   dimension_numbers=dn,
                                   precision=lax.Precision.HIGHEST)
    out = (out - mean1) * lax.rsqrt(var1 + eps) * gamma1 + beta1
    out = jnp.maximum(out, 0.0)
    out = lax.conv_general_dilated(out, w2, (1, 1), ((1, 1), (1, 1)),
                                   dimension_numbers=dn,
                                   precision=lax.Precision.HIGHEST)
    out = (out - mean2) * lax.rsqrt(var2 + eps) * gamma2 + beta2
    out = jnp.maximum(out + x, 0.0)
    return out


if __name__ == "__main__":
    # Module default is 128 channels; keep spatial small (8x8) for the test.
    N, C, H, W = 2, 128, 8, 8
    key = jax.random.PRNGKey(0)
    ks = jax.random.split(key, 11)

    x = jax.random.normal(ks[0], (N, H, W, C), jnp.float32)
    fan_in = 9 * C
    w1 = jax.random.normal(ks[1], (3, 3, C, C), jnp.float32) / jnp.sqrt(fan_in)
    w2 = jax.random.normal(ks[2], (3, 3, C, C), jnp.float32) / jnp.sqrt(fan_in)

    gamma1 = 1.0 + 0.1 * jax.random.normal(ks[3], (C,), jnp.float32)
    beta1 = 0.1 * jax.random.normal(ks[4], (C,), jnp.float32)
    mean1 = 0.1 * jax.random.normal(ks[5], (C,), jnp.float32)
    var1 = 1.0 + 0.1 * jax.random.uniform(ks[6], (C,), jnp.float32)
    gamma2 = 1.0 + 0.1 * jax.random.normal(ks[7], (C,), jnp.float32)
    beta2 = 0.1 * jax.random.normal(ks[8], (C,), jnp.float32)
    mean2 = 0.1 * jax.random.normal(ks[9], (C,), jnp.float32)
    var2 = 1.0 + 0.1 * jax.random.uniform(ks[10], (C,), jnp.float32)

    out = resblock(x, w1, w2,
                   gamma1, beta1, mean1, var1,
                   gamma2, beta2, mean2, var2)
    jax.block_until_ready(out)

    ref = _resblock_reference(x, w1, w2,
                              gamma1, beta1, mean1, var1,
                              gamma2, beta2, mean2, var2)
    max_err = jnp.max(jnp.abs(out - ref))
    assert out.shape == ref.shape, (out.shape, ref.shape)
    # Tolerance loosened vs. the f32-HIGHEST reference because the kernel uses
    # bf16 MXU operands with f32 accumulation (per the perf review).
    assert jnp.allclose(out, ref, atol=5e-2, rtol=5e-2), ("max abs err", max_err)

    print("KERNEL_OK")
</pallas_src>

<mosaic_0001>
module attributes {stable_mosaic.version = 11 : i64} {
  func.func @_resblock_kernel(%arg0: i32, %arg1: memref<2x8x8x128xf32, #tpu.memory_space<vmem>>, %arg2: memref<3x384x128xbf16, #tpu.memory_space<vmem>>, %arg3: memref<3x384x128xbf16, #tpu.memory_space<vmem>>, %arg4: memref<4x128xf32, #tpu.memory_space<vmem>>, %arg5: memref<2x8x8x128xf32, #tpu.memory_space<vmem>>, %arg6: memref<2x10x8x384xf32, #tpu.memory_space<vmem>>) attributes {dimension_semantics = [#tpu.dimension_semantics<parallel>], iteration_bounds = array<i64: 1>, scalar_prefetch = 0 : i64, scratch_operands = 1 : i64, tpu.core_type = #tpu.core_type<tc>, window_params = [{transform_indices = @transform_0, window_bounds = array<i64: 2, 8, 8, 128>}, {pipeline_mode = #tpu.pipeline_mode<synchronous>, transform_indices = @transform_1, window_bounds = array<i64: 3, 384, 128>}, {pipeline_mode = #tpu.pipeline_mode<synchronous>, transform_indices = @transform_2, window_bounds = array<i64: 3, 384, 128>}, {pipeline_mode = #tpu.pipeline_mode<synchronous>, transform_indices = @transform_3, window_bounds = array<i64: 4, 128>}, {transform_indices = @transform_4, window_bounds = array<i64: 2, 8, 8, 128>}]} {
    %c0 = arith.constant 0 : index
    %c0_0 = arith.constant 0 : index
    %0 = vector.load %arg4[%c0, %c0_0] : memref<4x128xf32, #tpu.memory_space<vmem>>, vector<1x128xf32>
    %c1 = arith.constant 1 : index
    %c0_1 = arith.constant 0 : index
    %1 = vector.load %arg4[%c1, %c0_1] : memref<4x128xf32, #tpu.memory_space<vmem>>, vector<1x128xf32>
    %c2 = arith.constant 2 : index
    %c0_2 = arith.constant 0 : index
    %2 = vector.load %arg4[%c2, %c0_2] : memref<4x128xf32, #tpu.memory_space<vmem>>, vector<1x128xf32>
    %c3 = arith.constant 3 : index
    %c0_3 = arith.constant 0 : index
    %3 = vector.load %arg4[%c3, %c0_3] : memref<4x128xf32, #tpu.memory_space<vmem>>, vector<1x128xf32>
    %cst = arith.constant 0.000000e+00 : f32
    %4 = vector.broadcast %cst : f32 to vector<2x1x8x384xf32>
    %c0_4 = arith.constant 0 : index
    %c0_5 = arith.constant 0 : index
    %c0_6 = arith.constant 0 : index
    %c0_7 = arith.constant 0 : index
    %5 = vector.load %arg6[%c0_4, %c0_5, %c0_6, %c0_7] : memref<2x10x8x384xf32, #tpu.memory_space<vmem>>, vector<2x1x8x384xf32>
    tpu.vector_store %arg6[%c0_4, %c0_5, %c0_6, %c0_7], %4 {strides = array<i32>} : memref<2x10x8x384xf32, #tpu.memory_space<vmem>>, vector<2x1x8x384xf32>,
    %c0_8 = arith.constant 0 : index
    %c9 = arith.constant 9 : index
    %c0_9 = arith.constant 0 : index
    %c0_10 = arith.constant 0 : index
    %6 = vector.load %arg6[%c0_8, %c9, %c0_9, %c0_10] : memref<2x10x8x384xf32, #tpu.memory_space<vmem>>, vector<2x1x8x384xf32>
    tpu.vector_store %arg6[%c0_8, %c9, %c0_9, %c0_10], %4 {strides = array<i32>} : memref<2x10x8x384xf32, #tpu.memory_space<vmem>>, vector<2x1x8x384xf32>,
    %7 = tpu.iota {dimensions = array<i32: 2>} : vector<2x8x8x128xi32>
    %c1_i32 = arith.constant 1 : i32
    %8 = vector.broadcast %c1_i32 : i32 to vector<2x8x8x128xi32>
    %9 = arith.cmpi sge, %7, %8 : vector<2x8x8x128xi32>
    %c6_i32 = arith.constant 6 : i32
    %10 = vector.broadcast %c6_i32 : i32 to vector<2x8x8x128xi32>
    %11 = arith.cmpi sle, %7, %10 : vector<2x8x8x128xi32>
    %c0_11 = arith.constant 0 : index
    %c0_12 = arith.constant 0 : index
    %c0_13 = arith.constant 0 : index
    %c0_14 = arith.constant 0 : index
    %12 = vector.load %arg1[%c0_11, %c0_12, %c0_13, %c0_14] : memref<2x8x8x128xf32, #tpu.memory_space<vmem>>, vector<2x8x8x128xf32>
    %13 = vector.shape_cast %12 : vector<2x8x8x128xf32> to vector<128x128xf32>
    %c1_i32_15 = arith.constant 1 : i32
    %14 = tpu.dynamic_rotate %13 by %c1_i32_15 dim 0 : vector<128x128xf32>, i32 -> vector<128x128xf32>
    %15 = vector.shape_cast %14 : vector<128x128xf32> to vector<2x8x8x128xf32>
    %c127_i32 = arith.constant 127 : i32
    %16 = tpu.dynamic_rotate %13 by %c127_i32 dim 0 : vector<128x128xf32>, i32 -> vector<128x128xf32>
    %17 = vector.shape_cast %16 : vector<128x128xf32> to vector<2x8x8x128xf32>
    %cst_16 = arith.constant 0.000000e+00 : f32
    %18 = vector.broadcast %cst_16 : f32 to vector<2x8x8x128xf32>
    %19 = arith.select %9, %15, %18 : vector<2x8x8x128xi1>, vector<2x8x8x128xf32>
    %c0_17 = arith.constant 0 : index
    %c1_18 = arith.constant 1 : index
    %c0_19 = arith.constant 0 : index
    %c0_20 = arith.constant 0 : index
    %20 = vector.load %arg6[%c0_17, %c1_18, %c0_19, %c0_20] : memref<2x10x8x384xf32, #tpu.memory_space<vmem>>, vector<2x8x8x128xf32>
    tpu.vector_store %arg6[%c0_17, %c1_18, %c0_19, %c0_20], %19 {strides = array<i32>} : memref<2x10x8x384xf32, #tpu.memory_space<vmem>>, vector<2x8x8x128xf32>,
    %c0_21 = arith.constant 0 : index
    %c1_22 = arith.constant 1 : index
    %c0_23 = arith.constant 0 : index
    %c128 = arith.constant 128 : index
    %21 = vector.load %arg6[%c0_21, %c1_22, %c0_23, %c128] : memref<2x10x8x384xf32, #tpu.memory_space<vmem>>, vector<2x8x8x128xf32>
    tpu.vector_store %arg6[%c0_21, %c1_22, %c0_23, %c128], %12 {strides = array<i32>} : memref<2x10x8x384xf32, #tpu.memory_space<vmem>>, vector<2x8x8x128xf32>,
    %cst_24 = arith.constant 0.000000e+00 : f32
    %22 = vector.broadcast %cst_24 : f32 to vector<2x8x8x128xf32>
    %23 = arith.select %11, %17, %22 : vector<2x8x8x128xi1>, vector<2x8x8x128xf32>
    %c0_25 = arith.constant 0 : index
    %c1_26 = arith.constant 1 : index
    %c0_27 = arith.constant 0 : index
    %c256 = arith.constant 256 : index
    %24 = vector.load %arg6[%c0_25, %c1_26, %c0_27, %c256] : memref<2x10x8x384xf32, #tpu.memory_space<vmem>>, vector<2x8x8x128xf32>
    tpu.vector_store %arg6[%c0_25, %c1_26, %c0_27, %c256], %23 {strides = array<i32>} : memref<2x10x8x384xf32, #tpu.memory_space<vmem>>, vector<2x8x8x128xf32>,
    %cst_28 = arith.constant 0.000000e+00 : f32
    %25 = vector.broadcast %cst_28 : f32 to vector<128x128xf32>
    %c0_29 = arith.constant 0 : index
    %c0_30 = arith.constant 0 : index
    %c0_31 = arith.constant 0 : index
    %c0_32 = arith.constant 0 : index
    %26 = vector.load %arg6[%c0_29, %c0_30, %c0_31, %c0_32] : memref<2x10x8x384xf32, #tpu.memory_space<vmem>>, vector<2x8x8x384xf32>
    %27 = vector.shape_cast %26 : vector<2x8x8x384xf32> to vector<128x384xf32>
    %28 = arith.truncf %27 : vector<128x384xf32> to vector<128x384xbf16>
    %c0_33 = arith.constant 0 : index
    %c0_34 = arith.constant 0 : index
    %c0_35 = arith.constant 0 : index
    %29 = vector.load %arg2[%c0_33, %c0_34, %c0_35] : memref<3x384x128xbf16, #tpu.memory_space<vmem>>, vector<1x384x128xbf16>
    %30 = vector.shape_cast %29 : vector<1x384x128xbf16> to vector<384x128xbf16>
    %cst_36 = arith.constant dense<0.000000e+00> : vector<128x128xf32>
    %31 = tpu.matmul %28, %30, %cst_36 {dimension_numbers = #tpu.dot_dimension_numbers<[1], [0], [0], [1], [0, 0, 1, 1], [], []>} : vector<128x384xbf16>, vector<384x128xbf16>, vector<128x128xf32> -> vector<128x128xf32>
    %32 = arith.addf %25, %31 : vector<128x128xf32>
    %c0_37 = arith.constant 0 : index
    %c1_38 = arith.constant 1 : index
    %c0_39 = arith.constant 0 : index
    %c0_40 = arith.constant 0 : index
    %33 = vector.load %arg6[%c0_37, %c1_38, %c0_39, %c0_40] : memref<2x10x8x384xf32, #tpu.memory_space<vmem>>, vector<2x8x8x384xf32>
    %34 = vector.shape_cast %33 : vector<2x8x8x384xf32> to vector<128x384xf32>
    %35 = arith.truncf %34 : vector<128x384xf32> to vector<128x384xbf16>
    %c1_41 = arith.constant 1 : index
    %c0_42 = arith.constant 0 : index
    %c0_43 = arith.constant 0 : index
    %36 = vector.load %arg2[%c1_41, %c0_42, %c0_43] : memref<3x384x128xbf16, #tpu.memory_space<vmem>>, vector<1x384x128xbf16>
    %37 = vector.shape_cast %36 : vector<1x384x128xbf16> to vector<384x128xbf16>
    %cst_44 = arith.constant dense<0.000000e+00> : vector<128x128xf32>
    %38 = tpu.matmul %35, %37, %cst_44 {dimension_numbers = #tpu.dot_dimension_numbers<[1], [0], [0], [1], [0, 0, 1, 1], [], []>} : vector<128x384xbf16>, vector<384x128xbf16>, vector<128x128xf32> -> vector<128x128xf32>
    %39 = arith.addf %32, %38 : vector<128x128xf32>
    %c0_45 = arith.constant 0 : index
    %c2_46 = arith.constant 2 : index
    %c0_47 = arith.constant 0 : index
    %c0_48 = arith.constant 0 : index
    %40 = vector.load %arg6[%c0_45, %c2_46, %c0_47, %c0_48] : memref<2x10x8x384xf32, #tpu.memory_space<vmem>>, vector<2x8x8x384xf32>
    %41 = vector.shape_cast %40 : vector<2x8x8x384xf32> to vector<128x384xf32>
    %42 = arith.truncf %41 : vector<128x384xf32> to vector<128x384xbf16>
    %c2_49 = arith.constant 2 : index
    %c0_50 = arith.constant 0 : index
    %c0_51 = arith.constant 0 : index
    %43 = vector.load %arg2[%c2_49, %c0_50, %c0_51] : memref<3x384x128xbf16, #tpu.memory_space<vmem>>, vector<1x384x128xbf16>
    %44 = vector.shape_cast %43 : vector<1x384x128xbf16> to vector<384x128xbf16>
    %cst_52 = arith.constant dense<0.000000e+00> : vector<128x128xf32>
    %45 = tpu.matmul %42, %44, %cst_52 {dimension_numbers = #tpu.dot_dimension_numbers<[1], [0], [0], [1], [0, 0, 1, 1], [], []>} : vector<128x384xbf16>, vector<384x128xbf16>, vector<128x128xf32> -> vector<128x128xf32>
    %46 = arith.addf %39, %45 : vector<128x128xf32>
    %47 = vector.broadcast %0 : vector<1x128xf32> to vector<128x128xf32>
    %48 = arith.mulf %46, %47 : vector<128x128xf32>
    %49 = vector.broadcast %1 : vector<1x128xf32> to vector<128x128xf32>
    %50 = arith.addf %48, %49 : vector<128x128xf32>
    %cst_53 = arith.constant 0.000000e+00 : f32
    %51 = vector.broadcast %cst_53 : f32 to vector<128x128xf32>
    %52 = arith.maximumf %50, %51 : vector<128x128xf32>
    %53 = vector.shape_cast %52 : vector<128x128xf32> to vector<2x8x8x128xf32>
    %54 = vector.shape_cast %53 : vector<2x8x8x128xf32> to vector<128x128xf32>
    %c1_i32_54 = arith.constant 1 : i32
    %55 = tpu.dynamic_rotate %54 by %c1_i32_54 dim 0 : vector<128x128xf32>, i32 -> vector<128x128xf32>
    %56 = vector.shape_cast %55 : vector<128x128xf32> to vector<2x8x8x128xf32>
    %c127_i32_55 = arith.constant 127 : i32
    %57 = tpu.dynamic_rotate %54 by %c127_i32_55 dim 0 : vector<128x128xf32>, i32 -> vector<128x128xf32>
    %58 = vector.shape_cast %57 : vector<128x128xf32> to vector<2x8x8x128xf32>
    %cst_56 = arith.constant 0.000000e+00 : f32
    %59 = vector.broadcast %cst_56 : f32 to vector<2x8x8x128xf32>
    %60 = arith.select %9, %56, %59 : vector<2x8x8x128xi1>, vector<2x8x8x128xf32>
    %c0_57 = arith.constant 0 : index
    %c1_58 = arith.constant 1 : index
    %c0_59 = arith.constant 0 : index
    %c0_60 = arith.constant 0 : index
    %61 = vector.load %arg6[%c0_57, %c1_58, %c0_59, %c0_60] : memref<2x10x8x384xf32, #tpu.memory_space<vmem>>, vector<2x8x8x128xf32>
    tpu.vector_store %arg6[%c0_57, %c1_58, %c0_59, %c0_60], %60 {strides = array<i32>} : memref<2x10x8x384xf32, #tpu.memory_space<vmem>>, vector<2x8x8x128xf32>,
    %c0_61 = arith.constant 0 : index
    %c1_62 = arith.constant 1 : index
    %c0_63 = arith.constant 0 : index
    %c128_64 = arith.constant 128 : index
    %62 = vector.load %arg6[%c0_61, %c1_62, %c0_63, %c128_64] : memref<2x10x8x384xf32, #tpu.memory_space<vmem>>, vector<2x8x8x128xf32>
    tpu.vector_store %arg6[%c0_61, %c1_62, %c0_63, %c128_64], %53 {strides = array<i32>} : memref<2x10x8x384xf32, #tpu.memory_space<vmem>>, vector<2x8x8x128xf32>,
    %cst_65 = arith.constant 0.000000e+00 : f32
    %63 = vector.broadcast %cst_65 : f32 to vector<2x8x8x128xf32>
    %64 = arith.select %11, %58, %63 : vector<2x8x8x128xi1>, vector<2x8x8x128xf32>
    %c0_66 = arith.constant 0 : index
    %c1_67 = arith.constant 1 : index
    %c0_68 = arith.constant 0 : index
    %c256_69 = arith.constant 256 : index
    %65 = vector.load %arg6[%c0_66, %c1_67, %c0_68, %c256_69] : memref<2x10x8x384xf32, #tpu.memory_space<vmem>>, vector<2x8x8x128xf32>
    tpu.vector_store %arg6[%c0_66, %c1_67, %c0_68, %c256_69], %64 {strides = array<i32>} : memref<2x10x8x384xf32, #tpu.memory_space<vmem>>, vector<2x8x8x128xf32>,
    %cst_70 = arith.constant 0.000000e+00 : f32
    %66 = vector.broadcast %cst_70 : f32 to vector<128x128xf32>
    %c0_71 = arith.constant 0 : index
    %c0_72 = arith.constant 0 : index
    %c0_73 = arith.constant 0 : index
    %c0_74 = arith.constant 0 : index
    %67 = vector.load %arg6[%c0_71, %c0_72, %c0_73, %c0_74] : memref<2x10x8x384xf32, #tpu.memory_space<vmem>>, vector<2x8x8x384xf32>
    %68 = vector.shape_cast %67 : vector<2x8x8x384xf32> to vector<128x384xf32>
    %69 = arith.truncf %68 : vector<128x384xf32> to vector<128x384xbf16>
    %c0_75 = arith.constant 0 : index
    %c0_76 = arith.constant 0 : index
    %c0_77 = arith.constant 0 : index
    %70 = vector.load %arg3[%c0_75, %c0_76, %c0_77] : memref<3x384x128xbf16, #tpu.memory_space<vmem>>, vector<1x384x128xbf16>
    %71 = vector.shape_cast %70 : vector<1x384x128xbf16> to vector<384x128xbf16>
    %cst_78 = arith.constant dense<0.000000e+00> : vector<128x128xf32>
    %72 = tpu.matmul %69, %71, %cst_78 {dimension_numbers = #tpu.dot_dimension_numbers<[1], [0], [0], [1], [0, 0, 1, 1], [], []>} : vector<128x384xbf16>, vector<384x128xbf16>, vector<128x128xf32> -> vector<128x128xf32>
    %73 = arith.addf %66, %72 : vector<128x128xf32>
    %c0_79 = arith.constant 0 : index
    %c1_80 = arith.constant 1 : index
    %c0_81 = arith.constant 0 : index
    %c0_82 = arith.constant 0 : index
    %74 = vector.load %arg6[%c0_79, %c1_80, %c0_81, %c0_82] : memref<2x10x8x384xf32, #tpu.memory_space<vmem>>, vector<2x8x8x384xf32>
    %75 = vector.shape_cast %74 : vector<2x8x8x384xf32> to vector<128x384xf32>
    %76 = arith.truncf %75 : vector<128x384xf32> to vector<128x384xbf16>
    %c1_83 = arith.constant 1 : index
    %c0_84 = arith.constant 0 : index
    %c0_85 = arith.constant 0 : index
    %77 = vector.load %arg3[%c1_83, %c0_84, %c0_85] : memref<3x384x128xbf16, #tpu.memory_space<vmem>>, vector<1x384x128xbf16>
    %78 = vector.shape_cast %77 : vector<1x384x128xbf16> to vector<384x128xbf16>
    %cst_86 = arith.constant dense<0.000000e+00> : vector<128x128xf32>
    %79 = tpu.matmul %76, %78, %cst_86 {dimension_numbers = #tpu.dot_dimension_numbers<[1], [0], [0], [1], [0, 0, 1, 1], [], []>} : vector<128x384xbf16>, vector<384x128xbf16>, vector<128x128xf32> -> vector<128x128xf32>
    %80 = arith.addf %73, %79 : vector<128x128xf32>
    %c0_87 = arith.constant 0 : index
    %c2_88 = arith.constant 2 : index
    %c0_89 = arith.constant 0 : index
    %c0_90 = arith.constant 0 : index
    %81 = vector.load %arg6[%c0_87, %c2_88, %c0_89, %c0_90] : memref<2x10x8x384xf32, #tpu.memory_space<vmem>>, vector<2x8x8x384xf32>
    %82 = vector.shape_cast %81 : vector<2x8x8x384xf32> to vector<128x384xf32>
    %83 = arith.truncf %82 : vector<128x384xf32> to vector<128x384xbf16>
    %c2_91 = arith.constant 2 : index
    %c0_92 = arith.constant 0 : index
    %c0_93 = arith.constant 0 : index
    %84 = vector.load %arg3[%c2_91, %c0_92, %c0_93] : memref<3x384x128xbf16, #tpu.memory_space<vmem>>, vector<1x384x128xbf16>
    %85 = vector.shape_cast %84 : vector<1x384x128xbf16> to vector<384x128xbf16>
    %cst_94 = arith.constant dense<0.000000e+00> : vector<128x128xf32>
    %86 = tpu.matmul %83, %85, %cst_94 {dimension_numbers = #tpu.dot_dimension_numbers<[1], [0], [0], [1], [0, 0, 1, 1], [], []>} : vector<128x384xbf16>, vector<384x128xbf16>, vector<128x128xf32> -> vector<128x128xf32>
    %87 = arith.addf %80, %86 : vector<128x128xf32>
    %88 = vector.shape_cast %12 : vector<2x8x8x128xf32> to vector<128x128xf32>
    %89 = vector.broadcast %2 : vector<1x128xf32> to vector<128x128xf32>
    %90 = arith.mulf %87, %89 : vector<128x128xf32>
    %91 = vector.broadcast %3 : vector<1x128xf32> to vector<128x128xf32>
    %92 = arith.addf %90, %91 : vector<128x128xf32>
    %93 = arith.addf %92, %88 : vector<128x128xf32>
    %cst_95 = arith.constant 0.000000e+00 : f32
    %94 = vector.broadcast %cst_95 : f32 to vector<128x128xf32>
    %95 = arith.maximumf %93, %94 : vector<128x128xf32>
    %96 = vector.shape_cast %95 : vector<128x128xf32> to vector<2x8x8x128xf32>
    %c0_96 = arith.constant 0 : index
    %c0_97 = arith.constant 0 : index
    %c0_98 = arith.constant 0 : index
    %c0_99 = arith.constant 0 : index
    %97 = vector.load %arg5[%c0_96, %c0_97, %c0_98, %c0_99] : memref<2x8x8x128xf32, #tpu.memory_space<vmem>>, vector<2x8x8x128xf32>
    tpu.vector_store %arg5[%c0_96, %c0_97, %c0_98, %c0_99], %96 {strides = array<i32>} : memref<2x8x8x128xf32, #tpu.memory_space<vmem>>, vector<2x8x8x128xf32>,
    return
  }
  func.func @transform_0(%arg0: i32) -> (i32, i32, i32, i32) {
    %c0_i32 = arith.constant 0 : i32
    %c0_i32_0 = arith.constant 0 : i32
    %c0_i32_1 = arith.constant 0 : i32
    %c0_i32_2 = arith.constant 0 : i32
    return %arg0, %c0_i32, %c0_i32_0, %c0_i32_1 : i32, i32, i32, i32
  }
  func.func @transform_1(%arg0: i32) -> (i32, i32, i32) {
    %c0_i32 = arith.constant 0 : i32
    %c0_i32_0 = arith.constant 0 : i32
    %c0_i32_1 = arith.constant 0 : i32
    %c0_i32_2 = arith.constant 0 : i32
    return %c0_i32, %c0_i32_0, %c0_i32_1 : i32, i32, i32
  }
  func.func @transform_2(%arg0: i32) -> (i32, i32, i32) {
    %c0_i32 = arith.constant 0 : i32
    %c0_i32_0 = arith.constant 0 : i32
    %c0_i32_1 = arith.constant 0 : i32
    %c0_i32_2 = arith.constant 0 : i32
    return %c0_i32, %c0_i32_0, %c0_i32_1 : i32, i32, i32
  }
  func.func @transform_3(%arg0: i32) -> (i32, i32) {
    %c0_i32 = arith.constant 0 : i32
    %c0_i32_0 = arith.constant 0 : i32
    %c0_i32_1 = arith.constant 0 : i32
    return %c0_i32, %c0_i32_0 : i32, i32
  }
  func.func @transform_4(%arg0: i32) -> (i32, i32, i32, i32) {
    %c0_i32 = arith.constant 0 : i32
    %c0_i32_0 = arith.constant 0 : i32
    %c0_i32_1 = arith.constant 0 : i32
    %c0_i32_2 = arith.constant 0 : i32
    return %arg0, %c0_i32, %c0_i32_0, %c0_i32_1 : i32, i32, i32, i32
  }
}

</mosaic_0001>

<llo_original>
// kernel: resblock.1
$region0: #{resblock.1}
  #allocation0 [shape = 'u32[]', space=smem, size = 0x4, offset = 0x4, fixed_abs, tag = 'smem constant byte address 0x4 - core index']
  #allocation1 [shape = 'u32[144,128]{1,0:T(1,128)}', space=vmem, size = 0x12000, scoped, tag = 'internal scratch']
  #allocation2 [shape = 'f32[2,10,8,384]{3,2,1,0:T(8,128)}', space=vmem, size = 0x3c000, scoped, tag = 'scratch operand']
  %s0 = inlined_call_operand.vmem [shape: f32[2,8,8,128], index: 0, kind: input, shape index: {}]
  %s1 = inlined_call_operand.vmem [shape: bf16[3,384,128], index: 1, kind: input, shape index: {}]
  %s2 = inlined_call_operand.vmem [shape: bf16[3,384,128], index: 2, kind: input, shape index: {}]
  %s3 = inlined_call_operand.vmem [shape: f32[4,128], index: 3, kind: input, shape index: {}]
  %s4 = inlined_call_operand.hbm [shape: f32[2,8,8,128], index: 4, kind: output, shape index: {}]
  %s5 = sld [smem:[#allocation0]]
  $region26: #{resblock.1} parent=0
    _
  %s7 = ssub.s32 1, %s5
  %s8 = scalar_select 0, %s7, %s5
  $region1: #{resblock.1} parent=0
    #allocation3 [shape = 'u8[65536]{0}', space=vmem, size = 0x10000, scoped, tag = 'output window, operand 0, single buffered']
    #allocation4 [shape = 's32[1]{0}', space=sflag, size = 0x4, scoped, tag = 'scoped memory for resblock.1']
    %9 = vsyncpa [#allocation4], 0
    // Predicated region
    $region2: #{resblock.1} parent=1 // pred_check
      _
    $region3: #{resblock.1} parent=1 // pred_check_branch
      %11 = sbr.rel (0) target = $region5
    $region4: #{resblock.1} parent=1 // pred_region
      _
    $region5: #{resblock.1} parent=1 // pred_fallthru
      _
    // Predicated region
    $region6: #{resblock.1} parent=1 // pred_check
      _
    $region7: #{resblock.1} parent=1 // pred_check_branch
      %13 = sbr.rel (0) target = $region9
    $region8: #{resblock.1} parent=1 // pred_region
      _
    $region9: #{resblock.1} parent=1 // pred_fallthru
      _
    // Predicated region
    $region10: #{resblock.1} parent=1 // pred_check
      _
    $region11: #{resblock.1} parent=1 // pred_check_branch
      %15 = sbr.rel (0) target = $region13
    $region12: #{resblock.1} parent=1 // pred_region
      _
    $region13: #{resblock.1} parent=1 // pred_fallthru
      _
    // Predicated region
    $region14: #{resblock.1} parent=1 // pred_check
      _
    $region15: #{resblock.1} parent=1 // pred_check_branch
      %17 = sbr.rel (0) target = $region17
    $region16: #{resblock.1} parent=1 // pred_region
      _
    $region17: #{resblock.1} parent=1 // pred_fallthru
      _
    %v19 = vld [vmem:[%s3] sm:$0x1]
    %v20 = vld [vmem:[%s3 + $0x1] sm:$0x1]
    %v21 = vld [vmem:[%s3 + $0x2] sm:$0x1]
    %v22 = vld [vmem:[%s3 + $0x3] sm:$0x1]
    %23 = vst [vmem:[#allocation2] sm:$0xff] 0.0
    %24 = vst [vmem:[#allocation2 + $0x8] sm:$0xff] 0.0
    %25 = vst [vmem:[#allocation2 + $0x10] sm:$0xff] 0.0
    %26 = vst [vmem:[#allocation2 + $0xf0] sm:$0xff] 0.0
    %27 = vst [vmem:[#allocation2 + $0xf8] sm:$0xff] 0.0
    %28 = vst [vmem:[#allocation2 + $0x100] sm:$0xff] 0.0
    %s29 = scalar_lea.vmem [#allocation2], 216
    %30 = vst [vmem:[%s29] sm:$0xff] 0.0
    %31 = vst [vmem:[%s29 + $0x8] sm:$0xff] 0.0
    %32 = vst [vmem:[%s29 + $0x10] sm:$0xff] 0.0
    %33 = vst [vmem:[%s29 + $0xf0] sm:$0xff] 0.0
    %34 = vst [vmem:[%s29 + $0xf8] sm:$0xff] 0.0
    %35 = vst [vmem:[%s29 + $0x100] sm:$0xff] 0.0
    %v36 = vlaneseq
    %v37 = vshrl.u32 %v36, 7
    %vm38 = vcmp.ge.s32.totalorder %v37, 1
    %vm39 = vcmp.le.s32.totalorder %v37, 6
    %v40 = vld [vmem:[%s0] sm:$0xff]
    %v41 = vld [vmem:[%s0 + $0x8] sm:$0xff]
    %v42 = vld [vmem:[%s0 + $0x10] sm:$0xff]
    %v43 = vld [vmem:[%s0 + $0x18] sm:$0xff]
    %v44 = vld [vmem:[%s0 + $0x20] sm:$0xff]
    %v45 = vld [vmem:[%s0 + $0x28] sm:$0xff]
    %v46 = vld [vmem:[%s0 + $0x30] sm:$0xff]
    %v47 = vld [vmem:[%s0 + $0x38] sm:$0xff]
    %v48 = vld [vmem:[%s0 + $0x40] sm:$0xff]
    %v49 = vld [vmem:[%s0 + $0x48] sm:$0xff]
    %v50 = vld [vmem:[%s0 + $0x50] sm:$0xff]
    %v51 = vld [vmem:[%s0 + $0x58] sm:$0xff]
    %v52 = vld [vmem:[%s0 + $0x60] sm:$0xff]
    %v53 = vld [vmem:[%s0 + $0x68] sm:$0xff]
    %v54 = vld [vmem:[%s0 + $0x70] sm:$0xff]
    %v55 = vld [vmem:[%s0 + $0x78] sm:$0xff]
    %v56 = vrot.slane %v40, 7
    %v57 = vrot.slane %v41, 7
    %v58 = vrot.slane %v42, 7
    %v59 = vrot.slane %v43, 7
    %v60 = vrot.slane %v44, 7
    %v61 = vrot.slane %v45, 7
    %v62 = vrot.slane %v46, 7
    %v63 = vrot.slane %v47, 7
    %v64 = vrot.slane %v48, 7
    %v65 = vrot.slane %v49, 7
    %v66 = vrot.slane %v50, 7
    %v67 = vrot.slane %v51, 7
    %v68 = vrot.slane %v52, 7
    %v69 = vrot.slane %v53, 7
    %v70 = vrot.slane %v54, 7
    %v71 = vrot.slane %v55, 7
    %vm72 = vcmp.lt.s32.totalorder %v37, 1
    %v73 = vsel %vm72, %v70, %v71
    %v74 = vsel %vm72, %v69, %v70
    %v75 = vsel %vm72, %v68, %v69
    %v76 = vsel %vm72, %v67, %v68
    %v77 = vsel %vm72, %v66, %v67
    %v78 = vsel %vm72, %v65, %v66
    %v79 = vsel %vm72, %v64, %v65
    %v80 = vsel %vm72, %v63, %v64
    %v81 = vsel %vm72, %v62, %v63
    %v82 = vsel %vm72, %v61, %v62
    %v83 = vsel %vm72, %v60, %v61
    %v84 = vsel %vm72, %v59, %v60
    %v85 = vsel %vm72, %v58, %v59
    %v86 = vsel %vm72, %v57, %v58
    %v87 = vsel %vm72, %v56, %v57
    %v88 = vsel %vm72, %v71, %v56
    %v89 = vrot.slane %v40, 1
    %v90 = vrot.slane %v41, 1
    %v91 = vrot.slane %v42, 1
    %v92 = vrot.slane %v43, 1
    %v93 = vrot.slane %v44, 1
    %v94 = vrot.slane %v45, 1
    %v95 = vrot.slane %v46, 1
    %v96 = vrot.slane %v47, 1
    %v97 = vrot.slane %v48, 1
    %v98 = vrot.slane %v49, 1
    %v99 = vrot.slane %v50, 1
    %v100 = vrot.slane %v51, 1
    %v101 = vrot.slane %v52, 1
    %v102 = vrot.slane %v53, 1
    %v103 = vrot.slane %v54, 1
    %v104 = vrot.slane %v55, 1
    %vm105 = vcmp.lt.s32.totalorder %v37, 7
    %v106 = vsel %vm105, %v103, %v104
    %v107 = vsel %vm105, %v102, %v103
    %v108 = vsel %vm105, %v101, %v102
    %v109 = vsel %vm105, %v100, %v101
    %v110 = vsel %vm105, %v99, %v100
    %v111 = vsel %vm105, %v98, %v99
    %v112 = vsel %vm105, %v97, %v98
    %v113 = vsel %vm105, %v96, %v97
    %v114 = vsel %vm105, %v95, %v96
    %v115 = vsel %vm105, %v94, %v95
    %v116 = vsel %vm105, %v93, %v94
    %v117 = vsel %vm105, %v92, %v93
    %v118 = vsel %vm105, %v91, %v92
    %v119 = vsel %vm105, %v90, %v91
    %v120 = vsel %vm105, %v89, %v90
    %v121 = vsel %vm105, %v104, %v89
    %v122 = vsel %vm38, %v88, 0.0
    %v123 = vsel %vm38, %v87, 0.0
    %v124 = vsel %vm38, %v86, 0.0
    %v125 = vsel %vm38, %v85, 0.0
    %v126 = vsel %vm38, %v84, 0.0
    %v127 = vsel %vm38, %v83, 0.0
    %v128 = vsel %vm38, %v82, 0.0
    %v129 = vsel %vm38, %v81, 0.0
    %v130 = vsel %vm38, %v80, 0.0
    %v131 = vsel %vm38, %v79, 0.0
    %v132 = vsel %vm38, %v78, 0.0
    %v133 = vsel %vm38, %v77, 0.0
    %v134 = vsel %vm38, %v76, 0.0
    %v135 = vsel %vm38, %v75, 0.0
    %v136 = vsel %vm38, %v74, 0.0
    %v137 = vsel %vm38, %v73, 0.0
    %s138 = scalar_lea.vmem [#allocation2], 24
    %139 = vst [vmem:[%s138] sm:$0xff] %v122
    %140 = vst [vmem:[%s138 + $0x18] sm:$0xff] %v123
    %141 = vst [vmem:[%s138 + $0x30] sm:$0xff] %v124
    %142 = vst [vmem:[%s138 + $0x48] sm:$0xff] %v125
    %143 = vst [vmem:[%s138 + $0x60] sm:$0xff] %v126
    %144 = vst [vmem:[%s138 + $0x78] sm:$0xff] %v127
    %145 = vst [vmem:[%s138 + $0x90] sm:$0xff] %v128
    %146 = vst [vmem:[%s138 + $0xa8] sm:$0xff] %v129
    %147 = vst [vmem:[%s138 + $0xf0] sm:$0xff] %v130
    %148 = vst [vmem:[%s138 + $0x108] sm:$0xff] %v131
    %149 = vst [vmem:[%s138 + $0x120] sm:$0xff] %v132
    %150 = vst [vmem:[%s138 + $0x138] sm:$0xff] %v133
    %151 = vst [vmem:[%s138 + $0x150] sm:$0xff] %v134
    %152 = vst [vmem:[%s138 + $0x168] sm:$0xff] %v135
    %153 = vst [vmem:[%s138 + $0x180] sm:$0xff] %v136
    %154 = vst [vmem:[%s138 + $0x198] sm:$0xff] %v137
    %155 = vst [vmem:[%s138 + $0x8] sm:$0xff] %v40
    %156 = vst [vmem:[%s138 + $0x20] sm:$0xff] %v41
    %157 = vst [vmem:[%s138 + $0x38] sm:$0xff] %v42
    %158 = vst [vmem:[%s138 + $0x50] sm:$0xff] %v43
    %159 = vst [vmem:[%s138 + $0x68] sm:$0xff] %v44
    %160 = vst [vmem:[%s138 + $0x80] sm:$0xff] %v45
    %161 = vst [vmem:[%s138 + $0x98] sm:$0xff] %v46
    %162 = vst [vmem:[%s138 + $0xb0] sm:$0xff] %v47
    %163 = vst [vmem:[%s138 + $0xf8] sm:$0xff] %v48
    %164 = vst [vmem:[%s138 + $0x110] sm:$0xff] %v49
    %165 = vst [vmem:[%s138 + $0x128] sm:$0xff] %v50
    %166 = vst [vmem:[%s138 + $0x140] sm:$0xff] %v51
    %167 = vst [vmem:[%s138 + $0x158] sm:$0xff] %v52
    %168 = vst [vmem:[%s138 + $0x170] sm:$0xff] %v53
    %169 = vst [vmem:[%s138 + $0x188] sm:$0xff] %v54
    %170 = vst [vmem:[%s138 + $0x1a0] sm:$0xff] %v55
    %v171 = vsel %vm39, %v120, 0.0
    %v172 = vsel %vm39, %v119, 0.0
    %v173 = vsel %vm39, %v118, 0.0
    %v174 = vsel %vm39, %v117, 0.0
    %v175 = vsel %vm39, %v116, 0.0
    %v176 = vsel %vm39, %v115, 0.0
    %v177 = vsel %vm39, %v114, 0.0
    %v178 = vsel %vm39, %v113, 0.0
    %v179 = vsel %vm39, %v112, 0.0
    %v180 = vsel %vm39, %v111, 0.0
    %v181 = vsel %vm39, %v110, 0.0
    %v182 = vsel %vm39, %v109, 0.0
    %v183 = vsel %vm39, %v108, 0.0
    %v184 = vsel %vm39, %v107, 0.0
    %v185 = vsel %vm39, %v106, 0.0
    %v186 = vsel %vm39, %v121, 0.0
    %187 = vst [vmem:[%s138 + $0x10] sm:$0xff] %v171
    %188 = vst [vmem:[%s138 + $0x28] sm:$0xff] %v172
    %189 = vst [vmem:[%s138 + $0x40] sm:$0xff] %v173
    %190 = vst [vmem:[%s138 + $0x58] sm:$0xff] %v174
    %191 = vst [vmem:[%s138 + $0x70] sm:$0xff] %v175
    %192 = vst [vmem:[%s138 + $0x88] sm:$0xff] %v176
    %193 = vst [vmem:[%s138 + $0xa0] sm:$0xff] %v177
    %194 = vst [vmem:[%s138 + $0xb8] sm:$0xff] %v178
    %195 = vst [vmem:[%s138 + $0x100] sm:$0xff] %v179
    %196 = vst [vmem:[%s138 + $0x118] sm:$0xff] %v180
    %197 = vst [vmem:[%s138 + $0x130] sm:$0xff] %v181
    %198 = vst [vmem:[%s138 + $0x148] sm:$0xff] %v182
    %199 = vst [vmem:[%s138 + $0x160] sm:$0xff] %v183
    %200 = vst [vmem:[%s138 + $0x178] sm:$0xff] %v184
    %201 = vst [vmem:[%s138 + $0x190] sm:$0xff] %v185
    %202 = vst [vmem:[%s138 + $0x1a8] sm:$0xff] %v186
    %v203 = vld [vmem:[#allocation2] sm:$0xff]
    %v204 = vld [vmem:[#allocation2 + $0x8] sm:$0xff]
    %v205 = vld [vmem:[#allocation2 + $0x10] sm:$0xff]
    %v206 = vld [vmem:[#allocation2 + $0x18] sm:$0xff]
    %v207 = vld [vmem:[#allocation2 + $0x20] sm:$0xff]
    %v208 = vld [vmem:[#allocation2 + $0x28] sm:$0xff]
    %v209 = vld [vmem:[#allocation2 + $0x30] sm:$0xff]
    %v210 = vld [vmem:[#allocation2 + $0x38] sm:$0xff]
    %v211 = vld [vmem:[#allocation2 + $0x40] sm:$0xff]
    %v212 = vld [vmem:[#allocation2 + $0x48] sm:$0xff]
    %v213 = vld [vmem:[#allocation2 + $0x50] sm:$0xff]
    %v214 = vld [vmem:[#allocation2 + $0x58] sm:$0xff]
    %v215 = vld [vmem:[#allocation2 + $0x60] sm:$0xff]
    %v216 = vld [vmem:[#allocation2 + $0x68] sm:$0xff]
    %v217 = vld [vmem:[#allocation2 + $0x70] sm:$0xff]
    %v218 = vld [vmem:[#allocation2 + $0x78] sm:$0xff]
    %v219 = vld [vmem:[#allocation2 + $0x80] sm:$0xff]
    %v220 = vld [vmem:[#allocation2 + $0x88] sm:$0xff]
    %v221 = vld [vmem:[#allocation2 + $0x90] sm:$0xff]
    %v222 = vld [vmem:[#allocation2 + $0x98] sm:$0xff]
    %v223 = vld [vmem:[#allocation2 + $0xa0] sm:$0xff]
    %v224 = vld [vmem:[#allocation2 + $0xa8] sm:$0xff]
    %v225 = vld [vmem:[#allocation2 + $0xb0] sm:$0xff]
    %v226 = vld [vmem:[#allocation2 + $0xb8] sm:$0xff]
    %v227 = vld [vmem:[#allocation2 + $0xf0] sm:$0xff]
    %v228 = vld [vmem:[#allocation2 + $0xf8] sm:$0xff]
    %v229 = vld [vmem:[#allocation2 + $0x100] sm:$0xff]
    %v230 = vld [vmem:[#allocation2 + $0x108] sm:$0xff]
    %v231 = vld [vmem:[#allocation2 + $0x110] sm:$0xff]
    %v232 = vld [vmem:[#allocation2 + $0x118] sm:$0xff]
    %v233 = vld [vmem:[#allocation2 + $0x120] sm:$0xff]
    %v234 = vld [vmem:[#allocation2 + $0x128] sm:$0xff]
    %v235 = vld [vmem:[#allocation2 + $0x130] sm:$0xff]
    %v236 = vld [vmem:[#allocation2 + $0x138] sm:$0xff]
    %v237 = vld [vmem:[#allocation2 + $0x140] sm:$0xff]
    %v238 = vld [vmem:[#allocation2 + $0x148] sm:$0xff]
    %v239 = vld [vmem:[#allocation2 + $0x150] sm:$0xff]
    %v240 = vld [vmem:[#allocation2 + $0x158] sm:$0xff]
    %v241 = vld [vmem:[#allocation2 + $0x160] sm:$0xff]
    %v242 = vld [vmem:[#allocation2 + $0x168] sm:$0xff]
    %v243 = vld [vmem:[#allocation2 + $0x170] sm:$0xff]
    %v244 = vld [vmem:[#allocation2 + $0x178] sm:$0xff]
    %v245 = vld [vmem:[#allocation2 + $0x180] sm:$0xff]
    %v246 = vld [vmem:[#allocation2 + $0x188] sm:$0xff]
    %v247 = vld [vmem:[#allocation2 + $0x190] sm:$0xff]
    %v248 = vld [vmem:[#allocation2 + $0x198] sm:$0xff]
    %v249 = vld [vmem:[#allocation2 + $0x1a0] sm:$0xff]
    %v250 = vld [vmem:[#allocation2 + $0x1a8] sm:$0xff]
    %v251 = vpack.c.bf16 %v206, %v203
    %v252 = vpack.c.bf16 %v207, %v204
    %v253 = vpack.c.bf16 %v208, %v205
    %v254 = vpack.c.bf16 %v212, %v209
    %v255 = vpack.c.bf16 %v213, %v210
    %v256 = vpack.c.bf16 %v214, %v211
    %v257 = vpack.c.bf16 %v218, %v215
    %v258 = vpack.c.bf16 %v219, %v216
    %v259 = vpack.c.bf16 %v220, %v217
    %v260 = vpack.c.bf16 %v224, %v221
    %v261 = vpack.c.bf16 %v225, %v222
    %v262 = vpack.c.bf16 %v226, %v223
    %v263 = vpack.c.bf16 %v230, %v227
    %v264 = vpack.c.bf16 %v231, %v228
    %v265 = vpack.c.bf16 %v232, %v229
    %v266 = vpack.c.bf16 %v236, %v233
    %v267 = vpack.c.bf16 %v237, %v234
    %v268 = vpack.c.bf16 %v238, %v235
    %v269 = vpack.c.bf16 %v242, %v239
    %v270 = vpack.c.bf16 %v243, %v240
    %v271 = vpack.c.bf16 %v244, %v241
    %v272 = vpack.c.bf16 %v248, %v245
    %v273 = vpack.c.bf16 %v249, %v246
    %v274 = vpack.c.bf16 %v250, %v247
    %v275 = vld [vmem:[%s1] sm:$0xf]
    %v276 = vld [vmem:[%s1 + $0x4] sm:$0xf]
    %v277 = vld [vmem:[%s1 + $0x8] sm:$0xf]
    %v278 = vld [vmem:[%s1 + $0xc] sm:$0xf]
    %v279 = vld [vmem:[%s1 + $0x10] sm:$0xf]
    %v280 = vld [vmem:[%s1 + $0x14] sm:$0xf]
    %v281 = vld [vmem:[%s1 + $0x18] sm:$0xf]
    %v282 = vld [vmem:[%s1 + $0x1c] sm:$0xf]
    %v283 = vld [vmem:[%s1 + $0x20] sm:$0xf]
    %v284 = vld [vmem:[%s1 + $0x24] sm:$0xf]
    %v285 = vld [vmem:[%s1 + $0x28] sm:$0xf]
    %v286 = vld [vmem:[%s1 + $0x2c] sm:$0xf]
    %v287 = vld [vmem:[%s1 + $0x30] sm:$0xf]
    %v288 = vld [vmem:[%s1 + $0x34] sm:$0xf]
    %v289 = vld [vmem:[%s1 + $0x38] sm:$0xf]
    %v290 = vld [vmem:[%s1 + $0x3c] sm:$0xf]
    %v291 = vld [vmem:[%s1 + $0x40] sm:$0xf]
    %v292 = vld [vmem:[%s1 + $0x44] sm:$0xf]
    %v293 = vld [vmem:[%s1 + $0x48] sm:$0xf]
    %v294 = vld [vmem:[%s1 + $0x4c] sm:$0xf]
    %v295 = vld [vmem:[%s1 + $0x50] sm:$0xf]
    %v296 = vld [vmem:[%s1 + $0x54] sm:$0xf]
    %v297 = vld [vmem:[%s1 + $0x58] sm:$0xf]
    %v298 = vld [vmem:[%s1 + $0x5c] sm:$0xf]
    %v299 = vld [vmem:[%s1 + $0x60] sm:$0xf]
    %v300 = vld [vmem:[%s1 + $0x64] sm:$0xf]
    %v301 = vld [vmem:[%s1 + $0x68] sm:$0xf]
    %v302 = vld [vmem:[%s1 + $0x6c] sm:$0xf]
    %v303 = vld [vmem:[%s1 + $0x70] sm:$0xf]
    %v304 = vld [vmem:[%s1 + $0x74] sm:$0xf]
    %v305 = vld [vmem:[%s1 + $0x78] sm:$0xf]
    %v306 = vld [vmem:[%s1 + $0x7c] sm:$0xf]
    %v307 = vld [vmem:[%s1 + $0x80] sm:$0xf]
    %v308 = vld [vmem:[%s1 + $0x84] sm:$0xf]
    %v309 = vld [vmem:[%s1 + $0x88] sm:$0xf]
    %v310 = vld [vmem:[%s1 + $0x8c] sm:$0xf]
    %v311 = vld [vmem:[%s1 + $0x90] sm:$0xf]
    %v312 = vld [vmem:[%s1 + $0x94] sm:$0xf]
    %v313 = vld [vmem:[%s1 + $0x98] sm:$0xf]
    %v314 = vld [vmem:[%s1 + $0x9c] sm:$0xf]
    %v315 = vld [vmem:[%s1 + $0xa0] sm:$0xf]
    %v316 = vld [vmem:[%s1 + $0xa4] sm:$0xf]
    %v317 = vld [vmem:[%s1 + $0xa8] sm:$0xf]
    %v318 = vld [vmem:[%s1 + $0xac] sm:$0xf]
    %v319 = vld [vmem:[%s1 + $0xb0] sm:$0xf]
    %v320 = vld [vmem:[%s1 + $0xb4] sm:$0xf]
    %v321 = vld [vmem:[%s1 + $0xb8] sm:$0xf]
    %v322 = vld [vmem:[%s1 + $0xbc] sm:$0xf]
    %v323 = vld [vmem:[%s138] sm:$0xff]
    %v324 = vld [vmem:[%s138 + $0x8] sm:$0xff]
    %v325 = vld [vmem:[%s138 + $0x10] sm:$0xff]
    %v326 = vld [vmem:[%s138 + $0x18] sm:$0xff]
    %v327 = vld [vmem:[%s138 + $0x20] sm:$0xff]
    %v328 = vld [vmem:[%s138 + $0x28] sm:$0xff]
    %v329 = vld [vmem:[%s138 + $0x30] sm:$0xff]
    %v330 = vld [vmem:[%s138 + $0x38] sm:$0xff]
    %v331 = vld [vmem:[%s138 + $0x40] sm:$0xff]
    %v332 = vld [vmem:[%s138 + $0x48] sm:$0xff]
    %v333 = vld [vmem:[%s138 + $0x50] sm:$0xff]
    %v334 = vld [vmem:[%s138 + $0x58] sm:$0xff]
    %v335 = vld [vmem:[%s138 + $0x60] sm:$0xff]
    %v336 = vld [vmem:[%s138 + $0x68] sm:$0xff]
    %v337 = vld [vmem:[%s138 + $0x70] sm:$0xff]
    %v338 = vld [vmem:[%s138 + $0x78] sm:$0xff]
    %v339 = vld [vmem:[%s138 + $0x80] sm:$0xff]
    %v340 = vld [vmem:[%s138 + $0x88] sm:$0xff]
    %v341 = vld [vmem:[%s138 + $0x90] sm:$0xff]
    %v342 = vld [vmem:[%s138 + $0x98] sm:$0xff]
    %v343 = vld [vmem:[%s138 + $0xa0] sm:$0xff]
    %v344 = vld [vmem:[%s138 + $0xa8] sm:$0xff]
    %v345 = vld [vmem:[%s138 + $0xb0] sm:$0xff]
    %v346 = vld [vmem:[%s138 + $0xb8] sm:$0xff]
    %v347 = vld [vmem:[%s138 + $0xf0] sm:$0xff]
    %v348 = vld [vmem:[%s138 + $0xf8] sm:$0xff]
    %v349 = vld [vmem:[%s138 + $0x100] sm:$0xff]
    %v350 = vld [vmem:[%s138 + $0x108] sm:$0xff]
    %v351 = vld [vmem:[%s138 + $0x110] sm:$0xff]
    %v352 = vld [vmem:[%s138 + $0x118] sm:$0xff]
    %v353 = vld [vmem:[%s138 + $0x120] sm:$0xff]
    %v354 = vld [vmem:[%s138 + $0x128] sm:$0xff]
    %v355 = vld [vmem:[%s138 + $0x130] sm:$0xff]
    %v356 = vld [vmem:[%s138 + $0x138] sm:$0xff]
    %v357 = vld [vmem:[%s138 + $0x140] sm:$0xff]
    %v358 = vld [vmem:[%s138 + $0x148] sm:$0xff]
    %v359 = vld [vmem:[%s138 + $0x150] sm:$0xff]
    %v360 = vld [vmem:[%s138 + $0x158] sm:$0xff]
    %v361 = vld [vmem:[%s138 + $0x160] sm:$0xff]
    %v362 = vld [vmem:[%s138 + $0x168] sm:$0xff]
    %v363 = vld [vmem:[%s138 + $0x170] sm:$0xff]
    %v364 = vld [vmem:[%s138 + $0x178] sm:$0xff]
    %v365 = vld [vmem:[%s138 + $0x180] sm:$0xff]
    %v366 = vld [vmem:[%s138 + $0x188] sm:$0xff]
    %v367 = vld [vmem:[%s138 + $0x190] sm:$0xff]
    %v368 = vld [vmem:[%s138 + $0x198] sm:$0xff]
    %v369 = vld [vmem:[%s138 + $0x1a0] sm:$0xff]
    %v370 = vld [vmem:[%s138 + $0x1a8] sm:$0xff]
    %v371 = vpack.c.bf16 %v326, %v323
    %v372 = vpack.c.bf16 %v327, %v324
    %v373 = vpack.c.bf16 %v328, %v325
    %v374 = vpack.c.bf16 %v332, %v329
    %v375 = vpack.c.bf16 %v333, %v330
    %v376 = vpack.c.bf16 %v334, %v331
    %v377 = vpack.c.bf16 %v338, %v335
    %v378 = vpack.c.bf16 %v339, %v336
    %v379 = vpack.c.bf16 %v340, %v337
    %v380 = vpack.c.bf16 %v344, %v341
    %v381 = vpack.c.bf16 %v345, %v342
    %v382 = vpack.c.bf16 %v346, %v343
    %v383 = vpack.c.bf16 %v350, %v347
    %v384 = vpack.c.bf16 %v351, %v348
    %v385 = vpack.c.bf16 %v352, %v349
    %v386 = vpack.c.bf16 %v356, %v353
    %v387 = vpack.c.bf16 %v357, %v354
    %v388 = vpack.c.bf16 %v358, %v355
    %v389 = vpack.c.bf16 %v362, %v359
    %v390 = vpack.c.bf16 %v363, %v360
    %v391 = vpack.c.bf16 %v364, %v361
    %v392 = vpack.c.bf16 %v368, %v365
    %v393 = vpack.c.bf16 %v369, %v366
    %v394 = vpack.c.bf16 %v370, %v367
    %s395 = scalar_lea.vmem %s1, 192
    %v396 = vld [vmem:[%s395] sm:$0xf]
    %v397 = vld [vmem:[%s395 + $0x4] sm:$0xf]
    %v398 = vld [vmem:[%s395 + $0x8] sm:$0xf]
    %v399 = vld [vmem:[%s395 + $0xc] sm:$0xf]
    %v400 = vld [vmem:[%s395 + $0x10] sm:$0xf]
    %v401 = vld [vmem:[%s395 + $0x14] sm:$0xf]
    %v402 = vld [vmem:[%s395 + $0x18] sm:$0xf]
    %v403 = vld [vmem:[%s395 + $0x1c] sm:$0xf]
    %v404 = vld [vmem:[%s395 + $0x20] sm:$0xf]
    %v405 = vld [vmem:[%s395 + $0x24] sm:$0xf]
    %v406 = vld [vmem:[%s395 + $0x28] sm:$0xf]
    %v407 = vld [vmem:[%s395 + $0x2c] sm:$0xf]
    %v408 = vld [vmem:[%s395 + $0x30] sm:$0xf]
    %v409 = vld [vmem:[%s395 + $0x34] sm:$0xf]
    %v410 = vld [vmem:[%s395 + $0x38] sm:$0xf]
    %v411 = vld [vmem:[%s395 + $0x3c] sm:$0xf]
    %v412 = vld [vmem:[%s395 + $0x40] sm:$0xf]
    %v413 = vld [vmem:[%s395 + $0x44] sm:$0xf]
    %v414 = vld [vmem:[%s395 + $0x48] sm:$0xf]
    %v415 = vld [vmem:[%s395 + $0x4c] sm:$0xf]
    %v416 = vld [vmem:[%s395 + $0x50] sm:$0xf]
    %v417 = vld [vmem:[%s395 + $0x54] sm:$0xf]
    %v418 = vld [vmem:[%s395 + $0x58] sm:$0xf]
    %v419 = vld [vmem:[%s395 + $0x5c] sm:$0xf]
    %v420 = vld [vmem:[%s395 + $0x60] sm:$0xf]
    %v421 = vld [vmem:[%s395 + $0x64] sm:$0xf]
    %v422 = vld [vmem:[%s395 + $0x68] sm:$0xf]
    %v423 = vld [vmem:[%s395 + $0x6c] sm:$0xf]
    %v424 = vld [vmem:[%s395 + $0x70] sm:$0xf]
    %v425 = vld [vmem:[%s395 + $0x74] sm:$0xf]
    %v426 = vld [vmem:[%s395 + $0x78] sm:$0xf]
    %v427 = vld [vmem:[%s395 + $0x7c] sm:$0xf]
    %v428 = vld [vmem:[%s395 + $0x80] sm:$0xf]
    %v429 = vld [vmem:[%s395 + $0x84] sm:$0xf]
    %v430 = vld [vmem:[%s395 + $0x88] sm:$0xf]
    %v431 = vld [vmem:[%s395 + $0x8c] sm:$0xf]
    %v432 = vld [vmem:[%s395 + $0x90] sm:$0xf]
    %v433 = vld [vmem:[%s395 + $0x94] sm:$0xf]
    %v434 = vld [vmem:[%s395 + $0x98] sm:$0xf]
    %v435 = vld [vmem:[%s395 + $0x9c] sm:$0xf]
    %v436 = vld [vmem:[%s395 + $0xa0] sm:$0xf]
    %v437 = vld [vmem:[%s395 + $0xa4] sm:$0xf]
    %v438 = vld [vmem:[%s395 + $0xa8] sm:$0xf]
    %v439 = vld [vmem:[%s395 + $0xac] sm:$0xf]
    %v440 = vld [vmem:[%s395 + $0xb0] sm:$0xf]
    %v441 = vld [vmem:[%s395 + $0xb4] sm:$0xf]
    %v442 = vld [vmem:[%s395 + $0xb8] sm:$0xf]
    %v443 = vld [vmem:[%s395 + $0xbc] sm:$0xf]
    %v492 = vunpack.c.l.b16 %v396
    %v493 = vunpack.c.l.b16 %v397
    %v494 = vunpack.c.l.b16 %v398
    %v495 = vunpack.c.l.b16 %v399
    %v496 = vunpack.c.l.b16 %v400
    %v497 = vunpack.c.l.b16 %v401
    %v498 = vunpack.c.l.b16 %v402
    %v499 = vunpack.c.l.b16 %v403
    %v500 = vunpack.c.l.b16 %v404
    %v501 = vunpack.c.l.b16 %v405
    %v502 = vunpack.c.l.b16 %v406
    %v503 = vunpack.c.l.b16 %v407
    %v504 = vunpack.c.l.b16 %v408
    %v505 = vunpack.c.l.b16 %v409
    %v506 = vunpack.c.l.b16 %v410
    %v507 = vunpack.c.l.b16 %v411
    %v508 = vunpack.c.l.b16 %v412
    %v509 = vunpack.c.l.b16 %v413
    %v510 = vunpack.c.l.b16 %v414
    %v511 = vunpack.c.l.b16 %v415
    %v512 = vunpack.c.l.b16 %v416
    %v513 = vunpack.c.l.b16 %v417
    %v514 = vunpack.c.l.b16 %v418
    %v515 = vunpack.c.l.b16 %v419
    %v516 = vunpack.c.l.b16 %v420
    %v517 = vunpack.c.l.b16 %v421
    %v518 = vunpack.c.l.b16 %v422
    %v519 = vunpack.c.l.b16 %v423
    %v520 = vunpack.c.l.b16 %v424
    %v521 = vunpack.c.l.b16 %v425
    %v522 = vunpack.c.l.b16 %v426
    %v523 = vunpack.c.l.b16 %v427
    %v524 = vunpack.c.l.b16 %v428
    %v525 = vunpack.c.l.b16 %v429
    %v526 = vunpack.c.l.b16 %v430
    %v527 = vunpack.c.l.b16 %v431
    %v528 = vunpack.c.l.b16 %v432
    %v529 = vunpack.c.l.b16 %v433
    %v530 = vunpack.c.l.b16 %v434
    %v531 = vunpack.c.l.b16 %v435
    %v532 = vunpack.c.l.b16 %v436
    %v533 = vunpack.c.l.b16 %v437
    %v534 = vunpack.c.l.b16 %v438
    %v535 = vunpack.c.l.b16 %v439
    %v536 = vunpack.c.l.b16 %v440
    %v537 = vunpack.c.l.b16 %v441
    %v538 = vunpack.c.l.b16 %v442
    %v539 = vunpack.c.l.b16 %v443
    %v540 = vpack.c.b16 %v493, %v492
    %v541 = vpack.c.b16 %v495, %v494
    %v542 = vpack.c.b16 %v497, %v496
    %v543 = vpack.c.b16 %v499, %v498
    %v544 = vpack.c.b16 %v501, %v500
    %v545 = vpack.c.b16 %v503, %v502
    %v546 = vpack.c.b16 %v505, %v504
    %v547 = vpack.c.b16 %v507, %v506
    %v548 = vpack.c.b16 %v509, %v508
    %v549 = vpack.c.b16 %v511, %v510
    %v550 = vpack.c.b16 %v513, %v512
    %v551 = vpack.c.b16 %v515, %v514
    %v552 = vpack.c.b16 %v517, %v516
    %v553 = vpack.c.b16 %v519, %v518
    %v554 = vpack.c.b16 %v521, %v520
    %v555 = vpack.c.b16 %v523, %v522
    %v556 = vpack.c.b16 %v525, %v524
    %v557 = vpack.c.b16 %v527, %v526
    %v558 = vpack.c.b16 %v529, %v528
    %v559 = vpack.c.b16 %v531, %v530
    %v560 = vpack.c.b16 %v533, %v532
    %v561 = vpack.c.b16 %v535, %v534
    %v562 = vpack.c.b16 %v537, %v536
    %v563 = vpack.c.b16 %v539, %v538
    %588 = vmatprep.subr.bf16.mxu0 0
    %589 = vmatpush1.bf16.msra.mxu0 %v540
    %590 = vmatprep.subr.bf16.mxu0 0
    %591 = vmatpush1.bf16.msra.mxu0 %v541
    %592 = vmatprep.subr.bf16.mxu0 0
    %593 = vmatpush1.bf16.msra.mxu0 %v542
    %594 = vmatprep.subr.bf16.mxu0 0
    %595 = vmatpush1.bf16.msra.mxu0 %v543
    %596 = vmatprep.subr.bf16.mxu0 0
    %597 = vmatpush1.bf16.msra.mxu0 %v544
    %598 = vmatprep.subr.bf16.mxu0 0
    %599 = vmatpush1.bf16.msra.mxu0 %v545
    %600 = vmatprep.subr.bf16.mxu0 0
    %601 = vmatpush1.bf16.msra.mxu0 %v546
    %602 = vmatprep.subr.bf16.mxu0 0
    %603 = vmatpush1.bf16.msra.mxu0 %v547
    %604 = vmatprep.subr.bf16.mxu0 0
    %605 = vmatpush1.bf16.msra.mxu0 %v548
    %606 = vmatprep.subr.bf16.mxu0 0
    %607 = vmatpush1.bf16.msra.mxu0 %v549
    %608 = vmatprep.subr.bf16.mxu0 0
    %609 = vmatpush1.bf16.msra.mxu0 %v550
    %610 = vmatprep.subr.bf16.mxu0 0
    %611 = vmatpush1.bf16.msra.mxu0 %v551
    %612 = vmatprep.subr.bf16.mxu0 0
    %613 = vmatpush1.bf16.msra.mxu0 %v552
    %614 = vmatprep.subr.bf16.mxu0 0
    %615 = vmatpush1.bf16.msra.mxu0 %v553
    %616 = vmatprep.subr.bf16.mxu0 0
    %617 = vmatpush1.bf16.msra.mxu0 %v554
    %618 = vmatprep.subr.bf16.mxu0 0
    %619 = vmatpush1.bf16.msra.mxu0 %v555
    %620 = vmatprep.mubr.bf16.mxu0 %v372
    %621 = vmatmul.mubr.bf16.gmra.mrb[0].mxu0 %v371
    %v622 = vpop.f32.mrb[0].mxu0
    %v623 = vadd.f32 0.0, %v622
    %v624 = vpop.f32.mrb[0].mxu0
    %v625 = vpop.f32.mrb[0].mxu0
    %v626 = vadd.f32 0.0, %v625
    %v627 = vpop.f32.mrb[0].mxu0
    %628 = vmatprep.mubr.bf16.mxu0 %v375
    %629 = vmatmul.mubr.bf16.gmra.mrb[0].mxu0 %v374
    %v630 = vpop.f32.mrb[0].mxu0
    %v631 = vadd.f32 0.0, %v630
    %v632 = vpop.f32.mrb[0].mxu0
    %v633 = vpop.f32.mrb[0].mxu0
    %v634 = vadd.f32 0.0, %v633
    %v635 = vpop.f32.mrb[0].mxu0
    %636 = vmatprep.mubr.bf16.mxu0 %v378
    %637 = vmatmul.mubr.bf16.gmra.mrb[0].mxu0 %v377
    %v638 = vpop.f32.mrb[0].mxu0
    %v639 = vadd.f32 0.0, %v638
    %v640 = vpop.f32.mrb[0].mxu0
    %v641 = vpop.f32.mrb[0].mxu0
    %v642 = vadd.f32 0.0, %v641
    %v643 = vpop.f32.mrb[0].mxu0
    %644 = vmatprep.mubr.bf16.mxu0 %v381
    %645 = vmatmul.mubr.bf16.gmra.mrb[0].mxu0 %v380
    %v646 = vpop.f32.mrb[0].mxu0
    %v647 = vadd.f32 0.0, %v646
    %v648 = vpop.f32.mrb[0].mxu0
    %v649 = vpop.f32.mrb[0].mxu0
    %v650 = vadd.f32 0.0, %v649
    %v651 = vpop.f32.mrb[0].mxu0
    %652 = vmatprep.mubr.bf16.mxu0 %v384
    %653 = vmatmul.mubr.bf16.gmra.mrb[0].mxu0 %v383
    %v654 = vpop.f32.mrb[0].mxu0
    %v655 = vadd.f32 0.0, %v654
    %v656 = vpop.f32.mrb[0].mxu0
    %v657 = vpop.f32.mrb[0].mxu0
    %v658 = vadd.f32 0.0, %v657
    %v659 = vpop.f32.mrb[0].mxu0
    %660 = vmatprep.mubr.bf16.mxu0 %v387
    %661 = vmatmul.mubr.bf16.gmra.mrb[0].mxu0 %v386
    %v662 = vpop.f32.mrb[0].mxu0
    %v663 = vadd.f32 0.0, %v662
    %v664 = vpop.f32.mrb[0].mxu0
    %v665 = vpop.f32.mrb[0].mxu0
    %v666 = vadd.f32 0.0, %v665
    %v667 = vpop.f32.mrb[0].mxu0
    %668 = vmatprep.mubr.bf16.mxu0 %v390
    %669 = vmatmul.mubr.bf16.gmra.mrb[0].mxu0 %v389
    %v670 = vpop.f32.mrb[0].mxu0
    %v671 = vadd.f32 0.0, %v670
    %v672 = vpop.f32.mrb[0].mxu0
    %v673 = vpop.f32.mrb[0].mxu0
    %v674 = vadd.f32 0.0, %v673
    %v675 = vpop.f32.mrb[0].mxu0
    %676 = vmatprep.mubr.bf16.mxu0 %v393
    %677 = vmatmul.mubr.bf16.gmra.mrb[0].mxu0 %v392
    %v678 = vpop.f32.mrb[0].mxu0
    %v679 = vadd.f32 0.0, %v678
    %v680 = vpop.f32.mrb[0].mxu0
    %v681 = vpop.f32.mrb[0].mxu0
    %v682 = vadd.f32 0.0, %v681
    %v683 = vpop.f32.mrb[0].mxu0
    %684 = vdwg.mxu0
    %685 = vmatprep.subr.bf16.mxu0 0
    %686 = vmatpush1.bf16.msra.mxu0 %v556
    %687 = vmatprep.subr.bf16.mxu0 0
    %688 = vmatpush1.bf16.msra.mxu0 %v557
    %689 = vmatprep.subr.bf16.mxu0 0
    %690 = vmatpush1.bf16.msra.mxu0 %v558
    %691 = vmatprep.subr.bf16.mxu0 0
    %692 = vmatpush1.bf16.msra.mxu0 %v559
    %693 = vmatprep.subr.bf16.mxu0 0
    %694 = vmatpush1.bf16.msra.mxu0 %v560
    %695 = vmatprep.subr.bf16.mxu0 0
    %696 = vmatpush1.bf16.msra.mxu0 %v561
    %697 = vmatprep.subr.bf16.mxu0 0
    %698 = vmatpush1.bf16.msra.mxu0 %v562
    %699 = vmatprep.subr.bf16.mxu0 0
    %700 = vmatpush1.bf16.msra.mxu0 %v563
    %701 = vmatprep.subr.bf16.mxu0 0
    %702 = vmatpush1.bf16.msra.mxu0 0
    %703 = vmatprep.subr.bf16.mxu0 0
    %704 = vmatpush1.bf16.msra.mxu0 0
    %705 = vmatprep.subr.bf16.mxu0 0
    %706 = vmatpush1.bf16.msra.mxu0 0
    %707 = vmatprep.subr.bf16.mxu0 0
    %708 = vmatpush1.bf16.msra.mxu0 0
    %709 = vmatprep.subr.bf16.mxu0 0
    %710 = vmatpush1.bf16.msra.mxu0 0
    %711 = vmatprep.subr.bf16.mxu0 0
    %712 = vmatpush1.bf16.msra.mxu0 0
    %713 = vmatprep.subr.bf16.mxu0 0
    %714 = vmatpush1.bf16.msra.mxu0 0
    %715 = vmatprep.subr.bf16.mxu0 0
    %716 = vmatpush1.bf16.msra.mxu0 0
    %717 = vmatprep.mubr.bf16.mxu0 0
    %718 = vmatmul.mubr.bf16.gmra.mrb[0].mxu0 %v373
    %v719 = vpop.f32.mrb[0].mxu0
    %v720 = vadd.f32 %v623, %v719
    %v721 = vpop.f32.mrb[0].mxu0
    %v722 = vpop.f32.mrb[0].mxu0
    %v723 = vadd.f32 %v626, %v722
    %v724 = vpop.f32.mrb[0].mxu0
    %725 = vmatprep.mubr.bf16.mxu0 0
    %726 = vmatmul.mubr.bf16.gmra.mrb[0].mxu0 %v376
    %v727 = vpop.f32.mrb[0].mxu0
    %v728 = vadd.f32 %v631, %v727
    %v729 = vpop.f32.mrb[0].mxu0
    %v730 = vpop.f32.mrb[0].mxu0
    %v731 = vadd.f32 %v634, %v730
    %v732 = vpop.f32.mrb[0].mxu0
    %733 = vmatprep.mubr.bf16.mxu0 0
    %734 = vmatmul.mubr.bf16.gmra.mrb[0].mxu0 %v379
    %v735 = vpop.f32.mrb[0].mxu0
    %v736 = vadd.f32 %v639, %v735
    %v737 = vpop.f32.mrb[0].mxu0
    %v738 = vpop.f32.mrb[0].mxu0
    %v739 = vadd.f32 %v642, %v738
    %v740 = vpop.f32.mrb[0].mxu0
    %741 = vmatprep.mubr.bf16.mxu0 0
    %742 = vmatmul.mubr.bf16.gmra.mrb[0].mxu0 %v382
    %v743 = vpop.f32.mrb[0].mxu0
    %v744 = vadd.f32 %v647, %v743
    %v745 = vpop.f32.mrb[0].mxu0
    %v746 = vpop.f32.mrb[0].mxu0
    %v747 = vadd.f32 %v650, %v746
    %v748 = vpop.f32.mrb[0].mxu0
    %749 = vmatprep.mubr.bf16.mxu0 0
    %750 = vmatmul.mubr.bf16.gmra.mrb[0].mxu0 %v385
    %v751 = vpop.f32.mrb[0].mxu0
    %v752 = vadd.f32 %v655, %v751
    %v753 = vpop.f32.mrb[0].mxu0
    %v754 = vpop.f32.mrb[0].mxu0
    %v755 = vadd.f32 %v658, %v754
    %v756 = vpop.f32.mrb[0].mxu0
    %757 = vmatprep.mubr.bf16.mxu0 0
    %758 = vmatmul.mubr.bf16.gmra.mrb[0].mxu0 %v388
    %v759 = vpop.f32.mrb[0].mxu0
    %v760 = vadd.f32 %v663, %v759
    %v761 = vpop.f32.mrb[0].mxu0
    %v762 = vpop.f32.mrb[0].mxu0
    %v763 = vadd.f32 %v666, %v762
    %v764 = vpop.f32.mrb[0].mxu0
    %765 = vmatprep.mubr.bf16.mxu0 0
    %766 = vmatmul.mubr.bf16.gmra.mrb[0].mxu0 %v391
    %v767 = vpop.f32.mrb[0].mxu0
    %v768 = vadd.f32 %v671, %v767
    %v769 = vpop.f32.mrb[0].mxu0
    %v770 = vpop.f32.mrb[0].mxu0
    %v771 = vadd.f32 %v674, %v770
    %v772 = vpop.f32.mrb[0].mxu0
    %773 = vmatprep.mubr.bf16.mxu0 0
    %774 = vmatmul.mubr.bf16.gmra.mrb[0].mxu0 %v394
    %v775 = vpop.f32.mrb[0].mxu0
    %v776 = vadd.f32 %v679, %v775
    %v777 = vpop.f32.mrb[0].mxu0
    %v778 = vpop.f32.mrb[0].mxu0
    %v779 = vadd.f32 %v682, %v778
    %v780 = vpop.f32.mrb[0].mxu0
    %781 = vdwg.mxu0
    %v830 = vunpack.c.l.b16 %v275
    %v831 = vunpack.c.l.b16 %v276
    %v832 = vunpack.c.l.b16 %v277
    %v833 = vunpack.c.l.b16 %v278
    %v834 = vunpack.c.l.b16 %v279
    %v835 = vunpack.c.l.b16 %v280
    %v836 = vunpack.c.l.b16 %v281
    %v837 = vunpack.c.l.b16 %v282
    %v838 = vunpack.c.l.b16 %v283
    %v839 = vunpack.c.l.b16 %v284
    %v840 = vunpack.c.l.b16 %v285
    %v841 = vunpack.c.l.b16 %v286
    %v842 = vunpack.c.l.b16 %v287
    %v843 = vunpack.c.l.b16 %v288
    %v844 = vunpack.c.l.b16 %v289
    %v845 = vunpack.c.l.b16 %v290
    %v846 = vunpack.c.l.b16 %v291
    %v847 = vunpack.c.l.b16 %v292
    %v848 = vunpack.c.l.b16 %v293
    %v849 = vunpack.c.l.b16 %v294
    %v850 = vunpack.c.l.b16 %v295
    %v851 = vunpack.c.l.b16 %v296
    %v852 = vunpack.c.l.b16 %v297
    %v853 = vunpack.c.l.b16 %v298
    %v854 = vunpack.c.l.b16 %v299
    %v855 = vunpack.c.l.b16 %v300
    %v856 = vunpack.c.l.b16 %v301
    %v857 = vunpack.c.l.b16 %v302
    %v858 = vunpack.c.l.b16 %v303
    %v859 = vunpack.c.l.b16 %v304
    %v860 = vunpack.c.l.b16 %v305
    %v861 = vunpack.c.l.b16 %v306
    %v862 = vunpack.c.l.b16 %v307
    %v863 = vunpack.c.l.b16 %v308
    %v864 = vunpack.c.l.b16 %v309
    %v865 = vunpack.c.l.b16 %v310
    %v866 = vunpack.c.l.b16 %v311
    %v867 = vunpack.c.l.b16 %v312
    %v868 = vunpack.c.l.b16 %v313
    %v869 = vunpack.c.l.b16 %v314
    %v870 = vunpack.c.l.b16 %v315
    %v871 = vunpack.c.l.b16 %v316
    %v872 = vunpack.c.l.b16 %v317
    %v873 = vunpack.c.l.b16 %v318
    %v874 = vunpack.c.l.b16 %v319
    %v875 = vunpack.c.l.b16 %v320
    %v876 = vunpack.c.l.b16 %v321
    %v877 = vunpack.c.l.b16 %v322
    %v878 = vpack.c.b16 %v831, %v830
    %v879 = vpack.c.b16 %v833, %v832
    %v880 = vpack.c.b16 %v835, %v834
    %v881 = vpack.c.b16 %v837, %v836
    %v882 = vpack.c.b16 %v839, %v838
    %v883 = vpack.c.b16 %v841, %v840
    %v884 = vpack.c.b16 %v843, %v842
    %v885 = vpack.c.b16 %v845, %v844
    %v886 = vpack.c.b16 %v847, %v846
    %v887 = vpack.c.b16 %v849, %v848
    %v888 = vpack.c.b16 %v851, %v850
    %v889 = vpack.c.b16 %v853, %v852
    %v890 = vpack.c.b16 %v855, %v854
    %v891 = vpack.c.b16 %v857, %v856
    %v892 = vpack.c.b16 %v859, %v858
    %v893 = vpack.c.b16 %v861, %v860
    %v894 = vpack.c.b16 %v863, %v862
    %v895 = vpack.c.b16 %v865, %v864
    %v896 = vpack.c.b16 %v867, %v866
    %v897 = vpack.c.b16 %v869, %v868
    %v898 = vpack.c.b16 %v871, %v870
    %v899 = vpack.c.b16 %v873, %v872
    %v900 = vpack.c.b16 %v875, %v874
    %v901 = vpack.c.b16 %v877, %v876
    %926 = vmatprep.subr.bf16.mxu0 0
    %927 = vmatpush1.bf16.msra.mxu0 %v878
    %928 = vmatprep.subr.bf16.mxu0 0
    %929 = vmatpush1.bf16.msra.mxu0 %v879
    %930 = vmatprep.subr.bf16.mxu0 0
    %931 = vmatpush1.bf16.msra.mxu0 %v880
    %932 = vmatprep.subr.bf16.mxu0 0
    %933 = vmatpush1.bf16.msra.mxu0 %v881
    %934 = vmatprep.subr.bf16.mxu0 0
    %935 = vmatpush1.bf16.msra.mxu0 %v882
    %936 = vmatprep.subr.bf16.mxu0 0
    %937 = vmatpush1.bf16.msra.mxu0 %v883
    %938 = vmatprep.subr.bf16.mxu0 0
    %939 = vmatpush1.bf16.msra.mxu0 %v884
    %940 = vmatprep.subr.bf16.mxu0 0
    %941 = vmatpush1.bf16.msra.mxu0 %v885
    %942 = vmatprep.subr.bf16.mxu0 0
    %943 = vmatpush1.bf16.msra.mxu0 %v886
    %944 = vmatprep.subr.bf16.mxu0 0
    %945 = vmatpush1.bf16.msra.mxu0 %v887
    %946 = vmatprep.subr.bf16.mxu0 0
    %947 = vmatpush1.bf16.msra.mxu0 %v888
    %948 = vmatprep.subr.bf16.mxu0 0
    %949 = vmatpush1.bf16.msra.mxu0 %v889
    %950 = vmatprep.subr.bf16.mxu0 0
    %951 = vmatpush1.bf16.msra.mxu0 %v890
    %952 = vmatprep.subr.bf16.mxu0 0
    %953 = vmatpush1.bf16.msra.mxu0 %v891
    %954 = vmatprep.subr.bf16.mxu0 0
    %955 = vmatpush1.bf16.msra.mxu0 %v892
    %956 = vmatprep.subr.bf16.mxu0 0
    %957 = vmatpush1.bf16.msra.mxu0 %v893
    %958 = vmatprep.mubr.bf16.mxu0 %v252
    %959 = vmatmul.mubr.bf16.gmra.mrb[0].mxu0 %v251
    %v960 = vpop.f32.mrb[0].mxu0
    %v961 = vadd.f32 %v720, %v960
    %v962 = vpop.f32.mrb[0].mxu0
    %v963 = vpop.f32.mrb[0].mxu0
    %v964 = vadd.f32 %v723, %v963
    %v965 = vpop.f32.mrb[0].mxu0
    %966 = vmatprep.mubr.bf16.mxu0 %v255
    %967 = vmatmul.mubr.bf16.gmra.mrb[0].mxu0 %v254
    %v968 = vpop.f32.mrb[0].mxu0
    %v969 = vadd.f32 %v728, %v968
    %v970 = vpop.f32.mrb[0].mxu0
    %v971 = vpop.f32.mrb[0].mxu0
    %v972 = vadd.f32 %v731, %v971
    %v973 = vpop.f32.mrb[0].mxu0
    %974 = vmatprep.mubr.bf16.mxu0 %v258
    %975 = vmatmul.mubr.bf16.gmra.mrb[0].mxu0 %v257
    %v976 = vpop.f32.mrb[0].mxu0
    %v977 = vadd.f32 %v736, %v976
    %v978 = vpop.f32.mrb[0].mxu0
    %v979 = vpop.f32.mrb[0].mxu0
    %v980 = vadd.f32 %v739, %v979
    %v981 = vpop.f32.mrb[0].mxu0
    %982 = vmatprep.mubr.bf16.mxu0 %v261
    %983 = vmatmul.mubr.bf16.gmra.mrb[0].mxu0 %v260
    %v984 = vpop.f32.mrb[0].mxu0
    %v985 = vadd.f32 %v744, %v984
    %v986 = vpop.f32.mrb[0].mxu0
    %v987 = vpop.f32.mrb[0].mxu0
    %v988 = vadd.f32 %v747, %v987
    %v989 = vpop.f32.mrb[0].mxu0
    %990 = vmatprep.mubr.bf16.mxu0 %v264
    %991 = vmatmul.mubr.bf16.gmra.mrb[0].mxu0 %v263
    %v992 = vpop.f32.mrb[0].mxu0
    %v993 = vadd.f32 %v752, %v992
    %v994 = vpop.f32.mrb[0].mxu0
    %v995 = vpop.f32.mrb[0].mxu0
    %v996 = vadd.f32 %v755, %v995
    %v997 = vpop.f32.mrb[0].mxu0
    %998 = vmatprep.mubr.bf16.mxu0 %v267
    %999 = vmatmul.mubr.bf16.gmra.mrb[0].mxu0 %v266
    %v1000 = vpop.f32.mrb[0].mxu0
    %v1001 = vadd.f32 %v760, %v1000
    %v1002 = vpop.f32.mrb[0].mxu0
    %v1003 = vpop.f32.mrb[0].mxu0
    %v1004 = vadd.f32 %v763, %v1003
    %v1005 = vpop.f32.mrb[0].mxu0
    %1006 = vmatprep.mubr.bf16.mxu0 %v270
    %1007 = vmatmul.mubr.bf16.gmra.mrb[0].mxu0 %v269
    %v1008 = vpop.f32.mrb[0].mxu0
    %v1009 = vadd.f32 %v768, %v1008
    %v1010 = vpop.f32.mrb[0].mxu0
    %v1011 = vpop.f32.mrb[0].mxu0
    %v1012 = vadd.f32 %v771, %v1011
    %v1013 = vpop.f32.mrb[0].mxu0
    %1014 = vmatprep.mubr.bf16.mxu0 %v273
    %1015 = vmatmul.mubr.bf16.gmra.mrb[0].mxu0 %v272
    %v1016 = vpop.f32.mrb[0].mxu0
    %v1017 = vadd.f32 %v776, %v1016
    %v1018 = vpop.f32.mrb[0].mxu0
    %v1019 = vpop.f32.mrb[0].mxu0
    %v1020 = vadd.f32 %v779, %v1019
    %v1021 = vpop.f32.mrb[0].mxu0
    %1022 = vdwg.mxu0
    %1023 = vmatprep.subr.bf16.mxu0 0
    %1024 = vmatpush1.bf16.msra.mxu0 %v894
    %1025 = vmatprep.subr.bf16.mxu0 0
    %1026 = vmatpush1.bf16.msra.mxu0 %v895
    %1027 = vmatprep.subr.bf16.mxu0 0
    %1028 = vmatpush1.bf16.msra.mxu0 %v896
    %1029 = vmatprep.subr.bf16.mxu0 0
    %1030 = vmatpush1.bf16.msra.mxu0 %v897
    %1031 = vmatprep.subr.bf16.mxu0 0
    %1032 = vmatpush1.bf16.msra.mxu0 %v898
    %1033 = vmatprep.subr.bf16.mxu0 0
    %1034 = vmatpush1.bf16.msra.mxu0 %v899
    %1035 = vmatprep.subr.bf16.mxu0 0
    %1036 = vmatpush1.bf16.msra.mxu0 %v900
    %1037 = vmatprep.subr.bf16.mxu0 0
    %1038 = vmatpush1.bf16.msra.mxu0 %v901
    %1039 = vmatprep.subr.bf16.mxu0 0
    %1040 = vmatpush1.bf16.msra.mxu0 0
    %1041 = vmatprep.subr.bf16.mxu0 0
    %1042 = vmatpush1.bf16.msra.mxu0 0
    %1043 = vmatprep.subr.bf16.mxu0 0
    %1044 = vmatpush1.bf16.msra.mxu0 0
    %1045 = vmatprep.subr.bf16.mxu0 0
    %1046 = vmatpush1.bf16.msra.mxu0 0
    %1047 = vmatprep.subr.bf16.mxu0 0
    %1048 = vmatpush1.bf16.msra.mxu0 0
    %1049 = vmatprep.subr.bf16.mxu0 0
    %1050 = vmatpush1.bf16.msra.mxu0 0
    %1051 = vmatprep.subr.bf16.mxu0 0
    %1052 = vmatpush1.bf16.msra.mxu0 0
    %1053 = vmatprep.subr.bf16.mxu0 0
    %1054 = vmatpush1.bf16.msra.mxu0 0
    %1055 = vmatprep.mubr.bf16.mxu0 0
    %1056 = vmatmul.mubr.bf16.gmra.mrb[0].mxu0 %v253
    %v1057 = vpop.f32.mrb[0].mxu0
    %v1058 = vadd.f32 %v961, %v1057
    %v1059 = vpop.f32.mrb[0].mxu0
    %v1060 = vpop.f32.mrb[0].mxu0
    %v1061 = vadd.f32 %v964, %v1060
    %v1062 = vpop.f32.mrb[0].mxu0
    %1063 = vmatprep.mubr.bf16.mxu0 0
    %1064 = vmatmul.mubr.bf16.gmra.mrb[0].mxu0 %v256
    %v1065 = vpop.f32.mrb[0].mxu0
    %v1066 = vadd.f32 %v969, %v1065
    %v1067 = vpop.f32.mrb[0].mxu0
    %v1068 = vpop.f32.mrb[0].mxu0
    %v1069 = vadd.f32 %v972, %v1068
    %v1070 = vpop.f32.mrb[0].mxu0
    %1071 = vmatprep.mubr.bf16.mxu0 0
    %1072 = vmatmul.mubr.bf16.gmra.mrb[0].mxu0 %v259
    %v1073 = vpop.f32.mrb[0].mxu0
    %v1074 = vadd.f32 %v977, %v1073
    %v1075 = vpop.f32.mrb[0].mxu0
    %v1076 = vpop.f32.mrb[0].mxu0
    %v1077 = vadd.f32 %v980, %v1076
    %v1078 = vpop.f32.mrb[0].mxu0
    %1079 = vmatprep.mubr.bf16.mxu0 0
    %1080 = vmatmul.mubr.bf16.gmra.mrb[0].mxu0 %v262
    %v1081 = vpop.f32.mrb[0].mxu0
    %v1082 = vadd.f32 %v985, %v1081
    %v1083 = vpop.f32.mrb[0].mxu0
    %v1084 = vpop.f32.mrb[0].mxu0
    %v1085 = vadd.f32 %v988, %v1084
    %v1086 = vpop.f32.mrb[0].mxu0
    %1087 = vmatprep.mubr.bf16.mxu0 0
    %1088 = vmatmul.mubr.bf16.gmra.mrb[0].mxu0 %v265
    %v1089 = vpop.f32.mrb[0].mxu0
    %v1090 = vadd.f32 %v993, %v1089
    %v1091 = vpop.f32.mrb[0].mxu0
    %v1092 = vpop.f32.mrb[0].mxu0
    %v1093 = vadd.f32 %v996, %v1092
    %v1094 = vpop.f32.mrb[0].mxu0
    %1095 = vmatprep.mubr.bf16.mxu0 0
    %1096 = vmatmul.mubr.bf16.gmra.mrb[0].mxu0 %v268
    %v1097 = vpop.f32.mrb[0].mxu0
    %v1098 = vadd.f32 %v1001, %v1097
    %v1099 = vpop.f32.mrb[0].mxu0
    %v1100 = vpop.f32.mrb[0].mxu0
    %v1101 = vadd.f32 %v1004, %v1100
    %v1102 = vpop.f32.mrb[0].mxu0
    %1103 = vmatprep.mubr.bf16.mxu0 0
    %1104 = vmatmul.mubr.bf16.gmra.mrb[0].mxu0 %v271
    %v1105 = vpop.f32.mrb[0].mxu0
    %v1106 = vadd.f32 %v1009, %v1105
    %v1107 = vpop.f32.mrb[0].mxu0
    %v1108 = vpop.f32.mrb[0].mxu0
    %v1109 = vadd.f32 %v1012, %v1108
    %v1110 = vpop.f32.mrb[0].mxu0
    %1111 = vmatprep.mubr.bf16.mxu0 0
    %1112 = vmatmul.mubr.bf16.gmra.mrb[0].mxu0 %v274
    %v1113 = vpop.f32.mrb[0].mxu0
    %v1114 = vadd.f32 %v1017, %v1113
    %v1115 = vpop.f32.mrb[0].mxu0
    %v1116 = vpop.f32.mrb[0].mxu0
    %v1117 = vadd.f32 %v1020, %v1116
    %v1118 = vpop.f32.mrb[0].mxu0
    %1119 = vdwg.mxu0
    %s1120 = scalar_lea.vmem [#allocation2], 48
    %v1121 = vld [vmem:[%s1120] sm:$0xff]
    %v1122 = vld [vmem:[%s1120 + $0x8] sm:$0xff]
    %v1123 = vld [vmem:[%s1120 + $0x10] sm:$0xff]
    %v1124 = vld [vmem:[%s1120 + $0x18] sm:$0xff]
    %v1125 = vld [vmem:[%s1120 + $0x20] sm:$0xff]
    %v1126 = vld [vmem:[%s1120 + $0x28] sm:$0xff]
    %v1127 = vld [vmem:[%s1120 + $0x30] sm:$0xff]
    %v1128 = vld [vmem:[%s1120 + $0x38] sm:$0xff]
    %v1129 = vld [vmem:[%s1120 + $0x40] sm:$0xff]
    %v1130 = vld [vmem:[%s1120 + $0x48] sm:$0xff]
    %v1131 = vld [vmem:[%s1120 + $0x50] sm:$0xff]
    %v1132 = vld [vmem:[%s1120 + $0x58] sm:$0xff]
    %v1133 = vld [vmem:[%s1120 + $0x60] sm:$0xff]
    %v1134 = vld [vmem:[%s1120 + $0x68] sm:$0xff]
    %v1135 = vld [vmem:[%s1120 + $0x70] sm:$0xff]
    %v1136 = vld [vmem:[%s1120 + $0x78] sm:$0xff]
    %v1137 = vld [vmem:[%s1120 + $0x80] sm:$0xff]
    %v1138 = vld [vmem:[%s1120 + $0x88] sm:$0xff]
    %v1139 = vld [vmem:[%s1120 + $0x90] sm:$0xff]
    %v1140 = vld [vmem:[%s1120 + $0x98] sm:$0xff]
    %v1141 = vld [vmem:[%s1120 + $0xa0] sm:$0xff]
    %v1142 = vld [vmem:[%s1120 + $0xa8] sm:$0xff]
    %v1143 = vld [vmem:[%s1120 + $0xb0] sm:$0xff]
    %v1144 = vld [vmem:[%s1120 + $0xb8] sm:$0xff]
    %v1145 = vld [vmem:[%s1120 + $0xf0] sm:$0xff]
    %v1146 = vld [vmem:[%s1120 + $0xf8] sm:$0xff]
    %v1147 = vld [vmem:[%s1120 + $0x100] sm:$0xff]
    %v1148 = vld [vmem:[%s1120 + $0x108] sm:$0xff]
    %v1149 = vld [vmem:[%s1120 + $0x110] sm:$0xff]
    %v1150 = vld [vmem:[%s1120 + $0x118] sm:$0xff]
    %v1151 = vld [vmem:[%s1120 + $0x120] sm:$0xff]
    %v1152 = vld [vmem:[%s1120 + $0x128] sm:$0xff]
    %v1153 = vld [vmem:[%s1120 + $0x130] sm:$0xff]
    %v1154 = vld [vmem:[%s1120 + $0x138] sm:$0xff]
    %v1155 = vld [vmem:[%s1120 + $0x140] sm:$0xff]
    %v1156 = vld [vmem:[%s1120 + $0x148] sm:$0xff]
    %v1157 = vld [vmem:[%s1120 + $0x150] sm:$0xff]
    %v1158 = vld [vmem:[%s1120 + $0x158] sm:$0xff]
    %v1159 = vld [vmem:[%s1120 + $0x160] sm:$0xff]
    %v1160 = vld [vmem:[%s1120 + $0x168] sm:$0xff]
    %v1161 = vld [vmem:[%s1120 + $0x170] sm:$0xff]
    %v1162 = vld [vmem:[%s1120 + $0x178] sm:$0xff]
    %v1163 = vld [vmem:[%s1120 + $0x180] sm:$0xff]
    %v1164 = vld [vmem:[%s1120 + $0x188] sm:$0xff]
    %v1165 = vld [vmem:[%s1120 + $0x190] sm:$0xff]
    %v1166 = vld [vmem:[%s1120 + $0x198] sm:$0xff]
    %v1167 = vld [vmem:[%s1120 + $0x1a0] sm:$0xff]
    %v1168 = vld [vmem:[%s1120 + $0x1a8] sm:$0xff]
    %v1169 = vpack.c.bf16 %v1124, %v1121
    %v1170 = vpack.c.bf16 %v1125, %v1122
    %v1171 = vpack.c.bf16 %v1126, %v1123
    %v1172 = vpack.c.bf16 %v1130, %v1127
    %v1173 = vpack.c.bf16 %v1131, %v1128
    %v1174 = vpack.c.bf16 %v1132, %v1129
    %v1175 = vpack.c.bf16 %v1136, %v1133
    %v1176 = vpack.c.bf16 %v1137, %v1134
    %v1177 = vpack.c.bf16 %v1138, %v1135
    %v1178 = vpack.c.bf16 %v1142, %v1139
    %v1179 = vpack.c.bf16 %v1143, %v1140
    %v1180 = vpack.c.bf16 %v1144, %v1141
    %v1181 = vpack.c.bf16 %v1148, %v1145
    %v1182 = vpack.c.bf16 %v1149, %v1146
    %v1183 = vpack.c.bf16 %v1150, %v1147
    %v1184 = vpack.c.bf16 %v1154, %v1151
    %v1185 = vpack.c.bf16 %v1155, %v1152
    %v1186 = vpack.c.bf16 %v1156, %v1153
    %v1187 = vpack.c.bf16 %v1160, %v1157
    %v1188 = vpack.c.bf16 %v1161, %v1158
    %v1189 = vpack.c.bf16 %v1162, %v1159
    %v1190 = vpack.c.bf16 %v1166, %v1163
    %v1191 = vpack.c.bf16 %v1167, %v1164
    %v1192 = vpack.c.bf16 %v1168, %v1165
    %s1193 = scalar_lea.vmem %s1, 384
    %v1194 = vld [vmem:[%s1193] sm:$0xf]
    %v1195 = vld [vmem:[%s1193 + $0x4] sm:$0xf]
    %v1196 = vld [vmem:[%s1193 + $0x8] sm:$0xf]
    %v1197 = vld [vmem:[%s1193 + $0xc] sm:$0xf]
    %v1198 = vld [vmem:[%s1193 + $0x10] sm:$0xf]
    %v1199 = vld [vmem:[%s1193 + $0x14] sm:$0xf]
    %v1200 = vld [vmem:[%s1193 + $0x18] sm:$0xf]
    %v1201 = vld [vmem:[%s1193 + $0x1c] sm:$0xf]
    %v1202 = vld [vmem:[%s1193 + $0x20] sm:$0xf]
    %v1203 = vld [vmem:[%s1193 + $0x24] sm:$0xf]
    %v1204 = vld [vmem:[%s1193 + $0x28] sm:$0xf]
    %v1205 = vld [vmem:[%s1193 + $0x2c] sm:$0xf]
    %v1206 = vld [vmem:[%s1193 + $0x30] sm:$0xf]
    %v1207 = vld [vmem:[%s1193 + $0x34] sm:$0xf]
    %v1208 = vld [vmem:[%s1193 + $0x38] sm:$0xf]
    %v1209 = vld [vmem:[%s1193 + $0x3c] sm:$0xf]
    %v1210 = vld [vmem:[%s1193 + $0x40] sm:$0xf]
    %v1211 = vld [vmem:[%s1193 + $0x44] sm:$0xf]
    %v1212 = vld [vmem:[%s1193 + $0x48] sm:$0xf]
    %v1213 = vld [vmem:[%s1193 + $0x4c] sm:$0xf]
    %v1214 = vld [vmem:[%s1193 + $0x50] sm:$0xf]
    %v1215 = vld [vmem:[%s1193 + $0x54] sm:$0xf]
    %v1216 = vld [vmem:[%s1193 + $0x58] sm:$0xf]
    %v1217 = vld [vmem:[%s1193 + $0x5c] sm:$0xf]
    %v1218 = vld [vmem:[%s1193 + $0x60] sm:$0xf]
    %v1219 = vld [vmem:[%s1193 + $0x64] sm:$0xf]
    %v1220 = vld [vmem:[%s1193 + $0x68] sm:$0xf]
    %v1221 = vld [vmem:[%s1193 + $0x6c] sm:$0xf]
    %v1222 = vld [vmem:[%s1193 + $0x70] sm:$0xf]
    %v1223 = vld [vmem:[%s1193 + $0x74] sm:$0xf]
    %v1224 = vld [vmem:[%s1193 + $0x78] sm:$0xf]
    %v1225 = vld [vmem:[%s1193 + $0x7c] sm:$0xf]
    %v1226 = vld [vmem:[%s1193 + $0x80] sm:$0xf]
    %v1227 = vld [vmem:[%s1193 + $0x84] sm:$0xf]
    %v1228 = vld [vmem:[%s1193 + $0x88] sm:$0xf]
    %v1229 = vld [vmem:[%s1193 + $0x8c] sm:$0xf]
    %v1230 = vld [vmem:[%s1193 + $0x90] sm:$0xf]
    %v1231 = vld [vmem:[%s1193 + $0x94] sm:$0xf]
    %v1232 = vld [vmem:[%s1193 + $0x98] sm:$0xf]
    %v1233 = vld [vmem:[%s1193 + $0x9c] sm:$0xf]
    %v1234 = vld [vmem:[%s1193 + $0xa0] sm:$0xf]
    %v1235 = vld [vmem:[%s1193 + $0xa4] sm:$0xf]
    %v1236 = vld [vmem:[%s1193 + $0xa8] sm:$0xf]
    %v1237 = vld [vmem:[%s1193 + $0xac] sm:$0xf]
    %v1238 = vld [vmem:[%s1193 + $0xb0] sm:$0xf]
    %v1239 = vld [vmem:[%s1193 + $0xb4] sm:$0xf]
    %v1240 = vld [vmem:[%s1193 + $0xb8] sm:$0xf]
    %v1241 = vld [vmem:[%s1193 + $0xbc] sm:$0xf]
    %v1290 = vunpack.c.l.b16 %v1194
    %v1291 = vunpack.c.l.b16 %v1195
    %v1292 = vunpack.c.l.b16 %v1196
    %v1293 = vunpack.c.l.b16 %v1197
    %v1294 = vunpack.c.l.b16 %v1198
    %v1295 = vunpack.c.l.b16 %v1199
    %v1296 = vunpack.c.l.b16 %v1200
    %v1297 = vunpack.c.l.b16 %v1201
    %v1298 = vunpack.c.l.b16 %v1202
    %v1299 = vunpack.c.l.b16 %v1203
    %v1300 = vunpack.c.l.b16 %v1204
    %v1301 = vunpack.c.l.b16 %v1205
    %v1302 = vunpack.c.l.b16 %v1206
    %v1303 = vunpack.c.l.b16 %v1207
    %v1304 = vunpack.c.l.b16 %v1208
    %v1305 = vunpack.c.l.b16 %v1209
    %v1306 = vunpack.c.l.b16 %v1210
    %v1307 = vunpack.c.l.b16 %v1211
    %v1308 = vunpack.c.l.b16 %v1212
    %v1309 = vunpack.c.l.b16 %v1213
    %v1310 = vunpack.c.l.b16 %v1214
    %v1311 = vunpack.c.l.b16 %v1215
    %v1312 = vunpack.c.l.b16 %v1216
    %v1313 = vunpack.c.l.b16 %v1217
    %v1314 = vunpack.c.l.b16 %v1218
    %v1315 = vunpack.c.l.b16 %v1219
    %v1316 = vunpack.c.l.b16 %v1220
    %v1317 = vunpack.c.l.b16 %v1221
    %v1318 = vunpack.c.l.b16 %v1222
    %v1319 = vunpack.c.l.b16 %v1223
    %v1320 = vunpack.c.l.b16 %v1224
    %v1321 = vunpack.c.l.b16 %v1225
    %v1322 = vunpack.c.l.b16 %v1226
    %v1323 = vunpack.c.l.b16 %v1227
    %v1324 = vunpack.c.l.b16 %v1228
    %v1325 = vunpack.c.l.b16 %v1229
    %v1326 = vunpack.c.l.b16 %v1230
    %v1327 = vunpack.c.l.b16 %v1231
    %v1328 = vunpack.c.l.b16 %v1232
    %v1329 = vunpack.c.l.b16 %v1233
    %v1330 = vunpack.c.l.b16 %v1234
    %v1331 = vunpack.c.l.b16 %v1235
    %v1332 = vunpack.c.l.b16 %v1236
    %v1333 = vunpack.c.l.b16 %v1237
    %v1334 = vunpack.c.l.b16 %v1238
    %v1335 = vunpack.c.l.b16 %v1239
    %v1336 = vunpack.c.l.b16 %v1240
    %v1337 = vunpack.c.l.b16 %v1241
    %v1338 = vpack.c.b16 %v1291, %v1290
    %v1339 = vpack.c.b16 %v1293, %v1292
    %v1340 = vpack.c.b16 %v1295, %v1294
    %v1341 = vpack.c.b16 %v1297, %v1296
    %v1342 = vpack.c.b16 %v1299, %v1298
    %v1343 = vpack.c.b16 %v1301, %v1300
    %v1344 = vpack.c.b16 %v1303, %v1302
    %v1345 = vpack.c.b16 %v1305, %v1304
    %v1346 = vpack.c.b16 %v1307, %v1306
    %v1347 = vpack.c.b16 %v1309, %v1308
    %v1348 = vpack.c.b16 %v1311, %v1310
    %v1349 = vpack.c.b16 %v1313, %v1312
    %v1350 = vpack.c.b16 %v1315, %v1314
    %v1351 = vpack.c.b16 %v1317, %v1316
    %v1352 = vpack.c.b16 %v1319, %v1318
    %v1353 = vpack.c.b16 %v1321, %v1320
    %v1354 = vpack.c.b16 %v1323, %v1322
    %v1355 = vpack.c.b16 %v1325, %v1324
    %v1356 = vpack.c.b16 %v1327, %v1326
    %v1357 = vpack.c.b16 %v1329, %v1328
    %v1358 = vpack.c.b16 %v1331, %v1330
    %v1359 = vpack.c.b16 %v1333, %v1332
    %v1360 = vpack.c.b16 %v1335, %v1334
    %v1361 = vpack.c.b16 %v1337, %v1336
    %1386 = vmatprep.subr.bf16.mxu0 0
    %1387 = vmatpush1.bf16.msra.mxu0 %v1338
    %1388 = vmatprep.subr.bf16.mxu0 0
    %1389 = vmatpush1.bf16.msra.mxu0 %v1339
    %1390 = vmatprep.subr.bf16.mxu0 0
    %1391 = vmatpush1.bf16.msra.mxu0 %v1340
    %1392 = vmatprep.subr.bf16.mxu0 0
    %1393 = vmatpush1.bf16.msra.mxu0 %v1341
    %1394 = vmatprep.subr.bf16.mxu0 0
    %1395 = vmatpush1.bf16.msra.mxu0 %v1342
    %1396 = vmatprep.subr.bf16.mxu0 0
    %1397 = vmatpush1.bf16.msra.mxu0 %v1343
    %1398 = vmatprep.subr.bf16.mxu0 0
    %1399 = vmatpush1.bf16.msra.mxu0 %v1344
    %1400 = vmatprep.subr.bf16.mxu0 0
    %1401 = vmatpush1.bf16.msra.mxu0 %v1345
    %1402 = vmatprep.subr.bf16.mxu0 0
    %1403 = vmatpush1.bf16.msra.mxu0 %v1346
    %1404 = vmatprep.subr.bf16.mxu0 0
    %1405 = vmatpush1.bf16.msra.mxu0 %v1347
    %1406 = vmatprep.subr.bf16.mxu0 0
    %1407 = vmatpush1.bf16.msra.mxu0 %v1348
    %1408 = vmatprep.subr.bf16.mxu0 0
    %1409 = vmatpush1.bf16.msra.mxu0 %v1349
    %1410 = vmatprep.subr.bf16.mxu0 0
    %1411 = vmatpush1.bf16.msra.mxu0 %v1350
    %1412 = vmatprep.subr.bf16.mxu0 0
    %1413 = vmatpush1.bf16.msra.mxu0 %v1351
    %1414 = vmatprep.subr.bf16.mxu0 0
    %1415 = vmatpush1.bf16.msra.mxu0 %v1352
    %1416 = vmatprep.subr.bf16.mxu0 0
    %1417 = vmatpush1.bf16.msra.mxu0 %v1353
    %1418 = vmatprep.mubr.bf16.mxu0 %v1170
    %1419 = vmatmul.mubr.bf16.gmra.mrb[0].mxu0 %v1169
    %v1420 = vpop.f32.mrb[0].mxu0
    %v1421 = vadd.f32 0.0, %v1420
    %v1422 = vpop.f32.mrb[0].mxu0
    %v1423 = vpop.f32.mrb[0].mxu0
    %v1424 = vadd.f32 0.0, %v1423
    %v1425 = vpop.f32.mrb[0].mxu0
    %1426 = vmatprep.mubr.bf16.mxu0 %v1173
    %1427 = vmatmul.mubr.bf16.gmra.mrb[0].mxu0 %v1172
    %v1428 = vpop.f32.mrb[0].mxu0
    %v1429 = vadd.f32 0.0, %v1428
    %v1430 = vpop.f32.mrb[0].mxu0
    %v1431 = vpop.f32.mrb[0].mxu0
    %v1432 = vadd.f32 0.0, %v1431
    %v1433 = vpop.f32.mrb[0].mxu0
    %1434 = vmatprep.mubr.bf16.mxu0 %v1176
    %1435 = vmatmul.mubr.bf16.gmra.mrb[0].mxu0 %v1175
    %v1436 = vpop.f32.mrb[0].mxu0
    %v1437 = vadd.f32 0.0, %v1436
    %v1438 = vpop.f32.mrb[0].mxu0
    %v1439 = vpop.f32.mrb[0].mxu0
    %v1440 = vadd.f32 0.0, %v1439
    %v1441 = vpop.f32.mrb[0].mxu0
    %1442 = vmatprep.mubr.bf16.mxu0 %v1179
    %1443 = vmatmul.mubr.bf16.gmra.mrb[0].mxu0 %v1178
    %v1444 = vpop.f32.mrb[0].mxu0
    %v1445 = vadd.f32 0.0, %v1444
    %v1446 = vpop.f32.mrb[0].mxu0
    %v1447 = vpop.f32.mrb[0].mxu0
    %v1448 = vadd.f32 0.0, %v1447
    %v1449 = vpop.f32.mrb[0].mxu0
    %1450 = vmatprep.mubr.bf16.mxu0 %v1182
    %1451 = vmatmul.mubr.bf16.gmra.mrb[0].mxu0 %v1181
    %v1452 = vpop.f32.mrb[0].mxu0
    %v1453 = vadd.f32 0.0, %v1452
    %v1454 = vpop.f32.mrb[0].mxu0
    %v1455 = vpop.f32.mrb[0].mxu0
    %v1456 = vadd.f32 0.0, %v1455
    %v1457 = vpop.f32.mrb[0].mxu0
    %1458 = vmatprep.mubr.bf16.mxu0 %v1185
    %1459 = vmatmul.mubr.bf16.gmra.mrb[0].mxu0 %v1184
    %v1460 = vpop.f32.mrb[0].mxu0
    %v1461 = vadd.f32 0.0, %v1460
    %v1462 = vpop.f32.mrb[0].mxu0
    %v1463 = vpop.f32.mrb[0].mxu0
    %v1464 = vadd.f32 0.0, %v1463
    %v1465 = vpop.f32.mrb[0].mxu0
    %1466 = vmatprep.mubr.bf16.mxu0 %v1188
    %1467 = vmatmul.mubr.bf16.gmra.mrb[0].mxu0 %v1187
    %v1468 = vpop.f32.mrb[0].mxu0
    %v1469 = vadd.f32 0.0, %v1468
    %v1470 = vpop.f32.mrb[0].mxu0
    %v1471 = vpop.f32.mrb[0].mxu0
    %v1472 = vadd.f32 0.0, %v1471
    %v1473 = vpop.f32.mrb[0].mxu0
    %1474 = vmatprep.mubr.bf16.mxu0 %v1191
    %1475 = vmatmul.mubr.bf16.gmra.mrb[0].mxu0 %v1190
    %v1476 = vpop.f32.mrb[0].mxu0
    %v1477 = vadd.f32 0.0, %v1476
    %v1478 = vpop.f32.mrb[0].mxu0
    %v1479 = vpop.f32.mrb[0].mxu0
    %v1480 = vadd.f32 0.0, %v1479
    %v1481 = vpop.f32.mrb[0].mxu0
    %1482 = vdwg.mxu0
    %1483 = vmatprep.subr.bf16.mxu0 0
    %1484 = vmatpush1.bf16.msra.mxu0 %v1354
    %1485 = vmatprep.subr.bf16.mxu0 0
    %1486 = vmatpush1.bf16.msra.mxu0 %v1355
    %1487 = vmatprep.subr.bf16.mxu0 0
    %1488 = vmatpush1.bf16.msra.mxu0 %v1356
    %1489 = vmatprep.subr.bf16.mxu0 0
    %1490 = vmatpush1.bf16.msra.mxu0 %v1357
    %1491 = vmatprep.subr.bf16.mxu0 0
    %1492 = vmatpush1.bf16.msra.mxu0 %v1358
    %1493 = vmatprep.subr.bf16.mxu0 0
    %1494 = vmatpush1.bf16.msra.mxu0 %v1359
    %1495 = vmatprep.subr.bf16.mxu0 0
    %1496 = vmatpush1.bf16.msra.mxu0 %v1360
    %1497 = vmatprep.subr.bf16.mxu0 0
    %1498 = vmatpush1.bf16.msra.mxu0 %v1361
    %1499 = vmatprep.subr.bf16.mxu0 0
    %1500 = vmatpush1.bf16.msra.mxu0 0
    %1501 = vmatprep.subr.bf16.mxu0 0
    %1502 = vmatpush1.bf16.msra.mxu0 0
    %1503 = vmatprep.subr.bf16.mxu0 0
    %1504 = vmatpush1.bf16.msra.mxu0 0
    %1505 = vmatprep.subr.bf16.mxu0 0
    %1506 = vmatpush1.bf16.msra.mxu0 0
    %1507 = vmatprep.subr.bf16.mxu0 0
    %1508 = vmatpush1.bf16.msra.mxu0 0
    %1509 = vmatprep.subr.bf16.mxu0 0
    %1510 = vmatpush1.bf16.msra.mxu0 0
    %1511 = vmatprep.subr.bf16.mxu0 0
    %1512 = vmatpush1.bf16.msra.mxu0 0
    %1513 = vmatprep.subr.bf16.mxu0 0
    %1514 = vmatpush1.bf16.msra.mxu0 0
    %1515 = vmatprep.mubr.bf16.mxu0 0
    %1516 = vmatmul.mubr.bf16.gmra.mrb[0].mxu0 %v1171
    %v1517 = vpop.f32.mrb[0].mxu0
    %v1518 = vadd.f32 %v1421, %v1517
    %v1519 = vpop.f32.mrb[0].mxu0
    %v1520 = vpop.f32.mrb[0].mxu0
    %v1521 = vadd.f32 %v1424, %v1520
    %v1522 = vpop.f32.mrb[0].mxu0
    %1523 = vmatprep.mubr.bf16.mxu0 0
    %1524 = vmatmul.mubr.bf16.gmra.mrb[0].mxu0 %v1174
    %v1525 = vpop.f32.mrb[0].mxu0
    %v1526 = vadd.f32 %v1429, %v1525
    %v1527 = vpop.f32.mrb[0].mxu0
    %v1528 = vpop.f32.mrb[0].mxu0
    %v1529 = vadd.f32 %v1432, %v1528
    %v1530 = vpop.f32.mrb[0].mxu0
    %1531 = vmatprep.mubr.bf16.mxu0 0
    %1532 = vmatmul.mubr.bf16.gmra.mrb[0].mxu0 %v1177
    %v1533 = vpop.f32.mrb[0].mxu0
    %v1534 = vadd.f32 %v1437, %v1533
    %v1535 = vpop.f32.mrb[0].mxu0
    %v1536 = vpop.f32.mrb[0].mxu0
    %v1537 = vadd.f32 %v1440, %v1536
    %v1538 = vpop.f32.mrb[0].mxu0
    %1539 = vmatprep.mubr.bf16.mxu0 0
    %1540 = vmatmul.mubr.bf16.gmra.mrb[0].mxu0 %v1180
    %v1541 = vpop.f32.mrb[0].mxu0
    %v1542 = vadd.f32 %v1445, %v1541
    %v1543 = vpop.f32.mrb[0].mxu0
    %v1544 = vpop.f32.mrb[0].mxu0
    %v1545 = vadd.f32 %v1448, %v1544
    %v1546 = vpop.f32.mrb[0].mxu0
    %1547 = vmatprep.mubr.bf16.mxu0 0
    %1548 = vmatmul.mubr.bf16.gmra.mrb[0].mxu0 %v1183
    %v1549 = vpop.f32.mrb[0].mxu0
    %v1550 = vadd.f32 %v1453, %v1549
    %v1551 = vpop.f32.mrb[0].mxu0
    %v1552 = vpop.f32.mrb[0].mxu0
    %v1553 = vadd.f32 %v1456, %v1552
    %v1554 = vpop.f32.mrb[0].mxu0
    %1555 = vmatprep.mubr.bf16.mxu0 0
    %1556 = vmatmul.mubr.bf16.gmra.mrb[0].mxu0 %v1186
    %v1557 = vpop.f32.mrb[0].mxu0
    %v1558 = vadd.f32 %v1461, %v1557
    %v1559 = vpop.f32.mrb[0].mxu0
    %v1560 = vpop.f32.mrb[0].mxu0
    %v1561 = vadd.f32 %v1464, %v1560
    %v1562 = vpop.f32.mrb[0].mxu0
    %1563 = vmatprep.mubr.bf16.mxu0 0
    %1564 = vmatmul.mubr.bf16.gmra.mrb[0].mxu0 %v1189
    %v1565 = vpop.f32.mrb[0].mxu0
    %v1566 = vadd.f32 %v1469, %v1565
    %v1567 = vpop.f32.mrb[0].mxu0
    %v1568 = vpop.f32.mrb[0].mxu0
    %v1569 = vadd.f32 %v1472, %v1568
    %v1570 = vpop.f32.mrb[0].mxu0
    %1571 = vmatprep.mubr.bf16.mxu0 0
    %1572 = vmatmul.mubr.bf16.gmra.mrb[0].mxu0 %v1192
    %v1573 = vpop.f32.mrb[0].mxu0
    %v1574 = vadd.f32 %v1477, %v1573
    %v1575 = vpop.f32.mrb[0].mxu0
    %v1576 = vpop.f32.mrb[0].mxu0
    %v1577 = vadd.f32 %v1480, %v1576
    %v1578 = vpop.f32.mrb[0].mxu0
    %1579 = vdwg.mxu0
    %v1580 = vadd.f32 %v1058, %v1518
    %v1581 = vadd.f32 %v1061, %v1521
    %v1582 = vadd.f32 %v1066, %v1526
    %v1583 = vadd.f32 %v1069, %v1529
    %v1584 = vadd.f32 %v1074, %v1534
    %v1585 = vadd.f32 %v1077, %v1537
    %v1586 = vadd.f32 %v1082, %v1542
    %v1587 = vadd.f32 %v1085, %v1545
    %v1588 = vadd.f32 %v1090, %v1550
    %v1589 = vadd.f32 %v1093, %v1553
    %v1590 = vadd.f32 %v1098, %v1558
    %v1591 = vadd.f32 %v1101, %v1561
    %v1592 = vadd.f32 %v1106, %v1566
    %v1593 = vadd.f32 %v1109, %v1569
    %v1594 = vadd.f32 %v1114, %v1574
    %v1595 = vadd.f32 %v1117, %v1577
    %v1596 = vlaneseq
    %v1597 = vshrl.u32 %v1596, 7
    %v1598 = vsub.s32 0, %v1597
    %v1599 = vrot.slane %v19, %v1598
    %v1600 = vmul.f32 %v1580, %v1599
    %v1601 = vmul.f32 %v1581, %v1599
    %v1602 = vmul.f32 %v1582, %v1599
    %v1603 = vmul.f32 %v1583, %v1599
    %v1604 = vmul.f32 %v1584, %v1599
    %v1605 = vmul.f32 %v1585, %v1599
    %v1606 = vmul.f32 %v1586, %v1599
    %v1607 = vmul.f32 %v1587, %v1599
    %v1608 = vmul.f32 %v1588, %v1599
    %v1609 = vmul.f32 %v1589, %v1599
    %v1610 = vmul.f32 %v1590, %v1599
    %v1611 = vmul.f32 %v1591, %v1599
    %v1612 = vmul.f32 %v1592, %v1599
    %v1613 = vmul.f32 %v1593, %v1599
    %v1614 = vmul.f32 %v1594, %v1599
    %v1615 = vmul.f32 %v1595, %v1599
    %v1616 = vlaneseq
    %v1617 = vshrl.u32 %v1616, 7
    %v1618 = vsub.s32 0, %v1617
    %v1619 = vrot.slane %v20, %v1618
    %v1620 = vadd.f32 %v1600, %v1619
    %v1621 = vadd.f32 %v1601, %v1619
    %v1622 = vadd.f32 %v1602, %v1619
    %v1623 = vadd.f32 %v1603, %v1619
    %v1624 = vadd.f32 %v1604, %v1619
    %v1625 = vadd.f32 %v1605, %v1619
    %v1626 = vadd.f32 %v1606, %v1619
    %v1627 = vadd.f32 %v1607, %v1619
    %v1628 = vadd.f32 %v1608, %v1619
    %v1629 = vadd.f32 %v1609, %v1619
    %v1630 = vadd.f32 %v1610, %v1619
    %v1631 = vadd.f32 %v1611, %v1619
    %v1632 = vadd.f32 %v1612, %v1619
    %v1633 = vadd.f32 %v1613, %v1619
    %v1634 = vadd.f32 %v1614, %v1619
    %v1635 = vadd.f32 %v1615, %v1619
    %v1636 = vmax.f32 %v1620, 0.0
    %v1637 = vmax.f32 %v1621, 0.0
    %v1638 = vmax.f32 %v1622, 0.0
    %v1639 = vmax.f32 %v1623, 0.0
    %v1640 = vmax.f32 %v1624, 0.0
    %v1641 = vmax.f32 %v1625, 0.0
    %v1642 = vmax.f32 %v1626, 0.0
    %v1643 = vmax.f32 %v1627, 0.0
    %v1644 = vmax.f32 %v1628, 0.0
    %v1645 = vmax.f32 %v1629, 0.0
    %v1646 = vmax.f32 %v1630, 0.0
    %v1647 = vmax.f32 %v1631, 0.0
    %v1648 = vmax.f32 %v1632, 0.0
    %v1649 = vmax.f32 %v1633, 0.0
    %v1650 = vmax.f32 %v1634, 0.0
    %v1651 = vmax.f32 %v1635, 0.0
    %v1652 = vrot.slane %v1636, 7
    %v1653 = vrot.slane %v1637, 7
    %v1654 = vrot.slane %v1638, 7
    %v1655 = vrot.slane %v1639, 7
    %v1656 = vrot.slane %v1640, 7
    %v1657 = vrot.slane %v1641, 7
    %v1658 = vrot.slane %v1642, 7
    %v1659 = vrot.slane %v1643, 7
    %v1660 = vrot.slane %v1644, 7
    %v1661 = vrot.slane %v1645, 7
    %v1662 = vrot.slane %v1646, 7
    %v1663 = vrot.slane %v1647, 7
    %v1664 = vrot.slane %v1648, 7
    %v1665 = vrot.slane %v1649, 7
    %v1666 = vrot.slane %v1650, 7
    %v1667 = vrot.slane %v1651, 7
    %v1668 = vsel %vm72, %v1666, %v1667
    %v1669 = vsel %vm72, %v1665, %v1666
    %v1670 = vsel %vm72, %v1664, %v1665
    %v1671 = vsel %vm72, %v1663, %v1664
    %v1672 = vsel %vm72, %v1662, %v1663
    %v1673 = vsel %vm72, %v1661, %v1662
    %v1674 = vsel %vm72, %v1660, %v1661
    %v1675 = vsel %vm72, %v1659, %v1660
    %v1676 = vsel %vm72, %v1658, %v1659
    %v1677 = vsel %vm72, %v1657, %v1658
    %v1678 = vsel %vm72, %v1656, %v1657
    %v1679 = vsel %vm72, %v1655, %v1656
    %v1680 = vsel %vm72, %v1654, %v1655
    %v1681 = vsel %vm72, %v1653, %v1654
    %v1682 = vsel %vm72, %v1652, %v1653
    %v1683 = vsel %vm72, %v1667, %v1652
    %v1684 = vrot.slane %v1636, 1
    %v1685 = vrot.slane %v1637, 1
    %v1686 = vrot.slane %v1638, 1
    %v1687 = vrot.slane %v1639, 1
    %v1688 = vrot.slane %v1640, 1
    %v1689 = vrot.slane %v1641, 1
    %v1690 = vrot.slane %v1642, 1
    %v1691 = vrot.slane %v1643, 1
    %v1692 = vrot.slane %v1644, 1
    %v1693 = vrot.slane %v1645, 1
    %v1694 = vrot.slane %v1646, 1
    %v1695 = vrot.slane %v1647, 1
    %v1696 = vrot.slane %v1648, 1
    %v1697 = vrot.slane %v1649, 1
    %v1698 = vrot.slane %v1650, 1
    %v1699 = vrot.slane %v1651, 1
    %v1700 = vsel %vm105, %v1698, %v1699
    %v1701 = vsel %vm105, %v1697, %v1698
    %v1702 = vsel %vm105, %v1696, %v1697
    %v1703 = vsel %vm105, %v1695, %v1696
    %v1704 = vsel %vm105, %v1694, %v1695
    %v1705 = vsel %vm105, %v1693, %v1694
    %v1706 = vsel %vm105, %v1692, %v1693
    %v1707 = vsel %vm105, %v1691, %v1692
    %v1708 = vsel %vm105, %v1690, %v1691
    %v1709 = vsel %vm105, %v1689, %v1690
    %v1710 = vsel %vm105, %v1688, %v1689
    %v1711 = vsel %vm105, %v1687, %v1688
    %v1712 = vsel %vm105, %v1686, %v1687
    %v1713 = vsel %vm105, %v1685, %v1686
    %v1714 = vsel %vm105, %v1684, %v1685
    %v1715 = vsel %vm105, %v1699, %v1684
    %v1716 = vsel %vm38, %v1683, 0.0
    %v1717 = vsel %vm38, %v1682, 0.0
    %v1718 = vsel %vm38, %v1681, 0.0
    %v1719 = vsel %vm38, %v1680, 0.0
    %v1720 = vsel %vm38, %v1679, 0.0
    %v1721 = vsel %vm38, %v1678, 0.0
    %v1722 = vsel %vm38, %v1677, 0.0
    %v1723 = vsel %vm38, %v1676, 0.0
    %v1724 = vsel %vm38, %v1675, 0.0
    %v1725 = vsel %vm38, %v1674, 0.0
    %v1726 = vsel %vm38, %v1673, 0.0
    %v1727 = vsel %vm38, %v1672, 0.0
    %v1728 = vsel %vm38, %v1671, 0.0
    %v1729 = vsel %vm38, %v1670, 0.0
    %v1730 = vsel %vm38, %v1669, 0.0
    %v1731 = vsel %vm38, %v1668, 0.0
    %1732 = vst [vmem:[%s138] sm:$0xff] %v1716
    %1733 = vst [vmem:[%s138 + $0x18] sm:$0xff] %v1717
    %1734 = vst [vmem:[%s138 + $0x30] sm:$0xff] %v1718
    %1735 = vst [vmem:[%s138 + $0x48] sm:$0xff] %v1719
    %1736 = vst [vmem:[%s138 + $0x60] sm:$0xff] %v1720
    %1737 = vst [vmem:[%s138 + $0x78] sm:$0xff] %v1721
    %1738 = vst [vmem:[%s138 + $0x90] sm:$0xff] %v1722
    %1739 = vst [vmem:[%s138 + $0xa8] sm:$0xff] %v1723
    %1740 = vst [vmem:[%s138 + $0xf0] sm:$0xff] %v1724
    %1741 = vst [vmem:[%s138 + $0x108] sm:$0xff] %v1725
    %1742 = vst [vmem:[%s138 + $0x120] sm:$0xff] %v1726
    %1743 = vst [vmem:[%s138 + $0x138] sm:$0xff] %v1727
    %1744 = vst [vmem:[%s138 + $0x150] sm:$0xff] %v1728
    %1745 = vst [vmem:[%s138 + $0x168] sm:$0xff] %v1729
    %1746 = vst [vmem:[%s138 + $0x180] sm:$0xff] %v1730
    %1747 = vst [vmem:[%s138 + $0x198] sm:$0xff] %v1731
    %1748 = vst [vmem:[%s138 + $0x8] sm:$0xff] %v1636
    %1749 = vst [vmem:[%s138 + $0x20] sm:$0xff] %v1637
    %1750 = vst [vmem:[%s138 + $0x38] sm:$0xff] %v1638
    %1751 = vst [vmem:[%s138 + $0x50] sm:$0xff] %v1639
    %1752 = vst [vmem:[%s138 + $0x68] sm:$0xff] %v1640
    %1753 = vst [vmem:[%s138 + $0x80] sm:$0xff] %v1641
    %1754 = vst [vmem:[%s138 + $0x98] sm:$0xff] %v1642
    %1755 = vst [vmem:[%s138 + $0xb0] sm:$0xff] %v1643
    %1756 = vst [vmem:[%s138 + $0xf8] sm:$0xff] %v1644
    %1757 = vst [vmem:[%s138 + $0x110] sm:$0xff] %v1645
    %1758 = vst [vmem:[%s138 + $0x128] sm:$0xff] %v1646
    %1759 = vst [vmem:[%s138 + $0x140] sm:$0xff] %v1647
    %1760 = vst [vmem:[%s138 + $0x158] sm:$0xff] %v1648
    %1761 = vst [vmem:[%s138 + $0x170] sm:$0xff] %v1649
    %1762 = vst [vmem:[%s138 + $0x188] sm:$0xff] %v1650
    %1763 = vst [vmem:[%s138 + $0x1a0] sm:$0xff] %v1651
    %v1764 = vsel %vm39, %v1714, 0.0
    %v1765 = vsel %vm39, %v1713, 0.0
    %v1766 = vsel %vm39, %v1712, 0.0
    %v1767 = vsel %vm39, %v1711, 0.0
    %v1768 = vsel %vm39, %v1710, 0.0
    %v1769 = vsel %vm39, %v1709, 0.0
    %v1770 = vsel %vm39, %v1708, 0.0
    %v1771 = vsel %vm39, %v1707, 0.0
    %v1772 = vsel %vm39, %v1706, 0.0
    %v1773 = vsel %vm39, %v1705, 0.0
    %v1774 = vsel %vm39, %v1704, 0.0
    %v1775 = vsel %vm39, %v1703, 0.0
    %v1776 = vsel %vm39, %v1702, 0.0
    %v1777 = vsel %vm39, %v1701, 0.0
    %v1778 = vsel %vm39, %v1700, 0.0
    %v1779 = vsel %vm39, %v1715, 0.0
    %1780 = vst [vmem:[%s138 + $0x10] sm:$0xff] %v1764
    %1781 = vst [vmem:[%s138 + $0x28] sm:$0xff] %v1765
    %1782 = vst [vmem:[%s138 + $0x40] sm:$0xff] %v1766
    %1783 = vst [vmem:[%s138 + $0x58] sm:$0xff] %v1767
    %1784 = vst [vmem:[%s138 + $0x70] sm:$0xff] %v1768
    %1785 = vst [vmem:[%s138 + $0x88] sm:$0xff] %v1769
    %1786 = vst [vmem:[%s138 + $0xa0] sm:$0xff] %v1770
    %1787 = vst [vmem:[%s138 + $0xb8] sm:$0xff] %v1771
    %1788 = vst [vmem:[%s138 + $0x100] sm:$0xff] %v1772
    %1789 = vst [vmem:[%s138 + $0x118] sm:$0xff] %v1773
    %1790 = vst [vmem:[%s138 + $0x130] sm:$0xff] %v1774
    %1791 = vst [vmem:[%s138 + $0x148] sm:$0xff] %v1775
    %1792 = vst [vmem:[%s138 + $0x160] sm:$0xff] %v1776
    %1793 = vst [vmem:[%s138 + $0x178] sm:$0xff] %v1777
    %1794 = vst [vmem:[%s138 + $0x190] sm:$0xff] %v1778
    %1795 = vst [vmem:[%s138 + $0x1a8] sm:$0xff] %v1779
    %v1796 = vld [vmem:[#allocation2] sm:$0xff]
    %v1797 = vld [vmem:[#allocation2 + $0x8] sm:$0xff]
    %v1798 = vld [vmem:[#allocation2 + $0x10] sm:$0xff]
    %v1799 = vld [vmem:[#allocation2 + $0x18] sm:$0xff]
    %v1800 = vld [vmem:[#allocation2 + $0x20] sm:$0xff]
    %v1801 = vld [vmem:[#allocation2 + $0x28] sm:$0xff]
    %v1802 = vld [vmem:[#allocation2 + $0x30] sm:$0xff]
    %v1803 = vld [vmem:[#allocation2 + $0x38] sm:$0xff]
    %v1804 = vld [vmem:[#allocation2 + $0x40] sm:$0xff]
    %v1805 = vld [vmem:[#allocation2 + $0x48] sm:$0xff]
    %v1806 = vld [vmem:[#allocation2 + $0x50] sm:$0xff]
    %v1807 = vld [vmem:[#allocation2 + $0x58] sm:$0xff]
    %v1808 = vld [vmem:[#allocation2 + $0x60] sm:$0xff]
    %v1809 = vld [vmem:[#allocation2 + $0x68] sm:$0xff]
    %v1810 = vld [vmem:[#allocation2 + $0x70] sm:$0xff]
    %v1811 = vld [vmem:[#allocation2 + $0x78] sm:$0xff]
    %v1812 = vld [vmem:[#allocation2 + $0x80] sm:$0xff]
    %v1813 = vld [vmem:[#allocation2 + $0x88] sm:$0xff]
    %v1814 = vld [vmem:[#allocation2 + $0x90] sm:$0xff]
    %v1815 = vld [vmem:[#allocation2 + $0x98] sm:$0xff]
    %v1816 = vld [vmem:[#allocation2 + $0xa0] sm:$0xff]
    %v1817 = vld [vmem:[#allocation2 + $0xa8] sm:$0xff]
    %v1818 = vld [vmem:[#allocation2 + $0xb0] sm:$0xff]
    %v1819 = vld [vmem:[#allocation2 + $0xb8] sm:$0xff]
    %v1820 = vld [vmem:[#allocation2 + $0xf0] sm:$0xff]
    %v1821 = vld [vmem:[#allocation2 + $0xf8] sm:$0xff]
    %v1822 = vld [vmem:[#allocation2 + $0x100] sm:$0xff]
    %v1823 = vld [vmem:[#allocation2 + $0x108] sm:$0xff]
    %v1824 = vld [vmem:[#allocation2 + $0x110] sm:$0xff]
    %v1825 = vld [vmem:[#allocation2 + $0x118] sm:$0xff]
    %v1826 = vld [vmem:[#allocation2 + $0x120] sm:$0xff]
    %v1827 = vld [vmem:[#allocation2 + $0x128] sm:$0xff]
    %v1828 = vld [vmem:[#allocation2 + $0x130] sm:$0xff]
    %v1829 = vld [vmem:[#allocation2 + $0x138] sm:$0xff]
    %v1830 = vld [vmem:[#allocation2 + $0x140] sm:$0xff]
    %v1831 = vld [vmem:[#allocation2 + $0x148] sm:$0xff]
    %v1832 = vld [vmem:[#allocation2 + $0x150] sm:$0xff]
    %v1833 = vld [vmem:[#allocation2 + $0x158] sm:$0xff]
    %v1834 = vld [vmem:[#allocation2 + $0x160] sm:$0xff]
    %v1835 = vld [vmem:[#allocation2 + $0x168] sm:$0xff]
    %v1836 = vld [vmem:[#allocation2 + $0x170] sm:$0xff]
    %v1837 = vld [vmem:[#allocation2 + $0x178] sm:$0xff]
    %v1838 = vld [vmem:[#allocation2 + $0x180] sm:$0xff]
    %v1839 = vld [vmem:[#allocation2 + $0x188] sm:$0xff]
    %v1840 = vld [vmem:[#allocation2 + $0x190] sm:$0xff]
    %v1841 = vld [vmem:[#allocation2 + $0x198] sm:$0xff]
    %v1842 = vld [vmem:[#allocation2 + $0x1a0] sm:$0xff]
    %v1843 = vld [vmem:[#allocation2 + $0x1a8] sm:$0xff]
    %v1844 = vpack.c.bf16 %v1799, %v1796
    %v1845 = vpack.c.bf16 %v1800, %v1797
    %v1846 = vpack.c.bf16 %v1801, %v1798
    %v1847 = vpack.c.bf16 %v1805, %v1802
    %v1848 = vpack.c.bf16 %v1806, %v1803
    %v1849 = vpack.c.bf16 %v1807, %v1804
    %v1850 = vpack.c.bf16 %v1811, %v1808
    %v1851 = vpack.c.bf16 %v1812, %v1809
    %v1852 = vpack.c.bf16 %v1813, %v1810
    %v1853 = vpack.c.bf16 %v1817, %v1814
    %v1854 = vpack.c.bf16 %v1818, %v1815
    %v1855 = vpack.c.bf16 %v1819, %v1816
    %v1856 = vpack.c.bf16 %v1823, %v1820
    %v1857 = vpack.c.bf16 %v1824, %v1821
    %v1858 = vpack.c.bf16 %v1825, %v1822
    %v1859 = vpack.c.bf16 %v1829, %v1826
    %v1860 = vpack.c.bf16 %v1830, %v1827
    %v1861 = vpack.c.bf16 %v1831, %v1828
    %v1862 = vpack.c.bf16 %v1835, %v1832
    %v1863 = vpack.c.bf16 %v1836, %v1833
    %v1864 = vpack.c.bf16 %v1837, %v1834
    %v1865 = vpack.c.bf16 %v1841, %v1838
    %v1866 = vpack.c.bf16 %v1842, %v1839
    %v1867 = vpack.c.bf16 %v1843, %v1840
    %v1868 = vld [vmem:[%s2] sm:$0xf]
    %v1869 = vld [vmem:[%s2 + $0x4] sm:$0xf]
    %v1870 = vld [vmem:[%s2 + $0x8] sm:$0xf]
    %v1871 = vld [vmem:[%s2 + $0xc] sm:$0xf]
    %v1872 = vld [vmem:[%s2 + $0x10] sm:$0xf]
    %v1873 = vld [vmem:[%s2 + $0x14] sm:$0xf]
    %v1874 = vld [vmem:[%s2 + $0x18] sm:$0xf]
    %v1875 = vld [vmem:[%s2 + $0x1c] sm:$0xf]
    %v1876 = vld [vmem:[%s2 + $0x20] sm:$0xf]
    %v1877 = vld [vmem:[%s2 + $0x24] sm:$0xf]
    %v1878 = vld [vmem:[%s2 + $0x28] sm:$0xf]
    %v1879 = vld [vmem:[%s2 + $0x2c] sm:$0xf]
    %v1880 = vld [vmem:[%s2 + $0x30] sm:$0xf]
    %v1881 = vld [vmem:[%s2 + $0x34] sm:$0xf]
    %v1882 = vld [vmem:[%s2 + $0x38] sm:$0xf]
    %v1883 = vld [vmem:[%s2 + $0x3c] sm:$0xf]
    %v1884 = vld [vmem:[%s2 + $0x40] sm:$0xf]
    %v1885 = vld [vmem:[%s2 + $0x44] sm:$0xf]
    %v1886 = vld [vmem:[%s2 + $0x48] sm:$0xf]
    %v1887 = vld [vmem:[%s2 + $0x4c] sm:$0xf]
    %v1888 = vld [vmem:[%s2 + $0x50] sm:$0xf]
    %v1889 = vld [vmem:[%s2 + $0x54] sm:$0xf]
    %v1890 = vld [vmem:[%s2 + $0x58] sm:$0xf]
    %v1891 = vld [vmem:[%s2 + $0x5c] sm:$0xf]
    %v1892 = vld [vmem:[%s2 + $0x60] sm:$0xf]
    %v1893 = vld [vmem:[%s2 + $0x64] sm:$0xf]
    %v1894 = vld [vmem:[%s2 + $0x68] sm:$0xf]
    %v1895 = vld [vmem:[%s2 + $0x6c] sm:$0xf]
    %v1896 = vld [vmem:[%s2 + $0x70] sm:$0xf]
    %v1897 = vld [vmem:[%s2 + $0x74] sm:$0xf]
    %v1898 = vld [vmem:[%s2 + $0x78] sm:$0xf]
    %v1899 = vld [vmem:[%s2 + $0x7c] sm:$0xf]
    %v1900 = vld [vmem:[%s2 + $0x80] sm:$0xf]
    %v1901 = vld [vmem:[%s2 + $0x84] sm:$0xf]
    %v1902 = vld [vmem:[%s2 + $0x88] sm:$0xf]
    %v1903 = vld [vmem:[%s2 + $0x8c] sm:$0xf]
    %v1904 = vld [vmem:[%s2 + $0x90] sm:$0xf]
    %v1905 = vld [vmem:[%s2 + $0x94] sm:$0xf]
    %v1906 = vld [vmem:[%s2 + $0x98] sm:$0xf]
    %v1907 = vld [vmem:[%s2 + $0x9c] sm:$0xf]
    %v1908 = vld [vmem:[%s2 + $0xa0] sm:$0xf]
    %v1909 = vld [vmem:[%s2 + $0xa4] sm:$0xf]
    %v1910 = vld [vmem:[%s2 + $0xa8] sm:$0xf]
    %v1911 = vld [vmem:[%s2 + $0xac] sm:$0xf]
    %v1912 = vld [vmem:[%s2 + $0xb0] sm:$0xf]
    %v1913 = vld [vmem:[%s2 + $0xb4] sm:$0xf]
    %v1914 = vld [vmem:[%s2 + $0xb8] sm:$0xf]
    %v1915 = vld [vmem:[%s2 + $0xbc] sm:$0xf]
    %v1916 = vld [vmem:[%s138] sm:$0xff]
    %v1917 = vld [vmem:[%s138 + $0x8] sm:$0xff]
    %v1918 = vld [vmem:[%s138 + $0x10] sm:$0xff]
    %v1919 = vld [vmem:[%s138 + $0x18] sm:$0xff]
    %v1920 = vld [vmem:[%s138 + $0x20] sm:$0xff]
    %v1921 = vld [vmem:[%s138 + $0x28] sm:$0xff]
    %v1922 = vld [vmem:[%s138 + $0x30] sm:$0xff]
    %v1923 = vld [vmem:[%s138 + $0x38] sm:$0xff]
    %v1924 = vld [vmem:[%s138 + $0x40] sm:$0xff]
    %v1925 = vld [vmem:[%s138 + $0x48] sm:$0xff]
    %v1926 = vld [vmem:[%s138 + $0x50] sm:$0xff]
    %v1927 = vld [vmem:[%s138 + $0x58] sm:$0xff]
    %v1928 = vld [vmem:[%s138 + $0x60] sm:$0xff]
    %v1929 = vld [vmem:[%s138 + $0x68] sm:$0xff]
    %v1930 = vld [vmem:[%s138 + $0x70] sm:$0xff]
    %v1931 = vld [vmem:[%s138 + $0x78] sm:$0xff]
    %v1932 = vld [vmem:[%s138 + $0x80] sm:$0xff]
    %v1933 = vld [vmem:[%s138 + $0x88] sm:$0xff]
    %v1934 = vld [vmem:[%s138 + $0x90] sm:$0xff]
    %v1935 = vld [vmem:[%s138 + $0x98] sm:$0xff]
    %v1936 = vld [vmem:[%s138 + $0xa0] sm:$0xff]
    %v1937 = vld [vmem:[%s138 + $0xa8] sm:$0xff]
    %v1938 = vld [vmem:[%s138 + $0xb0] sm:$0xff]
    %v1939 = vld [vmem:[%s138 + $0xb8] sm:$0xff]
    %v1940 = vld [vmem:[%s138 + $0xf0] sm:$0xff]
    %v1941 = vld [vmem:[%s138 + $0xf8] sm:$0xff]
    %v1942 = vld [vmem:[%s138 + $0x100] sm:$0xff]
    %v1943 = vld [vmem:[%s138 + $0x108] sm:$0xff]
    %v1944 = vld [vmem:[%s138 + $0x110] sm:$0xff]
    %v1945 = vld [vmem:[%s138 + $0x118] sm:$0xff]
    %v1946 = vld [vmem:[%s138 + $0x120] sm:$0xff]
    %v1947 = vld [vmem:[%s138 + $0x128] sm:$0xff]
    %v1948 = vld [vmem:[%s138 + $0x130] sm:$0xff]
    %v1949 = vld [vmem:[%s138 + $0x138] sm:$0xff]
    %v1950 = vld [vmem:[%s138 + $0x140] sm:$0xff]
    %v1951 = vld [vmem:[%s138 + $0x148] sm:$0xff]
    %v1952 = vld [vmem:[%s138 + $0x150] sm:$0xff]
    %v1953 = vld [vmem:[%s138 + $0x158] sm:$0xff]
    %v1954 = vld [vmem:[%s138 + $0x160] sm:$0xff]
    %v1955 = vld [vmem:[%s138 + $0x168] sm:$0xff]
    %v1956 = vld [vmem:[%s138 + $0x170] sm:$0xff]
    %v1957 = vld [vmem:[%s138 + $0x178] sm:$0xff]
    %v1958 = vld [vmem:[%s138 + $0x180] sm:$0xff]
    %v1959 = vld [vmem:[%s138 + $0x188] sm:$0xff]
    %v1960 = vld [vmem:[%s138 + $0x190] sm:$0xff]
    %v1961 = vld [vmem:[%s138 + $0x198] sm:$0xff]
    %v1962 = vld [vmem:[%s138 + $0x1a0] sm:$0xff]
    %v1963 = vld [vmem:[%s138 + $0x1a8] sm:$0xff]
    %v1964 = vpack.c.bf16 %v1919, %v1916
    %v1965 = vpack.c.bf16 %v1920, %v1917
    %v1966 = vpack.c.bf16 %v1921, %v1918
    %v1967 = vpack.c.bf16 %v1925, %v1922
    %v1968 = vpack.c.bf16 %v1926, %v1923
    %v1969 = vpack.c.bf16 %v1927, %v1924
    %v1970 = vpack.c.bf16 %v1931, %v1928
    %v1971 = vpack.c.bf16 %v1932, %v1929
    %v1972 = vpack.c.bf16 %v1933, %v1930
    %v1973 = vpack.c.bf16 %v1937, %v1934
    %v1974 = vpack.c.bf16 %v1938, %v1935
    %v1975 = vpack.c.bf16 %v1939, %v1936
    %v1976 = vpack.c.bf16 %v1943, %v1940
    %v1977 = vpack.c.bf16 %v1944, %v1941
    %v1978 = vpack.c.bf16 %v1945, %v1942
    %v1979 = vpack.c.bf16 %v1949, %v1946
    %v1980 = vpack.c.bf16 %v1950, %v1947
    %v1981 = vpack.c.bf16 %v1951, %v1948
    %v1982 = vpack.c.bf16 %v1955, %v1952
    %v1983 = vpack.c.bf16 %v1956, %v1953
    %v1984 = vpack.c.bf16 %v1957, %v1954
    %v1985 = vpack.c.bf16 %v1961, %v1958
    %v1986 = vpack.c.bf16 %v1962, %v1959
    %v1987 = vpack.c.bf16 %v1963, %v1960
    %s1988 = scalar_lea.vmem %s2, 192
    %v1989 = vld [vmem:[%s1988] sm:$0xf]
    %v1990 = vld [vmem:[%s1988 + $0x4] sm:$0xf]
    %v1991 = vld [vmem:[%s1988 + $0x8] sm:$0xf]
    %v1992 = vld [vmem:[%s1988 + $0xc] sm:$0xf]
    %v1993 = vld [vmem:[%s1988 + $0x10] sm:$0xf]
    %v1994 = vld [vmem:[%s1988 + $0x14] sm:$0xf]
    %v1995 = vld [vmem:[%s1988 + $0x18] sm:$0xf]
    %v1996 = vld [vmem:[%s1988 + $0x1c] sm:$0xf]
    %v1997 = vld [vmem:[%s1988 + $0x20] sm:$0xf]
    %v1998 = vld [vmem:[%s1988 + $0x24] sm:$0xf]
    %v1999 = vld [vmem:[%s1988 + $0x28] sm:$0xf]
    %v2000 = vld [vmem:[%s1988 + $0x2c] sm:$0xf]
    %v2001 = vld [vmem:[%s1988 + $0x30] sm:$0xf]
    %v2002 = vld [vmem:[%s1988 + $0x34] sm:$0xf]
    %v2003 = vld [vmem:[%s1988 + $0x38] sm:$0xf]
    %v2004 = vld [vmem:[%s1988 + $0x3c] sm:$0xf]
    %v2005 = vld [vmem:[%s1988 + $0x40] sm:$0xf]
    %v2006 = vld [vmem:[%s1988 + $0x44] sm:$0xf]
    %v2007 = vld [vmem:[%s1988 + $0x48] sm:$0xf]
    %v2008 = vld [vmem:[%s1988 + $0x4c] sm:$0xf]
    %v2009 = vld [vmem:[%s1988 + $0x50] sm:$0xf]
    %v2010 = vld [vmem:[%s1988 + $0x54] sm:$0xf]
    %v2011 = vld [vmem:[%s1988 + $0x58] sm:$0xf]
    %v2012 = vld [vmem:[%s1988 + $0x5c] sm:$0xf]
    %v2013 = vld [vmem:[%s1988 + $0x60] sm:$0xf]
    %v2014 = vld [vmem:[%s1988 + $0x64] sm:$0xf]
    %v2015 = vld [vmem:[%s1988 + $0x68] sm:$0xf]
    %v2016 = vld [vmem:[%s1988 + $0x6c] sm:$0xf]
    %v2017 = vld [vmem:[%s1988 + $0x70] sm:$0xf]
    %v2018 = vld [vmem:[%s1988 + $0x74] sm:$0xf]
    %v2019 = vld [vmem:[%s1988 + $0x78] sm:$0xf]
    %v2020 = vld [vmem:[%s1988 + $0x7c] sm:$0xf]
    %v2021 = vld [vmem:[%s1988 + $0x80] sm:$0xf]
    %v2022 = vld [vmem:[%s1988 + $0x84] sm:$0xf]
    %v2023 = vld [vmem:[%s1988 + $0x88] sm:$0xf]
    %v2024 = vld [vmem:[%s1988 + $0x8c] sm:$0xf]
    %v2025 = vld [vmem:[%s1988 + $0x90] sm:$0xf]
    %v2026 = vld [vmem:[%s1988 + $0x94] sm:$0xf]
    %v2027 = vld [vmem:[%s1988 + $0x98] sm:$0xf]
    %v2028 = vld [vmem:[%s1988 + $0x9c] sm:$0xf]
    %v2029 = vld [vmem:[%s1988 + $0xa0] sm:$0xf]
    %v2030 = vld [vmem:[%s1988 + $0xa4] sm:$0xf]
    %v2031 = vld [vmem:[%s1988 + $0xa8] sm:$0xf]
    %v2032 = vld [vmem:[%s1988 + $0xac] sm:$0xf]
    %v2033 = vld [vmem:[%s1988 + $0xb0] sm:$0xf]
    %v2034 = vld [vmem:[%s1988 + $0xb4] sm:$0xf]
    %v2035 = vld [vmem:[%s1988 + $0xb8] sm:$0xf]
    %v2036 = vld [vmem:[%s1988 + $0xbc] sm:$0xf]
    %v2085 = vunpack.c.l.b16 %v1989
    %v2086 = vunpack.c.l.b16 %v1990
    %v2087 = vunpack.c.l.b16 %v1991
    %v2088 = vunpack.c.l.b16 %v1992
    %v2089 = vunpack.c.l.b16 %v1993
    %v2090 = vunpack.c.l.b16 %v1994
    %v2091 = vunpack.c.l.b16 %v1995
    %v2092 = vunpack.c.l.b16 %v1996
    %v2093 = vunpack.c.l.b16 %v1997
    %v2094 = vunpack.c.l.b16 %v1998
    %v2095 = vunpack.c.l.b16 %v1999
    %v2096 = vunpack.c.l.b16 %v2000
    %v2097 = vunpack.c.l.b16 %v2001
    %v2098 = vunpack.c.l.b16 %v2002
    %v2099 = vunpack.c.l.b16 %v2003
    %v2100 = vunpack.c.l.b16 %v2004
    %v2101 = vunpack.c.l.b16 %v2005
    %v2102 = vunpack.c.l.b16 %v2006
    %v2103 = vunpack.c.l.b16 %v2007
    %v2104 = vunpack.c.l.b16 %v2008
    %v2105 = vunpack.c.l.b16 %v2009
    %v2106 = vunpack.c.l.b16 %v2010
    %v2107 = vunpack.c.l.b16 %v2011
    %v2108 = vunpack.c.l.b16 %v2012
    %v2109 = vunpack.c.l.b16 %v2013
    %v2110 = vunpack.c.l.b16 %v2014
    %v2111 = vunpack.c.l.b16 %v2015
    %v2112 = vunpack.c.l.b16 %v2016
    %v2113 = vunpack.c.l.b16 %v2017
    %v2114 = vunpack.c.l.b16 %v2018
    %v2115 = vunpack.c.l.b16 %v2019
    %v2116 = vunpack.c.l.b16 %v2020
    %v2117 = vunpack.c.l.b16 %v2021
    %v2118 = vunpack.c.l.b16 %v2022
    %v2119 = vunpack.c.l.b16 %v2023
    %v2120 = vunpack.c.l.b16 %v2024
    %v2121 = vunpack.c.l.b16 %v2025
    %v2122 = vunpack.c.l.b16 %v2026
    %v2123 = vunpack.c.l.b16 %v2027
    %v2124 = vunpack.c.l.b16 %v2028
    %v2125 = vunpack.c.l.b16 %v2029
    %v2126 = vunpack.c.l.b16 %v2030
    %v2127 = vunpack.c.l.b16 %v2031
    %v2128 = vunpack.c.l.b16 %v2032
    %v2129 = vunpack.c.l.b16 %v2033
    %v2130 = vunpack.c.l.b16 %v2034
    %v2131 = vunpack.c.l.b16 %v2035
    %v2132 = vunpack.c.l.b16 %v2036
    %v2133 = vpack.c.b16 %v2086, %v2085
    %v2134 = vpack.c.b16 %v2088, %v2087
    %v2135 = vpack.c.b16 %v2090, %v2089
    %v2136 = vpack.c.b16 %v2092, %v2091
    %v2137 = vpack.c.b16 %v2094, %v2093
    %v2138 = vpack.c.b16 %v2096, %v2095
    %v2139 = vpack.c.b16 %v2098, %v2097
    %v2140 = vpack.c.b16 %v2100, %v2099
    %v2141 = vpack.c.b16 %v2102, %v2101
    %v2142 = vpack.c.b16 %v2104, %v2103
    %v2143 = vpack.c.b16 %v2106, %v2105
    %v2144 = vpack.c.b16 %v2108, %v2107
    %v2145 = vpack.c.b16 %v2110, %v2109
    %v2146 = vpack.c.b16 %v2112, %v2111
    %v2147 = vpack.c.b16 %v2114, %v2113
    %v2148 = vpack.c.b16 %v2116, %v2115
    %v2149 = vpack.c.b16 %v2118, %v2117
    %v2150 = vpack.c.b16 %v2120, %v2119
    %v2151 = vpack.c.b16 %v2122, %v2121
    %v2152 = vpack.c.b16 %v2124, %v2123
    %v2153 = vpack.c.b16 %v2126, %v2125
    %v2154 = vpack.c.b16 %v2128, %v2127
    %v2155 = vpack.c.b16 %v2130, %v2129
    %v2156 = vpack.c.b16 %v2132, %v2131
    %2181 = vmatprep.subr.bf16.mxu0 0
    %2182 = vmatpush1.bf16.msra.mxu0 %v2133
    %2183 = vmatprep.subr.bf16.mxu0 0
    %2184 = vmatpush1.bf16.msra.mxu0 %v2134
    %2185 = vmatprep.subr.bf16.mxu0 0
    %2186 = vmatpush1.bf16.msra.mxu0 %v2135
    %2187 = vmatprep.subr.bf16.mxu0 0
    %2188 = vmatpush1.bf16.msra.mxu0 %v2136
    %2189 = vmatprep.subr.bf16.mxu0 0
    %2190 = vmatpush1.bf16.msra.mxu0 %v2137
    %2191 = vmatprep.subr.bf16.mxu0 0
    %2192 = vmatpush1.bf16.msra.mxu0 %v2138
    %2193 = vmatprep.subr.bf16.mxu0 0
    %2194 = vmatpush1.bf16.msra.mxu0 %v2139
    %2195 = vmatprep.subr.bf16.mxu0 0
    %2196 = vmatpush1.bf16.msra.mxu0 %v2140
    %2197 = vmatprep.subr.bf16.mxu0 0
    %2198 = vmatpush1.bf16.msra.mxu0 %v2141
    %2199 = vmatprep.subr.bf16.mxu0 0
    %2200 = vmatpush1.bf16.msra.mxu0 %v2142
    %2201 = vmatprep.subr.bf16.mxu0 0
    %2202 = vmatpush1.bf16.msra.mxu0 %v2143
    %2203 = vmatprep.subr.bf16.mxu0 0
    %2204 = vmatpush1.bf16.msra.mxu0 %v2144
    %2205 = vmatprep.subr.bf16.mxu0 0
    %2206 = vmatpush1.bf16.msra.mxu0 %v2145
    %2207 = vmatprep.subr.bf16.mxu0 0
    %2208 = vmatpush1.bf16.msra.mxu0 %v2146
    %2209 = vmatprep.subr.bf16.mxu0 0
    %2210 = vmatpush1.bf16.msra.mxu0 %v2147
    %2211 = vmatprep.subr.bf16.mxu0 0
    %2212 = vmatpush1.bf16.msra.mxu0 %v2148
    %2213 = vmatprep.mubr.bf16.mxu0 %v1965
    %2214 = vmatmul.mubr.bf16.gmra.mrb[0].mxu0 %v1964
    %v2215 = vpop.f32.mrb[0].mxu0
    %v2216 = vadd.f32 0.0, %v2215
    %v2217 = vpop.f32.mrb[0].mxu0
    %v2218 = vpop.f32.mrb[0].mxu0
    %v2219 = vadd.f32 0.0, %v2218
    %v2220 = vpop.f32.mrb[0].mxu0
    %2221 = vmatprep.mubr.bf16.mxu0 %v1968
    %2222 = vmatmul.mubr.bf16.gmra.mrb[0].mxu0 %v1967
    %v2223 = vpop.f32.mrb[0].mxu0
    %v2224 = vadd.f32 0.0, %v2223
    %v2225 = vpop.f32.mrb[0].mxu0
    %v2226 = vpop.f32.mrb[0].mxu0
    %v2227 = vadd.f32 0.0, %v2226
    %v2228 = vpop.f32.mrb[0].mxu0
    %2229 = vmatprep.mubr.bf16.mxu0 %v1971
    %2230 = vmatmul.mubr.bf16.gmra.mrb[0].mxu0 %v1970
    %v2231 = vpop.f32.mrb[0].mxu0
    %v2232 = vadd.f32 0.0, %v2231
    %v2233 = vpop.f32.mrb[0].mxu0
    %v2234 = vpop.f32.mrb[0].mxu0
    %v2235 = vadd.f32 0.0, %v2234
    %v2236 = vpop.f32.mrb[0].mxu0
    %2237 = vmatprep.mubr.bf16.mxu0 %v1974
    %2238 = vmatmul.mubr.bf16.gmra.mrb[0].mxu0 %v1973
    %v2239 = vpop.f32.mrb[0].mxu0
    %v2240 = vadd.f32 0.0, %v2239
    %v2241 = vpop.f32.mrb[0].mxu0
    %v2242 = vpop.f32.mrb[0].mxu0
    %v2243 = vadd.f32 0.0, %v2242
    %v2244 = vpop.f32.mrb[0].mxu0
    %2245 = vmatprep.mubr.bf16.mxu0 %v1977
    %2246 = vmatmul.mubr.bf16.gmra.mrb[0].mxu0 %v1976
    %v2247 = vpop.f32.mrb[0].mxu0
    %v2248 = vadd.f32 0.0, %v2247
    %v2249 = vpop.f32.mrb[0].mxu0
    %v2250 = vpop.f32.mrb[0].mxu0
    %v2251 = vadd.f32 0.0, %v2250
    %v2252 = vpop.f32.mrb[0].mxu0
    %2253 = vmatprep.mubr.bf16.mxu0 %v1980
    %2254 = vmatmul.mubr.bf16.gmra.mrb[0].mxu0 %v1979
    %v2255 = vpop.f32.mrb[0].mxu0
    %v2256 = vadd.f32 0.0, %v2255
    %v2257 = vpop.f32.mrb[0].mxu0
    %v2258 = vpop.f32.mrb[0].mxu0
    %v2259 = vadd.f32 0.0, %v2258
    %v2260 = vpop.f32.mrb[0].mxu0
    %2261 = vmatprep.mubr.bf16.mxu0 %v1983
    %2262 = vmatmul.mubr.bf16.gmra.mrb[0].mxu0 %v1982
    %v2263 = vpop.f32.mrb[0].mxu0
    %v2264 = vadd.f32 0.0, %v2263
    %v2265 = vpop.f32.mrb[0].mxu0
    %v2266 = vpop.f32.mrb[0].mxu0
    %v2267 = vadd.f32 0.0, %v2266
    %v2268 = vpop.f32.mrb[0].mxu0
    %2269 = vmatprep.mubr.bf16.mxu0 %v1986
    %2270 = vmatmul.mubr.bf16.gmra.mrb[0].mxu0 %v1985
    %v2271 = vpop.f32.mrb[0].mxu0
    %v2272 = vadd.f32 0.0, %v2271
    %v2273 = vpop.f32.mrb[0].mxu0
    %v2274 = vpop.f32.mrb[0].mxu0
    %v2275 = vadd.f32 0.0, %v2274
    %v2276 = vpop.f32.mrb[0].mxu0
    %2277 = vdwg.mxu0
    %2278 = vmatprep.subr.bf16.mxu0 0
    %2279 = vmatpush1.bf16.msra.mxu0 %v2149
    %2280 = vmatprep.subr.bf16.mxu0 0
    %2281 = vmatpush1.bf16.msra.mxu0 %v2150
    %2282 = vmatprep.subr.bf16.mxu0 0
    %2283 = vmatpush1.bf16.msra.mxu0 %v2151
    %2284 = vmatprep.subr.bf16.mxu0 0
    %2285 = vmatpush1.bf16.msra.mxu0 %v2152
    %2286 = vmatprep.subr.bf16.mxu0 0
    %2287 = vmatpush1.bf16.msra.mxu0 %v2153
    %2288 = vmatprep.subr.bf16.mxu0 0
    %2289 = vmatpush1.bf16.msra.mxu0 %v2154
    %2290 = vmatprep.subr.bf16.mxu0 0
    %2291 = vmatpush1.bf16.msra.mxu0 %v2155
    %2292 = vmatprep.subr.bf16.mxu0 0
    %2293 = vmatpush1.bf16.msra.mxu0 %v2156
    %2294 = vmatprep.subr.bf16.mxu0 0
    %2295 = vmatpush1.bf16.msra.mxu0 0
    %2296 = vmatprep.subr.bf16.mxu0 0
    %2297 = vmatpush1.bf16.msra.mxu0 0
    %2298 = vmatprep.subr.bf16.mxu0 0
    %2299 = vmatpush1.bf16.msra.mxu0 0
    %2300 = vmatprep.subr.bf16.mxu0 0
    %2301 = vmatpush1.bf16.msra.mxu0 0
    %2302 = vmatprep.subr.bf16.mxu0 0
    %2303 = vmatpush1.bf16.msra.mxu0 0
    %2304 = vmatprep.subr.bf16.mxu0 0
    %2305 = vmatpush1.bf16.msra.mxu0 0
    %2306 = vmatprep.subr.bf16.mxu0 0
    %2307 = vmatpush1.bf16.msra.mxu0 0
    %2308 = vmatprep.subr.bf16.mxu0 0
    %2309 = vmatpush1.bf16.msra.mxu0 0
    %2310 = vmatprep.mubr.bf16.mxu0 0
    %2311 = vmatmul.mubr.bf16.gmra.mrb[0].mxu0 %v1966
    %v2312 = vpop.f32.mrb[0].mxu0
    %v2313 = vadd.f32 %v2216, %v2312
    %v2314 = vpop.f32.mrb[0].mxu0
    %v2315 = vpop.f32.mrb[0].mxu0
    %v2316 = vadd.f32 %v2219, %v2315
    %v2317 = vpop.f32.mrb[0].mxu0
    %2318 = vmatprep.mubr.bf16.mxu0 0
    %2319 = vmatmul.mubr.bf16.gmra.mrb[0].mxu0 %v1969
    %v2320 = vpop.f32.mrb[0].mxu0
    %v2321 = vadd.f32 %v2224, %v2320
    %v2322 = vpop.f32.mrb[0].mxu0
    %v2323 = vpop.f32.mrb[0].mxu0
    %v2324 = vadd.f32 %v2227, %v2323
    %v2325 = vpop.f32.mrb[0].mxu0
    %2326 = vmatprep.mubr.bf16.mxu0 0
    %2327 = vmatmul.mubr.bf16.gmra.mrb[0].mxu0 %v1972
    %v2328 = vpop.f32.mrb[0].mxu0
    %v2329 = vadd.f32 %v2232, %v2328
    %v2330 = vpop.f32.mrb[0].mxu0
    %v2331 = vpop.f32.mrb[0].mxu0
    %v2332 = vadd.f32 %v2235, %v2331
    %v2333 = vpop.f32.mrb[0].mxu0
    %2334 = vmatprep.mubr.bf16.mxu0 0
    %2335 = vmatmul.mubr.bf16.gmra.mrb[0].mxu0 %v1975
    %v2336 = vpop.f32.mrb[0].mxu0
    %v2337 = vadd.f32 %v2240, %v2336
    %v2338 = vpop.f32.mrb[0].mxu0
    %v2339 = vpop.f32.mrb[0].mxu0
    %v2340 = vadd.f32 %v2243, %v2339
    %v2341 = vpop.f32.mrb[0].mxu0
    %2342 = vmatprep.mubr.bf16.mxu0 0
    %2343 = vmatmul.mubr.bf16.gmra.mrb[0].mxu0 %v1978
    %v2344 = vpop.f32.mrb[0].mxu0
    %v2345 = vadd.f32 %v2248, %v2344
    %v2346 = vpop.f32.mrb[0].mxu0
    %v2347 = vpop.f32.mrb[0].mxu0
    %v2348 = vadd.f32 %v2251, %v2347
    %v2349 = vpop.f32.mrb[0].mxu0
    %2350 = vmatprep.mubr.bf16.mxu0 0
    %2351 = vmatmul.mubr.bf16.gmra.mrb[0].mxu0 %v1981
    %v2352 = vpop.f32.mrb[0].mxu0
    %v2353 = vadd.f32 %v2256, %v2352
    %v2354 = vpop.f32.mrb[0].mxu0
    %v2355 = vpop.f32.mrb[0].mxu0
    %v2356 = vadd.f32 %v2259, %v2355
    %v2357 = vpop.f32.mrb[0].mxu0
    %2358 = vmatprep.mubr.bf16.mxu0 0
    %2359 = vmatmul.mubr.bf16.gmra.mrb[0].mxu0 %v1984
    %v2360 = vpop.f32.mrb[0].mxu0
    %v2361 = vadd.f32 %v2264, %v2360
    %v2362 = vpop.f32.mrb[0].mxu0
    %v2363 = vpop.f32.mrb[0].mxu0
    %v2364 = vadd.f32 %v2267, %v2363
    %v2365 = vpop.f32.mrb[0].mxu0
    %2366 = vmatprep.mubr.bf16.mxu0 0
    %2367 = vmatmul.mubr.bf16.gmra.mrb[0].mxu0 %v1987
    %v2368 = vpop.f32.mrb[0].mxu0
    %v2369 = vadd.f32 %v2272, %v2368
    %v2370 = vpop.f32.mrb[0].mxu0
    %v2371 = vpop.f32.mrb[0].mxu0
    %v2372 = vadd.f32 %v2275, %v2371
    %v2373 = vpop.f32.mrb[0].mxu0
    %2374 = vdwg.mxu0
    %v2423 = vunpack.c.l.b16 %v1868
    %v2424 = vunpack.c.l.b16 %v1869
    %v2425 = vunpack.c.l.b16 %v1870
    %v2426 = vunpack.c.l.b16 %v1871
    %v2427 = vunpack.c.l.b16 %v1872
    %v2428 = vunpack.c.l.b16 %v1873
    %v2429 = vunpack.c.l.b16 %v1874
    %v2430 = vunpack.c.l.b16 %v1875
    %v2431 = vunpack.c.l.b16 %v1876
    %v2432 = vunpack.c.l.b16 %v1877
    %v2433 = vunpack.c.l.b16 %v1878
    %v2434 = vunpack.c.l.b16 %v1879
    %v2435 = vunpack.c.l.b16 %v1880
    %v2436 = vunpack.c.l.b16 %v1881
    %v2437 = vunpack.c.l.b16 %v1882
    %v2438 = vunpack.c.l.b16 %v1883
    %v2439 = vunpack.c.l.b16 %v1884
    %v2440 = vunpack.c.l.b16 %v1885
    %v2441 = vunpack.c.l.b16 %v1886
    %v2442 = vunpack.c.l.b16 %v1887
    %v2443 = vunpack.c.l.b16 %v1888
    %v2444 = vunpack.c.l.b16 %v1889
    %v2445 = vunpack.c.l.b16 %v1890
    %v2446 = vunpack.c.l.b16 %v1891
    %v2447 = vunpack.c.l.b16 %v1892
    %v2448 = vunpack.c.l.b16 %v1893
    %v2449 = vunpack.c.l.b16 %v1894
    %v2450 = vunpack.c.l.b16 %v1895
    %v2451 = vunpack.c.l.b16 %v1896
    %v2452 = vunpack.c.l.b16 %v1897
    %v2453 = vunpack.c.l.b16 %v1898
    %v2454 = vunpack.c.l.b16 %v1899
    %v2455 = vunpack.c.l.b16 %v1900
    %v2456 = vunpack.c.l.b16 %v1901
    %v2457 = vunpack.c.l.b16 %v1902
    %v2458 = vunpack.c.l.b16 %v1903
    %v2459 = vunpack.c.l.b16 %v1904
    %v2460 = vunpack.c.l.b16 %v1905
    %v2461 = vunpack.c.l.b16 %v1906
    %v2462 = vunpack.c.l.b16 %v1907
    %v2463 = vunpack.c.l.b16 %v1908
    %v2464 = vunpack.c.l.b16 %v1909
    %v2465 = vunpack.c.l.b16 %v1910
    %v2466 = vunpack.c.l.b16 %v1911
    %v2467 = vunpack.c.l.b16 %v1912
    %v2468 = vunpack.c.l.b16 %v1913
    %v2469 = vunpack.c.l.b16 %v1914
    %v2470 = vunpack.c.l.b16 %v1915
    %v2471 = vpack.c.b16 %v2424, %v2423
    %v2472 = vpack.c.b16 %v2426, %v2425
    %v2473 = vpack.c.b16 %v2428, %v2427
    %v2474 = vpack.c.b16 %v2430, %v2429
    %v2475 = vpack.c.b16 %v2432, %v2431
    %v2476 = vpack.c.b16 %v2434, %v2433
    %v2477 = vpack.c.b16 %v2436, %v2435
    %v2478 = vpack.c.b16 %v2438, %v2437
    %v2479 = vpack.c.b16 %v2440, %v2439
    %v2480 = vpack.c.b16 %v2442, %v2441
    %v2481 = vpack.c.b16 %v2444, %v2443
    %v2482 = vpack.c.b16 %v2446, %v2445
    %v2483 = vpack.c.b16 %v2448, %v2447
    %v2484 = vpack.c.b16 %v2450, %v2449
    %v2485 = vpack.c.b16 %v2452, %v2451
    %v2486 = vpack.c.b16 %v2454, %v2453
    %v2487 = vpack.c.b16 %v2456, %v2455
    %v2488 = vpack.c.b16 %v2458, %v2457
    %v2489 = vpack.c.b16 %v2460, %v2459
    %v2490 = vpack.c.b16 %v2462, %v2461
    %v2491 = vpack.c.b16 %v2464, %v2463
    %v2492 = vpack.c.b16 %v2466, %v2465
    %v2493 = vpack.c.b16 %v2468, %v2467
    %v2494 = vpack.c.b16 %v2470, %v2469
    %2519 = vmatprep.subr.bf16.mxu0 0
    %2520 = vmatpush1.bf16.msra.mxu0 %v2471
    %2521 = vmatprep.subr.bf16.mxu0 0
    %2522 = vmatpush1.bf16.msra.mxu0 %v2472
    %2523 = vmatprep.subr.bf16.mxu0 0
    %2524 = vmatpush1.bf16.msra.mxu0 %v2473
    %2525 = vmatprep.subr.bf16.mxu0 0
    %2526 = vmatpush1.bf16.msra.mxu0 %v2474
    %2527 = vmatprep.subr.bf16.mxu0 0
    %2528 = vmatpush1.bf16.msra.mxu0 %v2475
    %2529 = vmatprep.subr.bf16.mxu0 0
    %2530 = vmatpush1.bf16.msra.mxu0 %v2476
    %2531 = vmatprep.subr.bf16.mxu0 0
    %2532 = vmatpush1.bf16.msra.mxu0 %v2477
    %2533 = vmatprep.subr.bf16.mxu0 0
    %2534 = vmatpush1.bf16.msra.mxu0 %v2478
    %2535 = vmatprep.subr.bf16.mxu0 0
    %2536 = vmatpush1.bf16.msra.mxu0 %v2479
    %2537 = vmatprep.subr.bf16.mxu0 0
    %2538 = vmatpush1.bf16.msra.mxu0 %v2480
    %2539 = vmatprep.subr.bf16.mxu0 0
    %2540 = vmatpush1.bf16.msra.mxu0 %v2481
    %2541 = vmatprep.subr.bf16.mxu0 0
    %2542 = vmatpush1.bf16.msra.mxu0 %v2482
    %2543 = vmatprep.subr.bf16.mxu0 0
    %2544 = vmatpush1.bf16.msra.mxu0 %v2483
    %2545 = vmatprep.subr.bf16.mxu0 0
    %2546 = vmatpush1.bf16.msra.mxu0 %v2484
    %2547 = vmatprep.subr.bf16.mxu0 0
    %2548 = vmatpush1.bf16.msra.mxu0 %v2485
    %2549 = vmatprep.subr.bf16.mxu0 0
    %2550 = vmatpush1.bf16.msra.mxu0 %v2486
    %2551 = vmatprep.mubr.bf16.mxu0 %v1845
    %2552 = vmatmul.mubr.bf16.gmra.mrb[0].mxu0 %v1844
    %v2553 = vpop.f32.mrb[0].mxu0
    %v2554 = vadd.f32 %v2313, %v2553
    %v2555 = vpop.f32.mrb[0].mxu0
    %v2556 = vpop.f32.mrb[0].mxu0
    %v2557 = vadd.f32 %v2316, %v2556
    %v2558 = vpop.f32.mrb[0].mxu0
    %2559 = vmatprep.mubr.bf16.mxu0 %v1848
    %2560 = vmatmul.mubr.bf16.gmra.mrb[0].mxu0 %v1847
    %v2561 = vpop.f32.mrb[0].mxu0
    %v2562 = vadd.f32 %v2321, %v2561
    %v2563 = vpop.f32.mrb[0].mxu0
    %v2564 = vpop.f32.mrb[0].mxu0
    %v2565 = vadd.f32 %v2324, %v2564
    %v2566 = vpop.f32.mrb[0].mxu0
    %2567 = vmatprep.mubr.bf16.mxu0 %v1851
    %2568 = vmatmul.mubr.bf16.gmra.mrb[0].mxu0 %v1850
    %v2569 = vpop.f32.mrb[0].mxu0
    %v2570 = vadd.f32 %v2329, %v2569
    %v2571 = vpop.f32.mrb[0].mxu0
    %v2572 = vpop.f32.mrb[0].mxu0
    %v2573 = vadd.f32 %v2332, %v2572
    %v2574 = vpop.f32.mrb[0].mxu0
    %2575 = vmatprep.mubr.bf16.mxu0 %v1854
    %2576 = vmatmul.mubr.bf16.gmra.mrb[0].mxu0 %v1853
    %v2577 = vpop.f32.mrb[0].mxu0
    %v2578 = vadd.f32 %v2337, %v2577
    %v2579 = vpop.f32.mrb[0].mxu0
    %v2580 = vpop.f32.mrb[0].mxu0
    %v2581 = vadd.f32 %v2340, %v2580
    %v2582 = vpop.f32.mrb[0].mxu0
    %2583 = vmatprep.mubr.bf16.mxu0 %v1857
    %2584 = vmatmul.mubr.bf16.gmra.mrb[0].mxu0 %v1856
    %v2585 = vpop.f32.mrb[0].mxu0
    %v2586 = vadd.f32 %v2345, %v2585
    %v2587 = vpop.f32.mrb[0].mxu0
    %v2588 = vpop.f32.mrb[0].mxu0
    %v2589 = vadd.f32 %v2348, %v2588
    %v2590 = vpop.f32.mrb[0].mxu0
    %2591 = vmatprep.mubr.bf16.mxu0 %v1860
    %2592 = vmatmul.mubr.bf16.gmra.mrb[0].mxu0 %v1859
    %v2593 = vpop.f32.mrb[0].mxu0
    %v2594 = vadd.f32 %v2353, %v2593
    %v2595 = vpop.f32.mrb[0].mxu0
    %v2596 = vpop.f32.mrb[0].mxu0
    %v2597 = vadd.f32 %v2356, %v2596
    %v2598 = vpop.f32.mrb[0].mxu0
    %2599 = vmatprep.mubr.bf16.mxu0 %v1863
    %2600 = vmatmul.mubr.bf16.gmra.mrb[0].mxu0 %v1862
    %v2601 = vpop.f32.mrb[0].mxu0
    %v2602 = vadd.f32 %v2361, %v2601
    %v2603 = vpop.f32.mrb[0].mxu0
    %v2604 = vpop.f32.mrb[0].mxu0
    %v2605 = vadd.f32 %v2364, %v2604
    %v2606 = vpop.f32.mrb[0].mxu0
    %2607 = vmatprep.mubr.bf16.mxu0 %v1866
    %2608 = vmatmul.mubr.bf16.gmra.mrb[0].mxu0 %v1865
    %v2609 = vpop.f32.mrb[0].mxu0
    %v2610 = vadd.f32 %v2369, %v2609
    %v2611 = vpop.f32.mrb[0].mxu0
    %v2612 = vpop.f32.mrb[0].mxu0
    %v2613 = vadd.f32 %v2372, %v2612
    %v2614 = vpop.f32.mrb[0].mxu0
    %2615 = vdwg.mxu0
    %2616 = vmatprep.subr.bf16.mxu0 0
    %2617 = vmatpush1.bf16.msra.mxu0 %v2487
    %2618 = vmatprep.subr.bf16.mxu0 0
    %2619 = vmatpush1.bf16.msra.mxu0 %v2488
    %2620 = vmatprep.subr.bf16.mxu0 0
    %2621 = vmatpush1.bf16.msra.mxu0 %v2489
    %2622 = vmatprep.subr.bf16.mxu0 0
    %2623 = vmatpush1.bf16.msra.mxu0 %v2490
    %2624 = vmatprep.subr.bf16.mxu0 0
    %2625 = vmatpush1.bf16.msra.mxu0 %v2491
    %2626 = vmatprep.subr.bf16.mxu0 0
    %2627 = vmatpush1.bf16.msra.mxu0 %v2492
    %2628 = vmatprep.subr.bf16.mxu0 0
    %2629 = vmatpush1.bf16.msra.mxu0 %v2493
    %2630 = vmatprep.subr.bf16.mxu0 0
    %2631 = vmatpush1.bf16.msra.mxu0 %v2494
    %2632 = vmatprep.subr.bf16.mxu0 0
    %2633 = vmatpush1.bf16.msra.mxu0 0
    %2634 = vmatprep.subr.bf16.mxu0 0
    %2635 = vmatpush1.bf16.msra.mxu0 0
    %2636 = vmatprep.subr.bf16.mxu0 0
    %2637 = vmatpush1.bf16.msra.mxu0 0
    %2638 = vmatprep.subr.bf16.mxu0 0
    %2639 = vmatpush1.bf16.msra.mxu0 0
    %2640 = vmatprep.subr.bf16.mxu0 0
    %2641 = vmatpush1.bf16.msra.mxu0 0
    %2642 = vmatprep.subr.bf16.mxu0 0
    %2643 = vmatpush1.bf16.msra.mxu0 0
    %2644 = vmatprep.subr.bf16.mxu0 0
    %2645 = vmatpush1.bf16.msra.mxu0 0
    %2646 = vmatprep.subr.bf16.mxu0 0
    %2647 = vmatpush1.bf16.msra.mxu0 0
    %2648 = vmatprep.mubr.bf16.mxu0 0
    %2649 = vmatmul.mubr.bf16.gmra.mrb[0].mxu0 %v1846
    %v2650 = vpop.f32.mrb[0].mxu0
    %v2651 = vadd.f32 %v2554, %v2650
    %v2652 = vpop.f32.mrb[0].mxu0
    %v2653 = vpop.f32.mrb[0].mxu0
    %v2654 = vadd.f32 %v2557, %v2653
    %v2655 = vpop.f32.mrb[0].mxu0
    %2656 = vmatprep.mubr.bf16.mxu0 0
    %2657 = vmatmul.mubr.bf16.gmra.mrb[0].mxu0 %v1849
    %v2658 = vpop.f32.mrb[0].mxu0
    %v2659 = vadd.f32 %v2562, %v2658
    %v2660 = vpop.f32.mrb[0].mxu0
    %v2661 = vpop.f32.mrb[0].mxu0
    %v2662 = vadd.f32 %v2565, %v2661
    %v2663 = vpop.f32.mrb[0].mxu0
    %2664 = vmatprep.mubr.bf16.mxu0 0
    %2665 = vmatmul.mubr.bf16.gmra.mrb[0].mxu0 %v1852
    %v2666 = vpop.f32.mrb[0].mxu0
    %v2667 = vadd.f32 %v2570, %v2666
    %v2668 = vpop.f32.mrb[0].mxu0
    %v2669 = vpop.f32.mrb[0].mxu0
    %v2670 = vadd.f32 %v2573, %v2669
    %v2671 = vpop.f32.mrb[0].mxu0
    %2672 = vmatprep.mubr.bf16.mxu0 0
    %2673 = vmatmul.mubr.bf16.gmra.mrb[0].mxu0 %v1855
    %v2674 = vpop.f32.mrb[0].mxu0
    %v2675 = vadd.f32 %v2578, %v2674
    %v2676 = vpop.f32.mrb[0].mxu0
    %v2677 = vpop.f32.mrb[0].mxu0
    %v2678 = vadd.f32 %v2581, %v2677
    %v2679 = vpop.f32.mrb[0].mxu0
    %2680 = vmatprep.mubr.bf16.mxu0 0
    %2681 = vmatmul.mubr.bf16.gmra.mrb[0].mxu0 %v1858
    %v2682 = vpop.f32.mrb[0].mxu0
    %v2683 = vadd.f32 %v2586, %v2682
    %v2684 = vpop.f32.mrb[0].mxu0
    %v2685 = vpop.f32.mrb[0].mxu0
    %v2686 = vadd.f32 %v2589, %v2685
    %v2687 = vpop.f32.mrb[0].mxu0
    %2688 = vmatprep.mubr.bf16.mxu0 0
    %2689 = vmatmul.mubr.bf16.gmra.mrb[0].mxu0 %v1861
    %v2690 = vpop.f32.mrb[0].mxu0
    %v2691 = vadd.f32 %v2594, %v2690
    %v2692 = vpop.f32.mrb[0].mxu0
    %v2693 = vpop.f32.mrb[0].mxu0
    %v2694 = vadd.f32 %v2597, %v2693
    %v2695 = vpop.f32.mrb[0].mxu0
    %2696 = vmatprep.mubr.bf16.mxu0 0
    %2697 = vmatmul.mubr.bf16.gmra.mrb[0].mxu0 %v1864
    %v2698 = vpop.f32.mrb[0].mxu0
    %v2699 = vadd.f32 %v2602, %v2698
    %v2700 = vpop.f32.mrb[0].mxu0
    %v2701 = vpop.f32.mrb[0].mxu0
    %v2702 = vadd.f32 %v2605, %v2701
    %v2703 = vpop.f32.mrb[0].mxu0
    %2704 = vmatprep.mubr.bf16.mxu0 0
    %2705 = vmatmul.mubr.bf16.gmra.mrb[0].mxu0 %v1867
    %v2706 = vpop.f32.mrb[0].mxu0
    %v2707 = vadd.f32 %v2610, %v2706
    %v2708 = vpop.f32.mrb[0].mxu0
    %v2709 = vpop.f32.mrb[0].mxu0
    %v2710 = vadd.f32 %v2613, %v2709
    %v2711 = vpop.f32.mrb[0].mxu0
    %2712 = vdwg.mxu0
    %v2713 = vld [vmem:[%s1120] sm:$0xff]
    %v2714 = vld [vmem:[%s1120 + $0x8] sm:$0xff]
    %v2715 = vld [vmem:[%s1120 + $0x10] sm:$0xff]
    %v2716 = vld [vmem:[%s1120 + $0x18] sm:$0xff]
    %v2717 = vld [vmem:[%s1120 + $0x20] sm:$0xff]
    %v2718 = vld [vmem:[%s1120 + $0x28] sm:$0xff]
    %v2719 = vld [vmem:[%s1120 + $0x30] sm:$0xff]
    %v2720 = vld [vmem:[%s1120 + $0x38] sm:$0xff]
    %v2721 = vld [vmem:[%s1120 + $0x40] sm:$0xff]
    %v2722 = vld [vmem:[%s1120 + $0x48] sm:$0xff]
    %v2723 = vld [vmem:[%s1120 + $0x50] sm:$0xff]
    %v2724 = vld [vmem:[%s1120 + $0x58] sm:$0xff]
    %v2725 = vld [vmem:[%s1120 + $0x60] sm:$0xff]
    %v2726 = vld [vmem:[%s1120 + $0x68] sm:$0xff]
    %v2727 = vld [vmem:[%s1120 + $0x70] sm:$0xff]
    %v2728 = vld [vmem:[%s1120 + $0x78] sm:$0xff]
    %v2729 = vld [vmem:[%s1120 + $0x80] sm:$0xff]
    %v2730 = vld [vmem:[%s1120 + $0x88] sm:$0xff]
    %v2731 = vld [vmem:[%s1120 + $0x90] sm:$0xff]
    %v2732 = vld [vmem:[%s1120 + $0x98] sm:$0xff]
    %v2733 = vld [vmem:[%s1120 + $0xa0] sm:$0xff]
    %v2734 = vld [vmem:[%s1120 + $0xa8] sm:$0xff]
    %v2735 = vld [vmem:[%s1120 + $0xb0] sm:$0xff]
    %v2736 = vld [vmem:[%s1120 + $0xb8] sm:$0xff]
    %v2737 = vld [vmem:[%s1120 + $0xf0] sm:$0xff]
    %v2738 = vld [vmem:[%s1120 + $0xf8] sm:$0xff]
    %v2739 = vld [vmem:[%s1120 + $0x100] sm:$0xff]
    %v2740 = vld [vmem:[%s1120 + $0x108] sm:$0xff]
    %v2741 = vld [vmem:[%s1120 + $0x110] sm:$0xff]
    %v2742 = vld [vmem:[%s1120 + $0x118] sm:$0xff]
    %v2743 = vld [vmem:[%s1120 + $0x120] sm:$0xff]
    %v2744 = vld [vmem:[%s1120 + $0x128] sm:$0xff]
    %v2745 = vld [vmem:[%s1120 + $0x130] sm:$0xff]
    %v2746 = vld [vmem:[%s1120 + $0x138] sm:$0xff]
    %v2747 = vld [vmem:[%s1120 + $0x140] sm:$0xff]
    %v2748 = vld [vmem:[%s1120 + $0x148] sm:$0xff]
    %v2749 = vld [vmem:[%s1120 + $0x150] sm:$0xff]
    %v2750 = vld [vmem:[%s1120 + $0x158] sm:$0xff]
    %v2751 = vld [vmem:[%s1120 + $0x160] sm:$0xff]
    %v2752 = vld [vmem:[%s1120 + $0x168] sm:$0xff]
    %v2753 = vld [vmem:[%s1120 + $0x170] sm:$0xff]
    %v2754 = vld [vmem:[%s1120 + $0x178] sm:$0xff]
    %v2755 = vld [vmem:[%s1120 + $0x180] sm:$0xff]
    %v2756 = vld [vmem:[%s1120 + $0x188] sm:$0xff]
    %v2757 = vld [vmem:[%s1120 + $0x190] sm:$0xff]
    %v2758 = vld [vmem:[%s1120 + $0x198] sm:$0xff]
    %v2759 = vld [vmem:[%s1120 + $0x1a0] sm:$0xff]
    %v2760 = vld [vmem:[%s1120 + $0x1a8] sm:$0xff]
    %v2761 = vpack.c.bf16 %v2716, %v2713
    %v2762 = vpack.c.bf16 %v2717, %v2714
    %v2763 = vpack.c.bf16 %v2718, %v2715
    %v2764 = vpack.c.bf16 %v2722, %v2719
    %v2765 = vpack.c.bf16 %v2723, %v2720
    %v2766 = vpack.c.bf16 %v2724, %v2721
    %v2767 = vpack.c.bf16 %v2728, %v2725
    %v2768 = vpack.c.bf16 %v2729, %v2726
    %v2769 = vpack.c.bf16 %v2730, %v2727
    %v2770 = vpack.c.bf16 %v2734, %v2731
    %v2771 = vpack.c.bf16 %v2735, %v2732
    %v2772 = vpack.c.bf16 %v2736, %v2733
    %v2773 = vpack.c.bf16 %v2740, %v2737
    %v2774 = vpack.c.bf16 %v2741, %v2738
    %v2775 = vpack.c.bf16 %v2742, %v2739
    %v2776 = vpack.c.bf16 %v2746, %v2743
    %v2777 = vpack.c.bf16 %v2747, %v2744
    %v2778 = vpack.c.bf16 %v2748, %v2745
    %v2779 = vpack.c.bf16 %v2752, %v2749
    %v2780 = vpack.c.bf16 %v2753, %v2750
    %v2781 = vpack.c.bf16 %v2754, %v2751
    %v2782 = vpack.c.bf16 %v2758, %v2755
    %v2783 = vpack.c.bf16 %v2759, %v2756
    %v2784 = vpack.c.bf16 %v2760, %v2757
    %s2785 = scalar_lea.vmem %s2, 384
    %v2786 = vld [vmem:[%s2785] sm:$0xf]
    %v2787 = vld [vmem:[%s2785 + $0x4] sm:$0xf]
    %v2788 = vld [vmem:[%s2785 + $0x8] sm:$0xf]
    %v2789 = vld [vmem:[%s2785 + $0xc] sm:$0xf]
    %v2790 = vld [vmem:[%s2785 + $0x10] sm:$0xf]
    %v2791 = vld [vmem:[%s2785 + $0x14] sm:$0xf]
    %v2792 = vld [vmem:[%s2785 + $0x18] sm:$0xf]
    %v2793 = vld [vmem:[%s2785 + $0x1c] sm:$0xf]
    %v2794 = vld [vmem:[%s2785 + $0x20] sm:$0xf]
    %v2795 = vld [vmem:[%s2785 + $0x24] sm:$0xf]
    %v2796 = vld [vmem:[%s2785 + $0x28] sm:$0xf]
    %v2797 = vld [vmem:[%s2785 + $0x2c] sm:$0xf]
    %v2798 = vld [vmem:[%s2785 + $0x30] sm:$0xf]
    %v2799 = vld [vmem:[%s2785 + $0x34] sm:$0xf]
    %v2800 = vld [vmem:[%s2785 + $0x38] sm:$0xf]
    %v2801 = vld [vmem:[%s2785 + $0x3c] sm:$0xf]
    %v2802 = vld [vmem:[%s2785 + $0x40] sm:$0xf]
    %v2803 = vld [vmem:[%s2785 + $0x44] sm:$0xf]
    %v2804 = vld [vmem:[%s2785 + $0x48] sm:$0xf]
    %v2805 = vld [vmem:[%s2785 + $0x4c] sm:$0xf]
    %v2806 = vld [vmem:[%s2785 + $0x50] sm:$0xf]
    %v2807 = vld [vmem:[%s2785 + $0x54] sm:$0xf]
    %v2808 = vld [vmem:[%s2785 + $0x58] sm:$0xf]
    %v2809 = vld [vmem:[%s2785 + $0x5c] sm:$0xf]
    %v2810 = vld [vmem:[%s2785 + $0x60] sm:$0xf]
    %v2811 = vld [vmem:[%s2785 + $0x64] sm:$0xf]
    %v2812 = vld [vmem:[%s2785 + $0x68] sm:$0xf]
    %v2813 = vld [vmem:[%s2785 + $0x6c] sm:$0xf]
    %v2814 = vld [vmem:[%s2785 + $0x70] sm:$0xf]
    %v2815 = vld [vmem:[%s2785 + $0x74] sm:$0xf]
    %v2816 = vld [vmem:[%s2785 + $0x78] sm:$0xf]
    %v2817 = vld [vmem:[%s2785 + $0x7c] sm:$0xf]
    %v2818 = vld [vmem:[%s2785 + $0x80] sm:$0xf]
    %v2819 = vld [vmem:[%s2785 + $0x84] sm:$0xf]
    %v2820 = vld [vmem:[%s2785 + $0x88] sm:$0xf]
    %v2821 = vld [vmem:[%s2785 + $0x8c] sm:$0xf]
    %v2822 = vld [vmem:[%s2785 + $0x90] sm:$0xf]
    %v2823 = vld [vmem:[%s2785 + $0x94] sm:$0xf]
    %v2824 = vld [vmem:[%s2785 + $0x98] sm:$0xf]
    %v2825 = vld [vmem:[%s2785 + $0x9c] sm:$0xf]
    %v2826 = vld [vmem:[%s2785 + $0xa0] sm:$0xf]
    %v2827 = vld [vmem:[%s2785 + $0xa4] sm:$0xf]
    %v2828 = vld [vmem:[%s2785 + $0xa8] sm:$0xf]
    %v2829 = vld [vmem:[%s2785 + $0xac] sm:$0xf]
    %v2830 = vld [vmem:[%s2785 + $0xb0] sm:$0xf]
    %v2831 = vld [vmem:[%s2785 + $0xb4] sm:$0xf]
    %v2832 = vld [vmem:[%s2785 + $0xb8] sm:$0xf]
    %v2833 = vld [vmem:[%s2785 + $0xbc] sm:$0xf]
    %v2882 = vunpack.c.l.b16 %v2786
    %v2883 = vunpack.c.l.b16 %v2787
    %v2884 = vunpack.c.l.b16 %v2788
    %v2885 = vunpack.c.l.b16 %v2789
    %v2886 = vunpack.c.l.b16 %v2790
    %v2887 = vunpack.c.l.b16 %v2791
    %v2888 = vunpack.c.l.b16 %v2792
    %v2889 = vunpack.c.l.b16 %v2793
    %v2890 = vunpack.c.l.b16 %v2794
    %v2891 = vunpack.c.l.b16 %v2795
    %v2892 = vunpack.c.l.b16 %v2796
    %v2893 = vunpack.c.l.b16 %v2797
    %v2894 = vunpack.c.l.b16 %v2798
    %v2895 = vunpack.c.l.b16 %v2799
    %v2896 = vunpack.c.l.b16 %v2800
    %v2897 = vunpack.c.l.b16 %v2801
    %v2898 = vunpack.c.l.b16 %v2802
    %v2899 = vunpack.c.l.b16 %v2803
    %v2900 = vunpack.c.l.b16 %v2804
    %v2901 = vunpack.c.l.b16 %v2805
    %v2902 = vunpack.c.l.b16 %v2806
    %v2903 = vunpack.c.l.b16 %v2807
    %v2904 = vunpack.c.l.b16 %v2808
    %v2905 = vunpack.c.l.b16 %v2809
    %v2906 = vunpack.c.l.b16 %v2810
    %v2907 = vunpack.c.l.b16 %v2811
    %v2908 = vunpack.c.l.b16 %v2812
    %v2909 = vunpack.c.l.b16 %v2813
    %v2910 = vunpack.c.l.b16 %v2814
    %v2911 = vunpack.c.l.b16 %v2815
    %v2912 = vunpack.c.l.b16 %v2816
    %v2913 = vunpack.c.l.b16 %v2817
    %v2914 = vunpack.c.l.b16 %v2818
    %v2915 = vunpack.c.l.b16 %v2819
    %v2916 = vunpack.c.l.b16 %v2820
    %v2917 = vunpack.c.l.b16 %v2821
    %v2918 = vunpack.c.l.b16 %v2822
    %v2919 = vunpack.c.l.b16 %v2823
    %v2920 = vunpack.c.l.b16 %v2824
    %v2921 = vunpack.c.l.b16 %v2825
    %v2922 = vunpack.c.l.b16 %v2826
    %v2923 = vunpack.c.l.b16 %v2827
    %v2924 = vunpack.c.l.b16 %v2828
    %v2925 = vunpack.c.l.b16 %v2829
    %v2926 = vunpack.c.l.b16 %v2830
    %v2927 = vunpack.c.l.b16 %v2831
    %v2928 = vunpack.c.l.b16 %v2832
    %v2929 = vunpack.c.l.b16 %v2833
    %v2930 = vpack.c.b16 %v2883, %v2882
    %v2931 = vpack.c.b16 %v2885, %v2884
    %v2932 = vpack.c.b16 %v2887, %v2886
    %v2933 = vpack.c.b16 %v2889, %v2888
    %v2934 = vpack.c.b16 %v2891, %v2890
    %v2935 = vpack.c.b16 %v2893, %v2892
    %v2936 = vpack.c.b16 %v2895, %v2894
    %v2937 = vpack.c.b16 %v2897, %v2896
    %v2938 = vpack.c.b16 %v2899, %v2898
    %v2939 = vpack.c.b16 %v2901, %v2900
    %v2940 = vpack.c.b16 %v2903, %v2902
    %v2941 = vpack.c.b16 %v2905, %v2904
    %v2942 = vpack.c.b16 %v2907, %v2906
    %v2943 = vpack.c.b16 %v2909, %v2908
    %v2944 = vpack.c.b16 %v2911, %v2910
    %v2945 = vpack.c.b16 %v2913, %v2912
    %v2946 = vpack.c.b16 %v2915, %v2914
    %v2947 = vpack.c.b16 %v2917, %v2916
    %v2948 = vpack.c.b16 %v2919, %v2918
    %v2949 = vpack.c.b16 %v2921, %v2920
    %v2950 = vpack.c.b16 %v2923, %v2922
    %v2951 = vpack.c.b16 %v2925, %v2924
    %v2952 = vpack.c.b16 %v2927, %v2926
    %v2953 = vpack.c.b16 %v2929, %v2928
    %2978 = vmatprep.subr.bf16.mxu0 0
    %2979 = vmatpush1.bf16.msra.mxu0 %v2930
    %2980 = vmatprep.subr.bf16.mxu0 0
    %2981 = vmatpush1.bf16.msra.mxu0 %v2931
    %2982 = vmatprep.subr.bf16.mxu0 0
    %2983 = vmatpush1.bf16.msra.mxu0 %v2932
    %2984 = vmatprep.subr.bf16.mxu0 0
    %2985 = vmatpush1.bf16.msra.mxu0 %v2933
    %2986 = vmatprep.subr.bf16.mxu0 0
    %2987 = vmatpush1.bf16.msra.mxu0 %v2934
    %2988 = vmatprep.subr.bf16.mxu0 0
    %2989 = vmatpush1.bf16.msra.mxu0 %v2935
    %2990 = vmatprep.subr.bf16.mxu0 0
    %2991 = vmatpush1.bf16.msra.mxu0 %v2936
    %2992 = vmatprep.subr.bf16.mxu0 0
    %2993 = vmatpush1.bf16.msra.mxu0 %v2937
    %2994 = vmatprep.subr.bf16.mxu0 0
    %2995 = vmatpush1.bf16.msra.mxu0 %v2938
    %2996 = vmatprep.subr.bf16.mxu0 0
    %2997 = vmatpush1.bf16.msra.mxu0 %v2939
    %2998 = vmatprep.subr.bf16.mxu0 0
    %2999 = vmatpush1.bf16.msra.mxu0 %v2940
    %3000 = vmatprep.subr.bf16.mxu0 0
    %3001 = vmatpush1.bf16.msra.mxu0 %v2941
    %3002 = vmatprep.subr.bf16.mxu0 0
    %3003 = vmatpush1.bf16.msra.mxu0 %v2942
    %3004 = vmatprep.subr.bf16.mxu0 0
    %3005 = vmatpush1.bf16.msra.mxu0 %v2943
    %3006 = vmatprep.subr.bf16.mxu0 0
    %3007 = vmatpush1.bf16.msra.mxu0 %v2944
    %3008 = vmatprep.subr.bf16.mxu0 0
    %3009 = vmatpush1.bf16.msra.mxu0 %v2945
    %3010 = vmatprep.mubr.bf16.mxu0 %v2762
    %3011 = vmatmul.mubr.bf16.gmra.mrb[0].mxu0 %v2761
    %v3012 = vpop.f32.mrb[0].mxu0
    %v3013 = vadd.f32 0.0, %v3012
    %v3014 = vpop.f32.mrb[0].mxu0
    %v3015 = vpop.f32.mrb[0].mxu0
    %v3016 = vadd.f32 0.0, %v3015
    %v3017 = vpop.f32.mrb[0].mxu0
    %3018 = vmatprep.mubr.bf16.mxu0 %v2765
    %3019 = vmatmul.mubr.bf16.gmra.mrb[0].mxu0 %v2764
    %v3020 = vpop.f32.mrb[0].mxu0
    %v3021 = vadd.f32 0.0, %v3020
    %v3022 = vpop.f32.mrb[0].mxu0
    %v3023 = vpop.f32.mrb[0].mxu0
    %v3024 = vadd.f32 0.0, %v3023
    %v3025 = vpop.f32.mrb[0].mxu0
    %3026 = vmatprep.mubr.bf16.mxu0 %v2768
    %3027 = vmatmul.mubr.bf16.gmra.mrb[0].mxu0 %v2767
    %v3028 = vpop.f32.mrb[0].mxu0
    %v3029 = vadd.f32 0.0, %v3028
    %v3030 = vpop.f32.mrb[0].mxu0
    %v3031 = vpop.f32.mrb[0].mxu0
    %v3032 = vadd.f32 0.0, %v3031
    %v3033 = vpop.f32.mrb[0].mxu0
    %3034 = vmatprep.mubr.bf16.mxu0 %v2771
    %3035 = vmatmul.mubr.bf16.gmra.mrb[0].mxu0 %v2770
    %v3036 = vpop.f32.mrb[0].mxu0
    %v3037 = vadd.f32 0.0, %v3036
    %v3038 = vpop.f32.mrb[0].mxu0
    %v3039 = vpop.f32.mrb[0].mxu0
    %v3040 = vadd.f32 0.0, %v3039
    %v3041 = vpop.f32.mrb[0].mxu0
    %3042 = vmatprep.mubr.bf16.mxu0 %v2774
    %3043 = vmatmul.mubr.bf16.gmra.mrb[0].mxu0 %v2773
    %v3044 = vpop.f32.mrb[0].mxu0
    %v3045 = vadd.f32 0.0, %v3044
    %v3046 = vpop.f32.mrb[0].mxu0
    %v3047 = vpop.f32.mrb[0].mxu0
    %v3048 = vadd.f32 0.0, %v3047
    %v3049 = vpop.f32.mrb[0].mxu0
    %3050 = vmatprep.mubr.bf16.mxu0 %v2777
    %3051 = vmatmul.mubr.bf16.gmra.mrb[0].mxu0 %v2776
    %v3052 = vpop.f32.mrb[0].mxu0
    %v3053 = vadd.f32 0.0, %v3052
    %v3054 = vpop.f32.mrb[0].mxu0
    %v3055 = vpop.f32.mrb[0].mxu0
    %v3056 = vadd.f32 0.0, %v3055
    %v3057 = vpop.f32.mrb[0].mxu0
    %3058 = vmatprep.mubr.bf16.mxu0 %v2780
    %3059 = vmatmul.mubr.bf16.gmra.mrb[0].mxu0 %v2779
    %v3060 = vpop.f32.mrb[0].mxu0
    %v3061 = vadd.f32 0.0, %v3060
    %v3062 = vpop.f32.mrb[0].mxu0
    %v3063 = vpop.f32.mrb[0].mxu0
    %v3064 = vadd.f32 0.0, %v3063
    %v3065 = vpop.f32.mrb[0].mxu0
    %3066 = vmatprep.mubr.bf16.mxu0 %v2783
    %3067 = vmatmul.mubr.bf16.gmra.mrb[0].mxu0 %v2782
    %v3068 = vpop.f32.mrb[0].mxu0
    %v3069 = vadd.f32 0.0, %v3068
    %v3070 = vpop.f32.mrb[0].mxu0
    %v3071 = vpop.f32.mrb[0].mxu0
    %v3072 = vadd.f32 0.0, %v3071
    %v3073 = vpop.f32.mrb[0].mxu0
    %3074 = vdwg.mxu0
    %3075 = vmatprep.subr.bf16.mxu0 0
    %3076 = vmatpush1.bf16.msra.mxu0 %v2946
    %3077 = vmatprep.subr.bf16.mxu0 0
    %3078 = vmatpush1.bf16.msra.mxu0 %v2947
    %3079 = vmatprep.subr.bf16.mxu0 0
    %3080 = vmatpush1.bf16.msra.mxu0 %v2948
    %3081 = vmatprep.subr.bf16.mxu0 0
    %3082 = vmatpush1.bf16.msra.mxu0 %v2949
    %3083 = vmatprep.subr.bf16.mxu0 0
    %3084 = vmatpush1.bf16.msra.mxu0 %v2950
    %3085 = vmatprep.subr.bf16.mxu0 0
    %3086 = vmatpush1.bf16.msra.mxu0 %v2951
    %3087 = vmatprep.subr.bf16.mxu0 0
    %3088 = vmatpush1.bf16.msra.mxu0 %v2952
    %3089 = vmatprep.subr.bf16.mxu0 0
    %3090 = vmatpush1.bf16.msra.mxu0 %v2953
    %3091 = vmatprep.subr.bf16.mxu0 0
    %3092 = vmatpush1.bf16.msra.mxu0 0
    %3093 = vmatprep.subr.bf16.mxu0 0
    %3094 = vmatpush1.bf16.msra.mxu0 0
    %3095 = vmatprep.subr.bf16.mxu0 0
    %3096 = vmatpush1.bf16.msra.mxu0 0
    %3097 = vmatprep.subr.bf16.mxu0 0
    %3098 = vmatpush1.bf16.msra.mxu0 0
    %3099 = vmatprep.subr.bf16.mxu0 0
    %3100 = vmatpush1.bf16.msra.mxu0 0
    %3101 = vmatprep.subr.bf16.mxu0 0
    %3102 = vmatpush1.bf16.msra.mxu0 0
    %3103 = vmatprep.subr.bf16.mxu0 0
    %3104 = vmatpush1.bf16.msra.mxu0 0
    %3105 = vmatprep.subr.bf16.mxu0 0
    %3106 = vmatpush1.bf16.msra.mxu0 0
    %3107 = vmatprep.mubr.bf16.mxu0 0
    %3108 = vmatmul.mubr.bf16.gmra.mrb[0].mxu0 %v2763
    %v3109 = vpop.f32.mrb[0].mxu0
    %v3110 = vadd.f32 %v3013, %v3109
    %v3111 = vpop.f32.mrb[0].mxu0
    %v3112 = vpop.f32.mrb[0].mxu0
    %v3113 = vadd.f32 %v3016, %v3112
    %v3114 = vpop.f32.mrb[0].mxu0
    %3115 = vmatprep.mubr.bf16.mxu0 0
    %3116 = vmatmul.mubr.bf16.gmra.mrb[0].mxu0 %v2766
    %v3117 = vpop.f32.mrb[0].mxu0
    %v3118 = vadd.f32 %v3021, %v3117
    %v3119 = vpop.f32.mrb[0].mxu0
    %v3120 = vpop.f32.mrb[0].mxu0
    %v3121 = vadd.f32 %v3024, %v3120
    %v3122 = vpop.f32.mrb[0].mxu0
    %3123 = vmatprep.mubr.bf16.mxu0 0
    %3124 = vmatmul.mubr.bf16.gmra.mrb[0].mxu0 %v2769
    %v3125 = vpop.f32.mrb[0].mxu0
    %v3126 = vadd.f32 %v3029, %v3125
    %v3127 = vpop.f32.mrb[0].mxu0
    %v3128 = vpop.f32.mrb[0].mxu0
    %v3129 = vadd.f32 %v3032, %v3128
    %v3130 = vpop.f32.mrb[0].mxu0
    %3131 = vmatprep.mubr.bf16.mxu0 0
    %3132 = vmatmul.mubr.bf16.gmra.mrb[0].mxu0 %v2772
    %v3133 = vpop.f32.mrb[0].mxu0
    %v3134 = vadd.f32 %v3037, %v3133
    %v3135 = vpop.f32.mrb[0].mxu0
    %v3136 = vpop.f32.mrb[0].mxu0
    %v3137 = vadd.f32 %v3040, %v3136
    %v3138 = vpop.f32.mrb[0].mxu0
    %3139 = vmatprep.mubr.bf16.mxu0 0
    %3140 = vmatmul.mubr.bf16.gmra.mrb[0].mxu0 %v2775
    %v3141 = vpop.f32.mrb[0].mxu0
    %v3142 = vadd.f32 %v3045, %v3141
    %v3143 = vpop.f32.mrb[0].mxu0
    %v3144 = vpop.f32.mrb[0].mxu0
    %v3145 = vadd.f32 %v3048, %v3144
    %v3146 = vpop.f32.mrb[0].mxu0
    %3147 = vmatprep.mubr.bf16.mxu0 0
    %3148 = vmatmul.mubr.bf16.gmra.mrb[0].mxu0 %v2778
    %v3149 = vpop.f32.mrb[0].mxu0
    %v3150 = vadd.f32 %v3053, %v3149
    %v3151 = vpop.f32.mrb[0].mxu0
    %v3152 = vpop.f32.mrb[0].mxu0
    %v3153 = vadd.f32 %v3056, %v3152
    %v3154 = vpop.f32.mrb[0].mxu0
    %3155 = vmatprep.mubr.bf16.mxu0 0
    %3156 = vmatmul.mubr.bf16.gmra.mrb[0].mxu0 %v2781
    %v3157 = vpop.f32.mrb[0].mxu0
    %v3158 = vadd.f32 %v3061, %v3157
    %v3159 = vpop.f32.mrb[0].mxu0
    %v3160 = vpop.f32.mrb[0].mxu0
    %v3161 = vadd.f32 %v3064, %v3160
    %v3162 = vpop.f32.mrb[0].mxu0
    %3163 = vmatprep.mubr.bf16.mxu0 0
    %3164 = vmatmul.mubr.bf16.gmra.mrb[0].mxu0 %v2784
    %v3165 = vpop.f32.mrb[0].mxu0
    %v3166 = vadd.f32 %v3069, %v3165
    %v3167 = vpop.f32.mrb[0].mxu0
    %v3168 = vpop.f32.mrb[0].mxu0
    %v3169 = vadd.f32 %v3072, %v3168
    %v3170 = vpop.f32.mrb[0].mxu0
    %3171 = vdwg.mxu0
    %v3172 = vadd.f32 %v2651, %v3110
    %v3173 = vadd.f32 %v2654, %v3113
    %v3174 = vadd.f32 %v2659, %v3118
    %v3175 = vadd.f32 %v2662, %v3121
    %v3176 = vadd.f32 %v2667, %v3126
    %v3177 = vadd.f32 %v2670, %v3129
    %v3178 = vadd.f32 %v2675, %v3134
    %v3179 = vadd.f32 %v2678, %v3137
    %v3180 = vadd.f32 %v2683, %v3142
    %v3181 = vadd.f32 %v2686, %v3145
    %v3182 = vadd.f32 %v2691, %v3150
    %v3183 = vadd.f32 %v2694, %v3153
    %v3184 = vadd.f32 %v2699, %v3158
    %v3185 = vadd.f32 %v2702, %v3161
    %v3186 = vadd.f32 %v2707, %v3166
    %v3187 = vadd.f32 %v2710, %v3169
    %v3188 = vlaneseq
    %v3189 = vshrl.u32 %v3188, 7
    %v3190 = vsub.s32 0, %v3189
    %v3191 = vrot.slane %v21, %v3190
    %v3192 = vmul.f32 %v3172, %v3191
    %v3193 = vmul.f32 %v3173, %v3191
    %v3194 = vmul.f32 %v3174, %v3191
    %v3195 = vmul.f32 %v3175, %v3191
    %v3196 = vmul.f32 %v3176, %v3191
    %v3197 = vmul.f32 %v3177, %v3191
    %v3198 = vmul.f32 %v3178, %v3191
    %v3199 = vmul.f32 %v3179, %v3191
    %v3200 = vmul.f32 %v3180, %v3191
    %v3201 = vmul.f32 %v3181, %v3191
    %v3202 = vmul.f32 %v3182, %v3191
    %v3203 = vmul.f32 %v3183, %v3191
    %v3204 = vmul.f32 %v3184, %v3191
    %v3205 = vmul.f32 %v3185, %v3191
    %v3206 = vmul.f32 %v3186, %v3191
    %v3207 = vmul.f32 %v3187, %v3191
    %v3208 = vlaneseq
    %v3209 = vshrl.u32 %v3208, 7
    %v3210 = vsub.s32 0, %v3209
    %v3211 = vrot.slane %v22, %v3210
    %v3212 = vadd.f32 %v3192, %v3211
    %v3213 = vadd.f32 %v3193, %v3211
    %v3214 = vadd.f32 %v3194, %v3211
    %v3215 = vadd.f32 %v3195, %v3211
    %v3216 = vadd.f32 %v3196, %v3211
    %v3217 = vadd.f32 %v3197, %v3211
    %v3218 = vadd.f32 %v3198, %v3211
    %v3219 = vadd.f32 %v3199, %v3211
    %v3220 = vadd.f32 %v3200, %v3211
    %v3221 = vadd.f32 %v3201, %v3211
    %v3222 = vadd.f32 %v3202, %v3211
    %v3223 = vadd.f32 %v3203, %v3211
    %v3224 = vadd.f32 %v3204, %v3211
    %v3225 = vadd.f32 %v3205, %v3211
    %v3226 = vadd.f32 %v3206, %v3211
    %v3227 = vadd.f32 %v3207, %v3211
    %v3228 = vadd.f32 %v3212, %v40
    %v3229 = vadd.f32 %v3213, %v41
    %v3230 = vadd.f32 %v3214, %v42
    %v3231 = vadd.f32 %v3215, %v43
    %v3232 = vadd.f32 %v3216, %v44
    %v3233 = vadd.f32 %v3217, %v45
    %v3234 = vadd.f32 %v3218, %v46
    %v3235 = vadd.f32 %v3219, %v47
    %v3236 = vadd.f32 %v3220, %v48
    %v3237 = vadd.f32 %v3221, %v49
    %v3238 = vadd.f32 %v3222, %v50
    %v3239 = vadd.f32 %v3223, %v51
    %v3240 = vadd.f32 %v3224, %v52
    %v3241 = vadd.f32 %v3225, %v53
    %v3242 = vadd.f32 %v3226, %v54
    %v3243 = vadd.f32 %v3227, %v55
    %v3244 = vmax.f32 %v3228, 0.0
    %v3245 = vmax.f32 %v3229, 0.0
    %v3246 = vmax.f32 %v3230, 0.0
    %v3247 = vmax.f32 %v3231, 0.0
    %v3248 = vmax.f32 %v3232, 0.0
    %v3249 = vmax.f32 %v3233, 0.0
    %v3250 = vmax.f32 %v3234, 0.0
    %v3251 = vmax.f32 %v3235, 0.0
    %v3252 = vmax.f32 %v3236, 0.0
    %v3253 = vmax.f32 %v3237, 0.0
    %v3254 = vmax.f32 %v3238, 0.0
    %v3255 = vmax.f32 %v3239, 0.0
    %v3256 = vmax.f32 %v3240, 0.0
    %v3257 = vmax.f32 %v3241, 0.0
    %v3258 = vmax.f32 %v3242, 0.0
    %v3259 = vmax.f32 %v3243, 0.0
    %3260 = vst [vmem:[#allocation3] sm:$0xff] %v3244
    %3261 = vst [vmem:[#allocation3 + $0x8] sm:$0xff] %v3245
    %3262 = vst [vmem:[#allocation3 + $0x10] sm:$0xff] %v3246
    %3263 = vst [vmem:[#allocation3 + $0x18] sm:$0xff] %v3247
    %3264 = vst [vmem:[#allocation3 + $0x20] sm:$0xff] %v3248
    %3265 = vst [vmem:[#allocation3 + $0x28] sm:$0xff] %v3249
    %3266 = vst [vmem:[#allocation3 + $0x30] sm:$0xff] %v3250
    %3267 = vst [vmem:[#allocation3 + $0x38] sm:$0xff] %v3251
    %3268 = vst [vmem:[#allocation3 + $0x40] sm:$0xff] %v3252
    %3269 = vst [vmem:[#allocation3 + $0x48] sm:$0xff] %v3253
    %3270 = vst [vmem:[#allocation3 + $0x50] sm:$0xff] %v3254
    %3271 = vst [vmem:[#allocation3 + $0x58] sm:$0xff] %v3255
    %3272 = vst [vmem:[#allocation3 + $0x60] sm:$0xff] %v3256
    %3273 = vst [vmem:[#allocation3 + $0x68] sm:$0xff] %v3257
    %3274 = vst [vmem:[#allocation3 + $0x70] sm:$0xff] %v3258
    %3275 = vst [vmem:[#allocation3 + $0x78] sm:$0xff] %v3259
    // Predicated region
    $region18: #{resblock.1} parent=1 // pred_check
      _
    $region19: #{resblock.1} parent=1 // pred_check_branch
      %3277 = sbr.rel (0) target = $region21
    $region20: #{resblock.1} parent=1 // pred_region
      %s3279 = ssub.s32 2048, 2048
      %3280 = vsyncadd [#allocation4], %s3279
      %s3281 = sshll.u32 [#allocation3], 4
      %s3282 = int_to_ptr.vmem [resolvable:$true] %s3281
      %3287 = dma.vmem_to_hbm [thread:$0]  %s3282, 2048, %s4, [#allocation4], 128, 128, 8
    $region21: #{resblock.1} parent=1 // pred_fallthru
      _
    // Predicated region
    $region22: #{resblock.1} parent=1 // pred_check
      _
    $region23: #{resblock.1} parent=1 // pred_check_branch
      %3289 = sbr.rel (0) target = $region25
    $region24: #{resblock.1} parent=1 // pred_region
      %3290 = dma.done [#allocation4], 2048
    $region25: #{resblock.1} parent=1 // pred_fallthru
      _
    %3291 = vsyncpa [#allocation4], 1

</llo_original>
